<compile_context>
chip_gen: v5e
topology: v5e:2x2
jax: 0.10.0
libtpu: 0.0.40
codegen_flags: <defaults>
</compile_context>

<pallas_src>
import jax
import jax.numpy as jnp
import numpy as np
from jax import lax
from jax.experimental import pallas as pl
from jax.experimental.pallas import tpu as pltpu

F_X = 1        # node feature dim
F_E = 19       # edge feature dim     (F_X + F_E = 20 = node_mlp_1 input)
F_U = 1        # global feature dim   (F_X + 19 + F_U = 21 = node_mlp_2 input)
H1_IN, H1_HID, H1_OUT = 20, 10, 19
H2_IN, H2_HID, H2_OUT = 21, 10, 19

TILE_N = 256   # node tile (sublane dim of one-hot / accumulator), multiple of 8
TILE_E = 512   # edge tile (lane dim of one-hot), multiple of 128


def _round_up(a, b):
    return (a + b - 1) // b * b


def node_model_kernel(edge_in_ref, col_ref, xu_ref,
                      w1_ref, b1_ref, w2e_ref, b2e_ref,
                      w3xu_ref, w3agg_ref, b3_ref, w4_ref, b4_ref,
                      out_ref, acc_ref):
    f32 = jnp.float32
    ei = pl.program_id(1)

    @pl.when(ei == 0)
    def _():
        acc_ref[...] = jnp.zeros_like(acc_ref)

    # ---- node_mlp_1 on this edge tile; counts column fused via extended w2/b2 ----
    h = jnp.maximum(
        jnp.dot(edge_in_ref[...], w1_ref[...], preferred_element_type=f32)
        + b1_ref[...], 0.0)                                             # [TE, 10]
    h_ext = jnp.dot(h, w2e_ref[...], preferred_element_type=f32) + b2e_ref[...]  # [TE, 20]

    # ---- scatter-add as ONE bf16 one-hot matmul (f32 accumulation) ----
    # Out-of-range / negative col indices simply match no node (zero contribution).
    tn = acc_ref.shape[0]
    te = col_ref.shape[1]
    node_ids = (lax.broadcasted_iota(jnp.int32, (tn, te), 0)
                + pl.program_id(0) * tn)                                # [TN, TE]
    onehot = (col_ref[...] == node_ids).astype(jnp.bfloat16)            # [TN, TE]
    acc_ref[...] += jnp.dot(onehot, h_ext.astype(jnp.bfloat16),
                            preferred_element_type=f32)                 # [TN, 20]

    # ---- finalize once per node tile: scatter_mean + node_mlp_2 ----
    @pl.when(ei == pl.num_programs(1) - 1)
    def _():
        acc = acc_ref[...]
        agg = acc[:, :H1_OUT] / jnp.maximum(acc[:, H1_OUT:], 1.0)       # empty nodes -> 0
        h2 = jnp.maximum(
            jnp.dot(xu_ref[...], w3xu_ref[...], preferred_element_type=f32)
            + jnp.dot(agg, w3agg_ref[...], preferred_element_type=f32)
            + b3_ref[...], 0.0)                                         # [TN, 10]
        out = jnp.dot(h2, w4_ref[...], preferred_element_type=f32) + b4_ref[...]
        out_ref[...] = out.astype(out_ref.dtype)


def init_params(key):
    """Deterministic PyTorch-Linear-style init; weights stored as [in, out]."""
    def linear(k, fan_in, fan_out):
        k1, k2 = jax.random.split(k)
        bound = 1.0 / np.sqrt(fan_in)
        w = jax.random.uniform(k1, (fan_in, fan_out), jnp.float32, -bound, bound)
        b = jax.random.uniform(k2, (1, fan_out), jnp.float32, -bound, bound)
        return w, b
    ks = jax.random.split(key, 4)
    w1, b1 = linear(ks[0], H1_IN, H1_HID)
    w2, b2 = linear(ks[1], H1_HID, H1_OUT)
    w3, b3 = linear(ks[2], H2_IN, H2_HID)
    w4, b4 = linear(ks[3], H2_HID, H2_OUT)
    return (w1, b1, w2, b2, w3, b3, w4, b4)


@jax.jit
def node_model(x, edge_index, edge_attr, u, batch, params):
    w1, b1, w2, b2, w3, b3, w4, b4 = params
    N = x.shape[0]
    E = edge_attr.shape[0]
    row = edge_index[0]
    col = edge_index[1].astype(jnp.int32)

    # Gathers + concats with x[row] / u[batch] done as plain (cheap) JAX so the
    # kernel only performs dense matmuls.
    edge_in = jnp.concatenate(
        [x[row].astype(jnp.float32), edge_attr.astype(jnp.float32)], axis=1)  # [E, 20]
    xu = jnp.concatenate(
        [x.astype(jnp.float32), u[batch].astype(jnp.float32)], axis=1)        # [N, 2]

    # Fuse scatter counts into the sums matmul: extend node_mlp_1's second layer
    # with a zero-weight / one-bias column so h_ext[:, 19] == 1 exactly.
    w2e = jnp.concatenate([w2, jnp.zeros((H1_HID, 1), jnp.float32)], axis=1)   # [10, 20]
    b2e = jnp.concatenate([b2, jnp.ones((1, 1), jnp.float32)], axis=1)         # [1, 20]

    # Split node_mlp_2's first layer so cat([x, agg, u[batch]]) folds into
    # separate matmuls: rows {0, 20} act on [x, u], rows 1..19 act on agg.
    w3_xu = w3[jnp.array([0, F_X + H1_OUT]), :]                                # [2, 10]
    w3_agg = w3[F_X:F_X + H1_OUT, :]                                           # [19, 10]

    # Pad to tile multiples; padded edges get col = -1 (matches no node id).
    n_pad = _round_up(max(N, 1), TILE_N)
    e_pad = _round_up(max(E, 1), TILE_E)
    edge_in_p = jnp.zeros((e_pad, H1_IN), jnp.float32).at[:E].set(edge_in)
    col_p = jnp.full((1, e_pad), -1, jnp.int32).at[0, :E].set(col)
    xu_p = jnp.zeros((n_pad, F_X + F_U), jnp.float32).at[:N].set(xu)

    grid = (n_pad // TILE_N, e_pad // TILE_E)
    full = lambda shape: pl.BlockSpec(shape, lambda ni, ei: (0, 0))

    out = pl.pallas_call(
        node_model_kernel,
        out_shape=jax.ShapeDtypeStruct((n_pad, H2_OUT), jnp.float32),
        grid_spec=pltpu.PrefetchScalarGridSpec(
            num_scalar_prefetch=0,
            grid=grid,
            in_specs=[
                pl.BlockSpec((TILE_E, H1_IN), lambda ni, ei: (ei, 0)),       # edge_in
                pl.BlockSpec((1, TILE_E), lambda ni, ei: (0, ei)),           # col (lane-dense)
                pl.BlockSpec((TILE_N, F_X + F_U), lambda ni, ei: (ni, 0)),   # xu
                full((H1_IN, H1_HID)), full((1, H1_HID)),                    # w1, b1
                full((H1_HID, H1_OUT + 1)), full((1, H1_OUT + 1)),           # w2e, b2e
                full((2, H2_HID)), full((H1_OUT, H2_HID)), full((1, H2_HID)),  # w3 splits, b3
                full((H2_HID, H2_OUT)), full((1, H2_OUT)),                   # w4, b4
            ],
            out_specs=pl.BlockSpec((TILE_N, H2_OUT), lambda ni, ei: (ni, 0)),
            scratch_shapes=[pltpu.VMEM((TILE_N, H1_OUT + 1), jnp.float32)],
        ),
        compiler_params=pltpu.CompilerParams(
            dimension_semantics=("parallel", "arbitrary")),
    )(edge_in_p, col_p, xu_p, w1, b1, w2e, b2e, w3_xu, w3_agg, b3, w4, b4)

    return out[:N]


def node_model_ref(x, edge_index, edge_attr, u, batch, params):
    """Pure-JAX reference matching the PyTorch forward (scatter_mean -> 0 for empty nodes)."""
    w1, b1, w2, b2, w3, b3, w4, b4 = params
    row, col = edge_index[0], edge_index[1]
    out = jnp.concatenate([x[row], edge_attr], axis=1)
    out = jnp.maximum(out @ w1 + b1, 0.0) @ w2 + b2
    N = x.shape[0]
    sums = jnp.zeros((N, out.shape[1]), jnp.float32).at[col].add(out)
    counts = jnp.zeros((N, 1), jnp.float32).at[col].add(1.0)
    mean = sums / jnp.maximum(counts, 1.0)
    out = jnp.concatenate([x, mean, u[batch]], axis=1)
    return jnp.maximum(out @ w3 + b3, 0.0) @ w4 + b4


if __name__ == "__main__":
    key = jax.random.PRNGKey(0)
    k_p, k_x, k_ea, k_u, k_ei = jax.random.split(key, 5)

    N, E, B = 8, 16, 2
    x = jax.random.normal(k_x, (N, F_X), jnp.float32)
    edge_attr = jax.random.normal(k_ea, (E, F_E), jnp.float32)
    u = jax.random.normal(k_u, (B, F_U), jnp.float32)
    edge_index = jax.random.randint(k_ei, (2, E), 0, N, jnp.int32)
    batch = jnp.repeat(jnp.arange(B, dtype=jnp.int32), N // B)
    params = init_params(k_p)

    out = node_model(x, edge_index, edge_attr, u, batch, params)
    out = jax.block_until_ready(out)

    ref = node_model_ref(x, edge_index, edge_attr, u, batch, params)
    assert out.shape == (N, H2_OUT)
    np.testing.assert_allclose(np.asarray(out), np.asarray(ref),
                               rtol=2e-2, atol=2e-2)
    print("KERNEL_OK")
</pallas_src>

<mosaic_0001>
module attributes {stable_mosaic.version = 11 : i64} {
  func.func @node_model_kernel(%arg0: i32, %arg1: i32, %arg2: memref<512x20xf32, #tpu.memory_space<vmem>>, %arg3: memref<1x512xi32, #tpu.memory_space<vmem>>, %arg4: memref<256x2xf32, #tpu.memory_space<vmem>>, %arg5: memref<20x10xf32, #tpu.memory_space<vmem>>, %arg6: memref<1x10xf32, #tpu.memory_space<vmem>>, %arg7: memref<10x20xf32, #tpu.memory_space<vmem>>, %arg8: memref<1x20xf32, #tpu.memory_space<vmem>>, %arg9: memref<2x10xf32, #tpu.memory_space<vmem>>, %arg10: memref<19x10xf32, #tpu.memory_space<vmem>>, %arg11: memref<1x10xf32, #tpu.memory_space<vmem>>, %arg12: memref<10x19xf32, #tpu.memory_space<vmem>>, %arg13: memref<1x19xf32, #tpu.memory_space<vmem>>, %arg14: memref<256x19xf32, #tpu.memory_space<vmem>>, %arg15: memref<256x20xf32, #tpu.memory_space<vmem>>) attributes {dimension_semantics = [#tpu.dimension_semantics<parallel>, #tpu.dimension_semantics<arbitrary>], iteration_bounds = array<i64: 1, 1>, scalar_prefetch = 0 : i64, scratch_operands = 1 : i64, tpu.core_type = #tpu.core_type<tc>, window_params = [{transform_indices = @transform_0, window_bounds = array<i64: 512, 20>}, {transform_indices = @transform_1, window_bounds = array<i64: 1, 512>}, {transform_indices = @transform_2, window_bounds = array<i64: 256, 2>}, {pipeline_mode = #tpu.pipeline_mode<synchronous>, transform_indices = @transform_3, window_bounds = array<i64: 20, 10>}, {pipeline_mode = #tpu.pipeline_mode<synchronous>, transform_indices = @transform_4, window_bounds = array<i64: 1, 10>}, {pipeline_mode = #tpu.pipeline_mode<synchronous>, transform_indices = @transform_5, window_bounds = array<i64: 10, 20>}, {pipeline_mode = #tpu.pipeline_mode<synchronous>, transform_indices = @transform_6, window_bounds = array<i64: 1, 20>}, {pipeline_mode = #tpu.pipeline_mode<synchronous>, transform_indices = @transform_7, window_bounds = array<i64: 2, 10>}, {pipeline_mode = #tpu.pipeline_mode<synchronous>, transform_indices = @transform_8, window_bounds = array<i64: 19, 10>}, {pipeline_mode = #tpu.pipeline_mode<synchronous>, transform_indices = @transform_9, window_bounds = array<i64: 1, 10>}, {pipeline_mode = #tpu.pipeline_mode<synchronous>, transform_indices = @transform_10, window_bounds = array<i64: 10, 19>}, {pipeline_mode = #tpu.pipeline_mode<synchronous>, transform_indices = @transform_11, window_bounds = array<i64: 1, 19>}, {transform_indices = @transform_12, window_bounds = array<i64: 256, 19>}]} {
    %c0_i32 = arith.constant 0 : i32
    %0 = arith.cmpi eq, %arg1, %c0_i32 : i32
    %1 = arith.extui %0 : i1 to i32
    %c0_i32_0 = arith.constant 0 : i32
    %2 = arith.cmpi ne, %1, %c0_i32_0 : i32
    scf.if %2 {
      %cst_21 = arith.constant 0.000000e+00 : f32
      %34 = vector.broadcast %cst_21 : f32 to vector<256x20xf32>
      %c0_22 = arith.constant 0 : index
      %c0_23 = arith.constant 0 : index
      %35 = vector.load %arg15[%c0_22, %c0_23] : memref<256x20xf32, #tpu.memory_space<vmem>>, vector<256x20xf32>
      tpu.vector_store %arg15[%c0_22, %c0_23], %34 {strides = array<i32>} : memref<256x20xf32, #tpu.memory_space<vmem>>, vector<256x20xf32>,
    } else {
    }
    %c0 = arith.constant 0 : index
    %c0_1 = arith.constant 0 : index
    %3 = vector.load %arg2[%c0, %c0_1] : memref<512x20xf32, #tpu.memory_space<vmem>>, vector<512x20xf32>
    %c0_2 = arith.constant 0 : index
    %c0_3 = arith.constant 0 : index
    %4 = vector.load %arg5[%c0_2, %c0_3] : memref<20x10xf32, #tpu.memory_space<vmem>>, vector<20x10xf32>
    %cst = arith.constant dense<0.000000e+00> : vector<512x10xf32>
    %5 = tpu.matmul %3, %4, %cst {dimension_numbers = #tpu.dot_dimension_numbers<[1], [0], [0], [1], [0, 0, 1, 1], [], []>} : vector<512x20xf32>, vector<20x10xf32>, vector<512x10xf32> -> vector<512x10xf32>
    %c0_4 = arith.constant 0 : index
    %c0_5 = arith.constant 0 : index
    %6 = vector.load %arg6[%c0_4, %c0_5] : memref<1x10xf32, #tpu.memory_space<vmem>>, vector<1x10xf32>
    %7 = vector.broadcast %6 : vector<1x10xf32> to vector<512x10xf32>
    %8 = arith.addf %5, %7 : vector<512x10xf32>
    %cst_6 = arith.constant 0.000000e+00 : f32
    %9 = vector.broadcast %cst_6 : f32 to vector<512x10xf32>
    %10 = arith.maximumf %8, %9 : vector<512x10xf32>
    %c0_7 = arith.constant 0 : index
    %c0_8 = arith.constant 0 : index
    %11 = vector.load %arg7[%c0_7, %c0_8] : memref<10x20xf32, #tpu.memory_space<vmem>>, vector<10x20xf32>
    %cst_9 = arith.constant dense<0.000000e+00> : vector<512x20xf32>
    %12 = tpu.matmul %10, %11, %cst_9 {dimension_numbers = #tpu.dot_dimension_numbers<[1], [0], [0], [1], [0, 0, 1, 1], [], []>} : vector<512x10xf32>, vector<10x20xf32>, vector<512x20xf32> -> vector<512x20xf32>
    %c0_10 = arith.constant 0 : index
    %c0_11 = arith.constant 0 : index
    %13 = vector.load %arg8[%c0_10, %c0_11] : memref<1x20xf32, #tpu.memory_space<vmem>>, vector<1x20xf32>
    %14 = vector.broadcast %13 : vector<1x20xf32> to vector<512x20xf32>
    %15 = arith.addf %12, %14 : vector<512x20xf32>
    %16 = tpu.iota {dimensions = array<i32: 0>} : vector<256x512xi32>
    %c256_i32 = arith.constant 256 : i32
    %17 = arith.muli %arg0, %c256_i32 : i32
    %18 = vector.broadcast %17 : i32 to vector<256x512xi32>
    %19 = arith.addi %16, %18 : vector<256x512xi32>
    %c0_12 = arith.constant 0 : index
    %c0_13 = arith.constant 0 : index
    %20 = vector.load %arg3[%c0_12, %c0_13] : memref<1x512xi32, #tpu.memory_space<vmem>>, vector<1x512xi32>
    %21 = vector.broadcast %20 : vector<1x512xi32> to vector<256x512xi32>
    %22 = arith.cmpi eq, %21, %19 : vector<256x512xi32>
    %23 = arith.extui %22 : vector<256x512xi1> to vector<256x512xi32>
    %24 = arith.sitofp %23 : vector<256x512xi32> to vector<256x512xf32>
    %25 = arith.truncf %24 : vector<256x512xf32> to vector<256x512xbf16>
    %c0_14 = arith.constant 0 : index
    %c0_15 = arith.constant 0 : index
    %26 = vector.load %arg15[%c0_14, %c0_15] : memref<256x20xf32, #tpu.memory_space<vmem>>, vector<256x20xf32>
    %27 = arith.truncf %15 : vector<512x20xf32> to vector<512x20xbf16>
    %cst_16 = arith.constant dense<0.000000e+00> : vector<256x20xf32>
    %28 = tpu.matmul %25, %27, %cst_16 {dimension_numbers = #tpu.dot_dimension_numbers<[1], [0], [0], [1], [0, 0, 1, 1], [], []>} : vector<256x512xbf16>, vector<512x20xbf16>, vector<256x20xf32> -> vector<256x20xf32>
    %29 = arith.addf %26, %28 : vector<256x20xf32>
    %c0_17 = arith.constant 0 : index
    %c0_18 = arith.constant 0 : index
    %30 = vector.load %arg15[%c0_17, %c0_18] : memref<256x20xf32, #tpu.memory_space<vmem>>, vector<256x20xf32>
    tpu.vector_store %arg15[%c0_17, %c0_18], %29 {strides = array<i32>} : memref<256x20xf32, #tpu.memory_space<vmem>>, vector<256x20xf32>,
    %c0_i32_19 = arith.constant 0 : i32
    %31 = arith.cmpi eq, %arg1, %c0_i32_19 : i32
    %32 = arith.extui %31 : i1 to i32
    %c0_i32_20 = arith.constant 0 : i32
    %33 = arith.cmpi ne, %32, %c0_i32_20 : i32
    scf.if %33 {
      %c0_21 = arith.constant 0 : index
      %c0_22 = arith.constant 0 : index
      %34 = vector.load %arg15[%c0_21, %c0_22] : memref<256x20xf32, #tpu.memory_space<vmem>>, vector<256x20xf32>
      %35 = vector.extract_strided_slice %34 {offsets = [0, 0], sizes = [256, 19], strides = [1, 1]} : vector<256x20xf32> to vector<256x19xf32>
      %36 = vector.extract_strided_slice %34 {offsets = [0, 19], sizes = [256, 1], strides = [1, 1]} : vector<256x20xf32> to vector<256x1xf32>
      %cst_23 = arith.constant 1.000000e+00 : f32
      %37 = vector.broadcast %cst_23 : f32 to vector<256x1xf32>
      %38 = arith.maximumf %36, %37 : vector<256x1xf32>
      %39 = vector.broadcast %38 : vector<256x1xf32> to vector<256x19xf32>
      %40 = arith.divf %35, %39 : vector<256x19xf32>
      %c0_24 = arith.constant 0 : index
      %c0_25 = arith.constant 0 : index
      %41 = vector.load %arg4[%c0_24, %c0_25] : memref<256x2xf32, #tpu.memory_space<vmem>>, vector<256x2xf32>
      %c0_26 = arith.constant 0 : index
      %c0_27 = arith.constant 0 : index
      %42 = vector.load %arg9[%c0_26, %c0_27] : memref<2x10xf32, #tpu.memory_space<vmem>>, vector<2x10xf32>
      %cst_28 = arith.constant dense<0.000000e+00> : vector<256x10xf32>
      %43 = tpu.matmul %41, %42, %cst_28 {dimension_numbers = #tpu.dot_dimension_numbers<[1], [0], [0], [1], [0, 0, 1, 1], [], []>} : vector<256x2xf32>, vector<2x10xf32>, vector<256x10xf32> -> vector<256x10xf32>
      %c0_29 = arith.constant 0 : index
      %c0_30 = arith.constant 0 : index
      %44 = vector.load %arg10[%c0_29, %c0_30] : memref<19x10xf32, #tpu.memory_space<vmem>>, vector<19x10xf32>
      %cst_31 = arith.constant dense<0.000000e+00> : vector<256x10xf32>
      %45 = tpu.matmul %40, %44, %cst_31 {dimension_numbers = #tpu.dot_dimension_numbers<[1], [0], [0], [1], [0, 0, 1, 1], [], []>} : vector<256x19xf32>, vector<19x10xf32>, vector<256x10xf32> -> vector<256x10xf32>
      %46 = arith.addf %43, %45 : vector<256x10xf32>
      %c0_32 = arith.constant 0 : index
      %c0_33 = arith.constant 0 : index
      %47 = vector.load %arg11[%c0_32, %c0_33] : memref<1x10xf32, #tpu.memory_space<vmem>>, vector<1x10xf32>
      %48 = vector.broadcast %47 : vector<1x10xf32> to vector<256x10xf32>
      %49 = arith.addf %46, %48 : vector<256x10xf32>
      %cst_34 = arith.constant 0.000000e+00 : f32
      %50 = vector.broadcast %cst_34 : f32 to vector<256x10xf32>
      %51 = arith.maximumf %49, %50 : vector<256x10xf32>
      %c0_35 = arith.constant 0 : index
      %c0_36 = arith.constant 0 : index
      %52 = vector.load %arg12[%c0_35, %c0_36] : memref<10x19xf32, #tpu.memory_space<vmem>>, vector<10x19xf32>
      %cst_37 = arith.constant dense<0.000000e+00> : vector<256x19xf32>
      %53 = tpu.matmul %51, %52, %cst_37 {dimension_numbers = #tpu.dot_dimension_numbers<[1], [0], [0], [1], [0, 0, 1, 1], [], []>} : vector<256x10xf32>, vector<10x19xf32>, vector<256x19xf32> -> vector<256x19xf32>
      %c0_38 = arith.constant 0 : index
      %c0_39 = arith.constant 0 : index
      %54 = vector.load %arg13[%c0_38, %c0_39] : memref<1x19xf32, #tpu.memory_space<vmem>>, vector<1x19xf32>
      %55 = vector.broadcast %54 : vector<1x19xf32> to vector<256x19xf32>
      %56 = arith.addf %53, %55 : vector<256x19xf32>
      %c0_40 = arith.constant 0 : index
      %c0_41 = arith.constant 0 : index
      %57 = vector.load %arg14[%c0_40, %c0_41] : memref<256x19xf32, #tpu.memory_space<vmem>>, vector<256x19xf32>
      tpu.vector_store %arg14[%c0_40, %c0_41], %56 {strides = array<i32>} : memref<256x19xf32, #tpu.memory_space<vmem>>, vector<256x19xf32>,
    } else {
    }
    return
  }
  func.func @transform_0(%arg0: i32, %arg1: i32) -> (i32, i32) {
    %c0_i32 = arith.constant 0 : i32
    %c0_i32_0 = arith.constant 0 : i32
    return %arg1, %c0_i32 : i32, i32
  }
  func.func @transform_1(%arg0: i32, %arg1: i32) -> (i32, i32) {
    %c0_i32 = arith.constant 0 : i32
    %c0_i32_0 = arith.constant 0 : i32
    return %c0_i32, %arg1 : i32, i32
  }
  func.func @transform_2(%arg0: i32, %arg1: i32) -> (i32, i32) {
    %c0_i32 = arith.constant 0 : i32
    %c0_i32_0 = arith.constant 0 : i32
    return %arg0, %c0_i32 : i32, i32
  }
  func.func @transform_3(%arg0: i32, %arg1: i32) -> (i32, i32) {
    %c0_i32 = arith.constant 0 : i32
    %c0_i32_0 = arith.constant 0 : i32
    %c0_i32_1 = arith.constant 0 : i32
    return %c0_i32, %c0_i32_0 : i32, i32
  }
  func.func @transform_4(%arg0: i32, %arg1: i32) -> (i32, i32) {
    %c0_i32 = arith.constant 0 : i32
    %c0_i32_0 = arith.constant 0 : i32
    %c0_i32_1 = arith.constant 0 : i32
    return %c0_i32, %c0_i32_0 : i32, i32
  }
  func.func @transform_5(%arg0: i32, %arg1: i32) -> (i32, i32) {
    %c0_i32 = arith.constant 0 : i32
    %c0_i32_0 = arith.constant 0 : i32
    %c0_i32_1 = arith.constant 0 : i32
    return %c0_i32, %c0_i32_0 : i32, i32
  }
  func.func @transform_6(%arg0: i32, %arg1: i32) -> (i32, i32) {
    %c0_i32 = arith.constant 0 : i32
    %c0_i32_0 = arith.constant 0 : i32
    %c0_i32_1 = arith.constant 0 : i32
    return %c0_i32, %c0_i32_0 : i32, i32
  }
  func.func @transform_7(%arg0: i32, %arg1: i32) -> (i32, i32) {
    %c0_i32 = arith.constant 0 : i32
    %c0_i32_0 = arith.constant 0 : i32
    %c0_i32_1 = arith.constant 0 : i32
    return %c0_i32, %c0_i32_0 : i32, i32
  }
  func.func @transform_8(%arg0: i32, %arg1: i32) -> (i32, i32) {
    %c0_i32 = arith.constant 0 : i32
    %c0_i32_0 = arith.constant 0 : i32
    %c0_i32_1 = arith.constant 0 : i32
    return %c0_i32, %c0_i32_0 : i32, i32
  }
  func.func @transform_9(%arg0: i32, %arg1: i32) -> (i32, i32) {
    %c0_i32 = arith.constant 0 : i32
    %c0_i32_0 = arith.constant 0 : i32
    %c0_i32_1 = arith.constant 0 : i32
    return %c0_i32, %c0_i32_0 : i32, i32
  }
  func.func @transform_10(%arg0: i32, %arg1: i32) -> (i32, i32) {
    %c0_i32 = arith.constant 0 : i32
    %c0_i32_0 = arith.constant 0 : i32
    %c0_i32_1 = arith.constant 0 : i32
    return %c0_i32, %c0_i32_0 : i32, i32
  }
  func.func @transform_11(%arg0: i32, %arg1: i32) -> (i32, i32) {
    %c0_i32 = arith.constant 0 : i32
    %c0_i32_0 = arith.constant 0 : i32
    %c0_i32_1 = arith.constant 0 : i32
    return %c0_i32, %c0_i32_0 : i32, i32
  }
  func.func @transform_12(%arg0: i32, %arg1: i32) -> (i32, i32) {
    %c0_i32 = arith.constant 0 : i32
    %c0_i32_0 = arith.constant 0 : i32
    return %arg0, %c0_i32 : i32, i32
  }
}

</mosaic_0001>

<llo_original>
// kernel: node_model.1
$region0: #{node_model.1}
  #allocation0 [shape = 'u32[]', space=smem, size = 0x4, offset = 0x4, fixed_abs, tag = 'smem constant byte address 0x4 - core index']
  #allocation1 [shape = 'u32[72,128]{1,0:T(1,128)}', space=vmem, size = 0x9000, scoped, tag = 'internal scratch']
  #allocation2 [shape = 'f32[256,20]{1,0:T(8,128)}', space=vmem, size = 0x20000, scoped, tag = 'scratch operand']
  %s0 = inlined_call_operand.vmem [shape: f32[512,20], index: 0, kind: input, shape index: {}]
  %s1 = inlined_call_operand.vmem [shape: s32[1,512], index: 1, kind: input, shape index: {}]
  %s2 = inlined_call_operand.vmem [shape: f32[256,2], index: 2, kind: input, shape index: {}]
  %s3 = inlined_call_operand.vmem [shape: f32[20,10], index: 3, kind: input, shape index: {}]
  %s4 = inlined_call_operand.vmem [shape: f32[1,10], index: 4, kind: input, shape index: {}]
  %s5 = inlined_call_operand.vmem [shape: f32[10,20], index: 5, kind: input, shape index: {}]
  %s6 = inlined_call_operand.vmem [shape: f32[1,20], index: 6, kind: input, shape index: {}]
  %s7 = inlined_call_operand.vmem [shape: f32[2,10], index: 7, kind: input, shape index: {}]
  %s8 = inlined_call_operand.vmem [shape: f32[19,10], index: 8, kind: input, shape index: {}]
  %s9 = inlined_call_operand.vmem [shape: f32[1,10], index: 9, kind: input, shape index: {}]
  %s10 = inlined_call_operand.vmem [shape: f32[10,19], index: 10, kind: input, shape index: {}]
  %s11 = inlined_call_operand.vmem [shape: f32[1,19], index: 11, kind: input, shape index: {}]
  %s12 = inlined_call_operand.vmem [shape: f32[256,19], index: 12, kind: output, shape index: {}]
  %s13 = sld [smem:[#allocation0]]
  $region66: #{node_model.1} parent=0
    _
  %s15 = ssub.s32 1, %s13
  %s16 = scalar_select 0, %s15, %s13
  // Predicated region
  $region2: #{node_model.1} parent=0 // pred_check
    _
  $region3: #{node_model.1} parent=0 // pred_check_branch
    %18 = sbr.rel (0) target = $region5
  $region4: #{node_model.1} parent=0 // pred_region
    _
  $region5: #{node_model.1} parent=0 // pred_fallthru
    _
  // Predicated region
  $region6: #{node_model.1} parent=0 // pred_check
    _
  $region7: #{node_model.1} parent=0 // pred_check_branch
    %20 = sbr.rel (0) target = $region9
  $region8: #{node_model.1} parent=0 // pred_region
    _
  $region9: #{node_model.1} parent=0 // pred_fallthru
    _
  // Predicated region
  $region10: #{node_model.1} parent=0 // pred_check
    _
  $region11: #{node_model.1} parent=0 // pred_check_branch
    %22 = sbr.rel (0) target = $region13
  $region12: #{node_model.1} parent=0 // pred_region
    _
  $region13: #{node_model.1} parent=0 // pred_fallthru
    _
  // Predicated region
  $region14: #{node_model.1} parent=0 // pred_check
    _
  $region15: #{node_model.1} parent=0 // pred_check_branch
    %24 = sbr.rel (0) target = $region17
  $region16: #{node_model.1} parent=0 // pred_region
    _
  $region17: #{node_model.1} parent=0 // pred_fallthru
    _
  // Predicated region
  $region18: #{node_model.1} parent=0 // pred_check
    _
  $region19: #{node_model.1} parent=0 // pred_check_branch
    %26 = sbr.rel (0) target = $region21
  $region20: #{node_model.1} parent=0 // pred_region
    _
  $region21: #{node_model.1} parent=0 // pred_fallthru
    _
  // Predicated region
  $region22: #{node_model.1} parent=0 // pred_check
    _
  $region23: #{node_model.1} parent=0 // pred_check_branch
    %28 = sbr.rel (0) target = $region25
  $region24: #{node_model.1} parent=0 // pred_region
    _
  $region25: #{node_model.1} parent=0 // pred_fallthru
    _
  // Predicated region
  $region26: #{node_model.1} parent=0 // pred_check
    _
  $region27: #{node_model.1} parent=0 // pred_check_branch
    %30 = sbr.rel (0) target = $region29
  $region28: #{node_model.1} parent=0 // pred_region
    _
  $region29: #{node_model.1} parent=0 // pred_fallthru
    _
  // Predicated region
  $region30: #{node_model.1} parent=0 // pred_check
    _
  $region31: #{node_model.1} parent=0 // pred_check_branch
    %32 = sbr.rel (0) target = $region33
  $region32: #{node_model.1} parent=0 // pred_region
    _
  $region33: #{node_model.1} parent=0 // pred_fallthru
    _
  // Predicated region
  $region34: #{node_model.1} parent=0 // pred_check
    _
  $region35: #{node_model.1} parent=0 // pred_check_branch
    %34 = sbr.rel (0) target = $region37
  $region36: #{node_model.1} parent=0 // pred_region
    _
  $region37: #{node_model.1} parent=0 // pred_fallthru
    _
  // Predicated region
  $region38: #{node_model.1} parent=0 // pred_check
    _
  $region39: #{node_model.1} parent=0 // pred_check_branch
    %36 = sbr.rel (0) target = $region41
  $region40: #{node_model.1} parent=0 // pred_region
    _
  $region41: #{node_model.1} parent=0 // pred_fallthru
    _
  // Predicated region
  $region42: #{node_model.1} parent=0 // pred_check
    _
  $region43: #{node_model.1} parent=0 // pred_check_branch
    %38 = sbr.rel (0) target = $region45
  $region44: #{node_model.1} parent=0 // pred_region
    _
  $region45: #{node_model.1} parent=0 // pred_fallthru
    _
  // Predicated region
  $region46: #{node_model.1} parent=0 // pred_check
    _
  $region47: #{node_model.1} parent=0 // pred_check_branch
    %40 = sbr.rel (0) target = $region49
  $region48: #{node_model.1} parent=0 // pred_region
    _
  $region49: #{node_model.1} parent=0 // pred_fallthru
    _
  %p41 = scmp.eq.s32.totalorder 0, 0
  // Predicated region
  $region50: #{node_model.1} parent=0 // pred_check
    %p42 = pneg %p41
  $region51: #{node_model.1} parent=0 // pred_check_branch
    %44 = sbr.rel (%p42) target = $region53
  $region52: #{node_model.1} parent=0 // pred_region
    %vm45 = vcmask 162816
    %46 = vst.msk [vmem:[#allocation2] sm:$0xff] %vm45, 0.0
    %47 = vst.msk [vmem:[#allocation2 + $0x8] sm:$0xff] %vm45, 0.0
    %48 = vst.msk [vmem:[#allocation2 + $0x10] sm:$0xff] %vm45, 0.0
    %49 = vst.msk [vmem:[#allocation2 + $0x18] sm:$0xff] %vm45, 0.0
    %50 = vst.msk [vmem:[#allocation2 + $0x20] sm:$0xff] %vm45, 0.0
    %51 = vst.msk [vmem:[#allocation2 + $0x28] sm:$0xff] %vm45, 0.0
    %52 = vst.msk [vmem:[#allocation2 + $0x30] sm:$0xff] %vm45, 0.0
    %53 = vst.msk [vmem:[#allocation2 + $0x38] sm:$0xff] %vm45, 0.0
    %54 = vst.msk [vmem:[#allocation2 + $0x40] sm:$0xff] %vm45, 0.0
    %55 = vst.msk [vmem:[#allocation2 + $0x48] sm:$0xff] %vm45, 0.0
    %56 = vst.msk [vmem:[#allocation2 + $0x50] sm:$0xff] %vm45, 0.0
    %57 = vst.msk [vmem:[#allocation2 + $0x58] sm:$0xff] %vm45, 0.0
    %58 = vst.msk [vmem:[#allocation2 + $0x60] sm:$0xff] %vm45, 0.0
    %59 = vst.msk [vmem:[#allocation2 + $0x68] sm:$0xff] %vm45, 0.0
    %60 = vst.msk [vmem:[#allocation2 + $0x70] sm:$0xff] %vm45, 0.0
    %61 = vst.msk [vmem:[#allocation2 + $0x78] sm:$0xff] %vm45, 0.0
    %62 = vst.msk [vmem:[#allocation2 + $0x80] sm:$0xff] %vm45, 0.0
    %63 = vst.msk [vmem:[#allocation2 + $0x88] sm:$0xff] %vm45, 0.0
    %64 = vst.msk [vmem:[#allocation2 + $0x90] sm:$0xff] %vm45, 0.0
    %65 = vst.msk [vmem:[#allocation2 + $0x98] sm:$0xff] %vm45, 0.0
    %66 = vst.msk [vmem:[#allocation2 + $0xa0] sm:$0xff] %vm45, 0.0
    %67 = vst.msk [vmem:[#allocation2 + $0xa8] sm:$0xff] %vm45, 0.0
    %68 = vst.msk [vmem:[#allocation2 + $0xb0] sm:$0xff] %vm45, 0.0
    %69 = vst.msk [vmem:[#allocation2 + $0xb8] sm:$0xff] %vm45, 0.0
    %70 = vst.msk [vmem:[#allocation2 + $0xc0] sm:$0xff] %vm45, 0.0
    %71 = vst.msk [vmem:[#allocation2 + $0xc8] sm:$0xff] %vm45, 0.0
    %72 = vst.msk [vmem:[#allocation2 + $0xd0] sm:$0xff] %vm45, 0.0
    %73 = vst.msk [vmem:[#allocation2 + $0xd8] sm:$0xff] %vm45, 0.0
    %74 = vst.msk [vmem:[#allocation2 + $0xe0] sm:$0xff] %vm45, 0.0
    %75 = vst.msk [vmem:[#allocation2 + $0xe8] sm:$0xff] %vm45, 0.0
    %76 = vst.msk [vmem:[#allocation2 + $0xf0] sm:$0xff] %vm45, 0.0
    %77 = vst.msk [vmem:[#allocation2 + $0xf8] sm:$0xff] %vm45, 0.0
  $region53: #{node_model.1} parent=0 // pred_fallthru
    _
  %v78 = vld [vmem:[%s0] sm:$0xff]
  %v79 = vld [vmem:[%s0 + $0x8] sm:$0xff]
  %v80 = vld [vmem:[%s0 + $0x10] sm:$0xff]
  %v81 = vld [vmem:[%s0 + $0x18] sm:$0xff]
  %v82 = vld [vmem:[%s0 + $0x20] sm:$0xff]
  %v83 = vld [vmem:[%s0 + $0x28] sm:$0xff]
  %v84 = vld [vmem:[%s0 + $0x30] sm:$0xff]
  %v85 = vld [vmem:[%s0 + $0x38] sm:$0xff]
  %v86 = vld [vmem:[%s0 + $0x40] sm:$0xff]
  %v87 = vld [vmem:[%s0 + $0x48] sm:$0xff]
  %v88 = vld [vmem:[%s0 + $0x50] sm:$0xff]
  %v89 = vld [vmem:[%s0 + $0x58] sm:$0xff]
  %v90 = vld [vmem:[%s0 + $0x60] sm:$0xff]
  %v91 = vld [vmem:[%s0 + $0x68] sm:$0xff]
  %v92 = vld [vmem:[%s0 + $0x70] sm:$0xff]
  %v93 = vld [vmem:[%s0 + $0x78] sm:$0xff]
  %v94 = vld [vmem:[%s0 + $0x80] sm:$0xff]
  %v95 = vld [vmem:[%s0 + $0x88] sm:$0xff]
  %v96 = vld [vmem:[%s0 + $0x90] sm:$0xff]
  %v97 = vld [vmem:[%s0 + $0x98] sm:$0xff]
  %v98 = vld [vmem:[%s0 + $0xa0] sm:$0xff]
  %v99 = vld [vmem:[%s0 + $0xa8] sm:$0xff]
  %v100 = vld [vmem:[%s0 + $0xb0] sm:$0xff]
  %v101 = vld [vmem:[%s0 + $0xb8] sm:$0xff]
  %v102 = vld [vmem:[%s0 + $0xc0] sm:$0xff]
  %v103 = vld [vmem:[%s0 + $0xc8] sm:$0xff]
  %v104 = vld [vmem:[%s0 + $0xd0] sm:$0xff]
  %v105 = vld [vmem:[%s0 + $0xd8] sm:$0xff]
  %v106 = vld [vmem:[%s0 + $0xe0] sm:$0xff]
  %v107 = vld [vmem:[%s0 + $0xe8] sm:$0xff]
  %v108 = vld [vmem:[%s0 + $0xf0] sm:$0xff]
  %v109 = vld [vmem:[%s0 + $0xf8] sm:$0xff]
  %v110 = vld [vmem:[%s0 + $0x100] sm:$0xff]
  %v111 = vld [vmem:[%s0 + $0x108] sm:$0xff]
  %v112 = vld [vmem:[%s0 + $0x110] sm:$0xff]
  %v113 = vld [vmem:[%s0 + $0x118] sm:$0xff]
  %v114 = vld [vmem:[%s0 + $0x120] sm:$0xff]
  %v115 = vld [vmem:[%s0 + $0x128] sm:$0xff]
  %v116 = vld [vmem:[%s0 + $0x130] sm:$0xff]
  %v117 = vld [vmem:[%s0 + $0x138] sm:$0xff]
  %v118 = vld [vmem:[%s0 + $0x140] sm:$0xff]
  %v119 = vld [vmem:[%s0 + $0x148] sm:$0xff]
  %v120 = vld [vmem:[%s0 + $0x150] sm:$0xff]
  %v121 = vld [vmem:[%s0 + $0x158] sm:$0xff]
  %v122 = vld [vmem:[%s0 + $0x160] sm:$0xff]
  %v123 = vld [vmem:[%s0 + $0x168] sm:$0xff]
  %v124 = vld [vmem:[%s0 + $0x170] sm:$0xff]
  %v125 = vld [vmem:[%s0 + $0x178] sm:$0xff]
  %v126 = vld [vmem:[%s0 + $0x180] sm:$0xff]
  %v127 = vld [vmem:[%s0 + $0x188] sm:$0xff]
  %v128 = vld [vmem:[%s0 + $0x190] sm:$0xff]
  %v129 = vld [vmem:[%s0 + $0x198] sm:$0xff]
  %v130 = vld [vmem:[%s0 + $0x1a0] sm:$0xff]
  %v131 = vld [vmem:[%s0 + $0x1a8] sm:$0xff]
  %v132 = vld [vmem:[%s0 + $0x1b0] sm:$0xff]
  %v133 = vld [vmem:[%s0 + $0x1b8] sm:$0xff]
  %v134 = vld [vmem:[%s0 + $0x1c0] sm:$0xff]
  %v135 = vld [vmem:[%s0 + $0x1c8] sm:$0xff]
  %v136 = vld [vmem:[%s0 + $0x1d0] sm:$0xff]
  %v137 = vld [vmem:[%s0 + $0x1d8] sm:$0xff]
  %v138 = vld [vmem:[%s0 + $0x1e0] sm:$0xff]
  %v139 = vld [vmem:[%s0 + $0x1e8] sm:$0xff]
  %v140 = vld [vmem:[%s0 + $0x1f0] sm:$0xff]
  %v141 = vld [vmem:[%s0 + $0x1f8] sm:$0xff]
  %v142 = vld [vmem:[%s3] sm:$0xff]
  %v143 = vld [vmem:[%s3 + $0x8] sm:$0xff]
  %v144 = vld [vmem:[%s3 + $0x10] sm:$0xf]
  %v145 = vld [vmem:[%s4] sm:$0x1]
  %v147 = vperm.slane %v145, 0
  %vm149 = vcmask 162816
  %v151 = vsel %vm149, %v78, 0
  %v154 = vsel %vm149, %v79, 0
  %v157 = vsel %vm149, %v80, 0
  %v160 = vsel %vm149, %v81, 0
  %v163 = vsel %vm149, %v82, 0
  %v166 = vsel %vm149, %v83, 0
  %v169 = vsel %vm149, %v84, 0
  %v172 = vsel %vm149, %v85, 0
  %v175 = vsel %vm149, %v86, 0
  %v178 = vsel %vm149, %v87, 0
  %v181 = vsel %vm149, %v88, 0
  %v184 = vsel %vm149, %v89, 0
  %v187 = vsel %vm149, %v90, 0
  %v190 = vsel %vm149, %v91, 0
  %v193 = vsel %vm149, %v92, 0
  %v196 = vsel %vm149, %v93, 0
  %v199 = vsel %vm149, %v94, 0
  %v202 = vsel %vm149, %v95, 0
  %v205 = vsel %vm149, %v96, 0
  %v208 = vsel %vm149, %v97, 0
  %v211 = vsel %vm149, %v98, 0
  %v214 = vsel %vm149, %v99, 0
  %v217 = vsel %vm149, %v100, 0
  %v220 = vsel %vm149, %v101, 0
  %v223 = vsel %vm149, %v102, 0
  %v226 = vsel %vm149, %v103, 0
  %v229 = vsel %vm149, %v104, 0
  %v232 = vsel %vm149, %v105, 0
  %v235 = vsel %vm149, %v106, 0
  %v238 = vsel %vm149, %v107, 0
  %v241 = vsel %vm149, %v108, 0
  %v244 = vsel %vm149, %v109, 0
  %v247 = vsel %vm149, %v110, 0
  %v250 = vsel %vm149, %v111, 0
  %v253 = vsel %vm149, %v112, 0
  %v256 = vsel %vm149, %v113, 0
  %v259 = vsel %vm149, %v114, 0
  %v262 = vsel %vm149, %v115, 0
  %v265 = vsel %vm149, %v116, 0
  %v268 = vsel %vm149, %v117, 0
  %v271 = vsel %vm149, %v118, 0
  %v274 = vsel %vm149, %v119, 0
  %v277 = vsel %vm149, %v120, 0
  %v280 = vsel %vm149, %v121, 0
  %v283 = vsel %vm149, %v122, 0
  %v286 = vsel %vm149, %v123, 0
  %v289 = vsel %vm149, %v124, 0
  %v292 = vsel %vm149, %v125, 0
  %v295 = vsel %vm149, %v126, 0
  %v298 = vsel %vm149, %v127, 0
  %v301 = vsel %vm149, %v128, 0
  %v304 = vsel %vm149, %v129, 0
  %v307 = vsel %vm149, %v130, 0
  %v310 = vsel %vm149, %v131, 0
  %v313 = vsel %vm149, %v132, 0
  %v316 = vsel %vm149, %v133, 0
  %v319 = vsel %vm149, %v134, 0
  %v322 = vsel %vm149, %v135, 0
  %v325 = vsel %vm149, %v136, 0
  %v328 = vsel %vm149, %v137, 0
  %v331 = vsel %vm149, %v138, 0
  %v334 = vsel %vm149, %v139, 0
  %v337 = vsel %vm149, %v140, 0
  %v340 = vsel %vm149, %v141, 0
  %vm342 = vcmask 1043456
  %v344 = vsel %vm342, %v144, 0
  %346 = vmatpush.msra.mxu0 0.0
  %347 = vmatpush.msra.mxu0 0.0
  %348 = vmatpush.msra.mxu0 0.0
  %349 = vmatpush.msra.mxu0 0.0
  %350 = vmatpush.msra.mxu0 0.0
  %351 = vmatpush.msra.mxu0 0.0
  %352 = vmatpush.msra.mxu0 0.0
  %353 = vmatpush.msra.mxu0 0.0
  %354 = vmatpush.msra.mxu0 0.0
  %355 = vmatpush.msra.mxu0 0.0
  %356 = vmatpush.msra.mxu0 0.0
  %357 = vmatpush.msra.mxu0 0.0
  %358 = vmatpush.msra.mxu0 0.0
  %359 = vmatpush.msra.mxu0 %v344
  %360 = vmatpush.msra.mxu0 %v143
  %361 = vmatpush.msra.mxu0 %v142
  %362 = vmatmul.f32.gmra.mxu0 %v151
  %v363 = vpop.f32.mrf.mxu0
  %v364 = vadd.f32 %v147, %v363
  %365 = vmatmul.f32.gmra.mxu0 %v154
  %v366 = vpop.f32.mrf.mxu0
  %v367 = vadd.f32 %v147, %v366
  %368 = vmatmul.f32.gmra.mxu0 %v157
  %v369 = vpop.f32.mrf.mxu0
  %v370 = vadd.f32 %v147, %v369
  %371 = vmatmul.f32.gmra.mxu0 %v160
  %v372 = vpop.f32.mrf.mxu0
  %v373 = vadd.f32 %v147, %v372
  %374 = vmatmul.f32.gmra.mxu0 %v163
  %v375 = vpop.f32.mrf.mxu0
  %v376 = vadd.f32 %v147, %v375
  %377 = vmatmul.f32.gmra.mxu0 %v166
  %v378 = vpop.f32.mrf.mxu0
  %v379 = vadd.f32 %v147, %v378
  %380 = vmatmul.f32.gmra.mxu0 %v169
  %v381 = vpop.f32.mrf.mxu0
  %v382 = vadd.f32 %v147, %v381
  %383 = vmatmul.f32.gmra.mxu0 %v172
  %v384 = vpop.f32.mrf.mxu0
  %v385 = vadd.f32 %v147, %v384
  %386 = vmatmul.f32.gmra.mxu0 %v175
  %v387 = vpop.f32.mrf.mxu0
  %v388 = vadd.f32 %v147, %v387
  %389 = vmatmul.f32.gmra.mxu0 %v178
  %v390 = vpop.f32.mrf.mxu0
  %v391 = vadd.f32 %v147, %v390
  %392 = vmatmul.f32.gmra.mxu0 %v181
  %v393 = vpop.f32.mrf.mxu0
  %v394 = vadd.f32 %v147, %v393
  %395 = vmatmul.f32.gmra.mxu0 %v184
  %v396 = vpop.f32.mrf.mxu0
  %v397 = vadd.f32 %v147, %v396
  %398 = vmatmul.f32.gmra.mxu0 %v187
  %v399 = vpop.f32.mrf.mxu0
  %v400 = vadd.f32 %v147, %v399
  %401 = vmatmul.f32.gmra.mxu0 %v190
  %v402 = vpop.f32.mrf.mxu0
  %v403 = vadd.f32 %v147, %v402
  %404 = vmatmul.f32.gmra.mxu0 %v193
  %v405 = vpop.f32.mrf.mxu0
  %v406 = vadd.f32 %v147, %v405
  %407 = vmatmul.f32.gmra.mxu0 %v196
  %v408 = vpop.f32.mrf.mxu0
  %v409 = vadd.f32 %v147, %v408
  %410 = vmatmul.f32.gmra.mxu0 %v199
  %v411 = vpop.f32.mrf.mxu0
  %v412 = vadd.f32 %v147, %v411
  %413 = vmatmul.f32.gmra.mxu0 %v202
  %v414 = vpop.f32.mrf.mxu0
  %v415 = vadd.f32 %v147, %v414
  %416 = vmatmul.f32.gmra.mxu0 %v205
  %v417 = vpop.f32.mrf.mxu0
  %v418 = vadd.f32 %v147, %v417
  %419 = vmatmul.f32.gmra.mxu0 %v208
  %v420 = vpop.f32.mrf.mxu0
  %v421 = vadd.f32 %v147, %v420
  %422 = vmatmul.f32.gmra.mxu0 %v211
  %v423 = vpop.f32.mrf.mxu0
  %v424 = vadd.f32 %v147, %v423
  %425 = vmatmul.f32.gmra.mxu0 %v214
  %v426 = vpop.f32.mrf.mxu0
  %v427 = vadd.f32 %v147, %v426
  %428 = vmatmul.f32.gmra.mxu0 %v217
  %v429 = vpop.f32.mrf.mxu0
  %v430 = vadd.f32 %v147, %v429
  %431 = vmatmul.f32.gmra.mxu0 %v220
  %v432 = vpop.f32.mrf.mxu0
  %v433 = vadd.f32 %v147, %v432
  %434 = vmatmul.f32.gmra.mxu0 %v223
  %v435 = vpop.f32.mrf.mxu0
  %v436 = vadd.f32 %v147, %v435
  %437 = vmatmul.f32.gmra.mxu0 %v226
  %v438 = vpop.f32.mrf.mxu0
  %v439 = vadd.f32 %v147, %v438
  %440 = vmatmul.f32.gmra.mxu0 %v229
  %v441 = vpop.f32.mrf.mxu0
  %v442 = vadd.f32 %v147, %v441
  %443 = vmatmul.f32.gmra.mxu0 %v232
  %v444 = vpop.f32.mrf.mxu0
  %v445 = vadd.f32 %v147, %v444
  %446 = vmatmul.f32.gmra.mxu0 %v235
  %v447 = vpop.f32.mrf.mxu0
  %v448 = vadd.f32 %v147, %v447
  %449 = vmatmul.f32.gmra.mxu0 %v238
  %v450 = vpop.f32.mrf.mxu0
  %v451 = vadd.f32 %v147, %v450
  %452 = vmatmul.f32.gmra.mxu0 %v241
  %v453 = vpop.f32.mrf.mxu0
  %v454 = vadd.f32 %v147, %v453
  %455 = vmatmul.f32.gmra.mxu0 %v244
  %v456 = vpop.f32.mrf.mxu0
  %v457 = vadd.f32 %v147, %v456
  %458 = vmatmul.f32.gmra.mxu0 %v247
  %v459 = vpop.f32.mrf.mxu0
  %v460 = vadd.f32 %v147, %v459
  %461 = vmatmul.f32.gmra.mxu0 %v250
  %v462 = vpop.f32.mrf.mxu0
  %v463 = vadd.f32 %v147, %v462
  %464 = vmatmul.f32.gmra.mxu0 %v253
  %v465 = vpop.f32.mrf.mxu0
  %v466 = vadd.f32 %v147, %v465
  %467 = vmatmul.f32.gmra.mxu0 %v256
  %v468 = vpop.f32.mrf.mxu0
  %v469 = vadd.f32 %v147, %v468
  %470 = vmatmul.f32.gmra.mxu0 %v259
  %v471 = vpop.f32.mrf.mxu0
  %v472 = vadd.f32 %v147, %v471
  %473 = vmatmul.f32.gmra.mxu0 %v262
  %v474 = vpop.f32.mrf.mxu0
  %v475 = vadd.f32 %v147, %v474
  %476 = vmatmul.f32.gmra.mxu0 %v265
  %v477 = vpop.f32.mrf.mxu0
  %v478 = vadd.f32 %v147, %v477
  %479 = vmatmul.f32.gmra.mxu0 %v268
  %v480 = vpop.f32.mrf.mxu0
  %v481 = vadd.f32 %v147, %v480
  %482 = vmatmul.f32.gmra.mxu0 %v271
  %v483 = vpop.f32.mrf.mxu0
  %v484 = vadd.f32 %v147, %v483
  %485 = vmatmul.f32.gmra.mxu0 %v274
  %v486 = vpop.f32.mrf.mxu0
  %v487 = vadd.f32 %v147, %v486
  %488 = vmatmul.f32.gmra.mxu0 %v277
  %v489 = vpop.f32.mrf.mxu0
  %v490 = vadd.f32 %v147, %v489
  %491 = vmatmul.f32.gmra.mxu0 %v280
  %v492 = vpop.f32.mrf.mxu0
  %v493 = vadd.f32 %v147, %v492
  %494 = vmatmul.f32.gmra.mxu0 %v283
  %v495 = vpop.f32.mrf.mxu0
  %v496 = vadd.f32 %v147, %v495
  %497 = vmatmul.f32.gmra.mxu0 %v286
  %v498 = vpop.f32.mrf.mxu0
  %v499 = vadd.f32 %v147, %v498
  %500 = vmatmul.f32.gmra.mxu0 %v289
  %v501 = vpop.f32.mrf.mxu0
  %v502 = vadd.f32 %v147, %v501
  %503 = vmatmul.f32.gmra.mxu0 %v292
  %v504 = vpop.f32.mrf.mxu0
  %v505 = vadd.f32 %v147, %v504
  %506 = vmatmul.f32.gmra.mxu0 %v295
  %v507 = vpop.f32.mrf.mxu0
  %v508 = vadd.f32 %v147, %v507
  %509 = vmatmul.f32.gmra.mxu0 %v298
  %v510 = vpop.f32.mrf.mxu0
  %v511 = vadd.f32 %v147, %v510
  %512 = vmatmul.f32.gmra.mxu0 %v301
  %v513 = vpop.f32.mrf.mxu0
  %v514 = vadd.f32 %v147, %v513
  %515 = vmatmul.f32.gmra.mxu0 %v304
  %v516 = vpop.f32.mrf.mxu0
  %v517 = vadd.f32 %v147, %v516
  %518 = vmatmul.f32.gmra.mxu0 %v307
  %v519 = vpop.f32.mrf.mxu0
  %v520 = vadd.f32 %v147, %v519
  %521 = vmatmul.f32.gmra.mxu0 %v310
  %v522 = vpop.f32.mrf.mxu0
  %v523 = vadd.f32 %v147, %v522
  %524 = vmatmul.f32.gmra.mxu0 %v313
  %v525 = vpop.f32.mrf.mxu0
  %v526 = vadd.f32 %v147, %v525
  %527 = vmatmul.f32.gmra.mxu0 %v316
  %v528 = vpop.f32.mrf.mxu0
  %v529 = vadd.f32 %v147, %v528
  %530 = vmatmul.f32.gmra.mxu0 %v319
  %v531 = vpop.f32.mrf.mxu0
  %v532 = vadd.f32 %v147, %v531
  %533 = vmatmul.f32.gmra.mxu0 %v322
  %v534 = vpop.f32.mrf.mxu0
  %v535 = vadd.f32 %v147, %v534
  %536 = vmatmul.f32.gmra.mxu0 %v325
  %v537 = vpop.f32.mrf.mxu0
  %v538 = vadd.f32 %v147, %v537
  %539 = vmatmul.f32.gmra.mxu0 %v328
  %v540 = vpop.f32.mrf.mxu0
  %v541 = vadd.f32 %v147, %v540
  %542 = vmatmul.f32.gmra.mxu0 %v331
  %v543 = vpop.f32.mrf.mxu0
  %v544 = vadd.f32 %v147, %v543
  %545 = vmatmul.f32.gmra.mxu0 %v334
  %v546 = vpop.f32.mrf.mxu0
  %v547 = vadd.f32 %v147, %v546
  %548 = vmatmul.f32.gmra.mxu0 %v337
  %v549 = vpop.f32.mrf.mxu0
  %v550 = vadd.f32 %v147, %v549
  %551 = vmatmul.f32.gmra.mxu0 %v340
  %v552 = vpop.f32.mrf.mxu0
  %v553 = vadd.f32 %v147, %v552
  %554 = vdwg.mxu0
  %v555 = vmax.f32 %v364, 0.0
  %v556 = vmax.f32 %v367, 0.0
  %v557 = vmax.f32 %v370, 0.0
  %v558 = vmax.f32 %v373, 0.0
  %v559 = vmax.f32 %v376, 0.0
  %v560 = vmax.f32 %v379, 0.0
  %v561 = vmax.f32 %v382, 0.0
  %v562 = vmax.f32 %v385, 0.0
  %v563 = vmax.f32 %v388, 0.0
  %v564 = vmax.f32 %v391, 0.0
  %v565 = vmax.f32 %v394, 0.0
  %v566 = vmax.f32 %v397, 0.0
  %v567 = vmax.f32 %v400, 0.0
  %v568 = vmax.f32 %v403, 0.0
  %v569 = vmax.f32 %v406, 0.0
  %v570 = vmax.f32 %v409, 0.0
  %v571 = vmax.f32 %v412, 0.0
  %v572 = vmax.f32 %v415, 0.0
  %v573 = vmax.f32 %v418, 0.0
  %v574 = vmax.f32 %v421, 0.0
  %v575 = vmax.f32 %v424, 0.0
  %v576 = vmax.f32 %v427, 0.0
  %v577 = vmax.f32 %v430, 0.0
  %v578 = vmax.f32 %v433, 0.0
  %v579 = vmax.f32 %v436, 0.0
  %v580 = vmax.f32 %v439, 0.0
  %v581 = vmax.f32 %v442, 0.0
  %v582 = vmax.f32 %v445, 0.0
  %v583 = vmax.f32 %v448, 0.0
  %v584 = vmax.f32 %v451, 0.0
  %v585 = vmax.f32 %v454, 0.0
  %v586 = vmax.f32 %v457, 0.0
  %v587 = vmax.f32 %v460, 0.0
  %v588 = vmax.f32 %v463, 0.0
  %v589 = vmax.f32 %v466, 0.0
  %v590 = vmax.f32 %v469, 0.0
  %v591 = vmax.f32 %v472, 0.0
  %v592 = vmax.f32 %v475, 0.0
  %v593 = vmax.f32 %v478, 0.0
  %v594 = vmax.f32 %v481, 0.0
  %v595 = vmax.f32 %v484, 0.0
  %v596 = vmax.f32 %v487, 0.0
  %v597 = vmax.f32 %v490, 0.0
  %v598 = vmax.f32 %v493, 0.0
  %v599 = vmax.f32 %v496, 0.0
  %v600 = vmax.f32 %v499, 0.0
  %v601 = vmax.f32 %v502, 0.0
  %v602 = vmax.f32 %v505, 0.0
  %v603 = vmax.f32 %v508, 0.0
  %v604 = vmax.f32 %v511, 0.0
  %v605 = vmax.f32 %v514, 0.0
  %v606 = vmax.f32 %v517, 0.0
  %v607 = vmax.f32 %v520, 0.0
  %v608 = vmax.f32 %v523, 0.0
  %v609 = vmax.f32 %v526, 0.0
  %v610 = vmax.f32 %v529, 0.0
  %v611 = vmax.f32 %v532, 0.0
  %v612 = vmax.f32 %v535, 0.0
  %v613 = vmax.f32 %v538, 0.0
  %v614 = vmax.f32 %v541, 0.0
  %v615 = vmax.f32 %v544, 0.0
  %v616 = vmax.f32 %v547, 0.0
  %v617 = vmax.f32 %v550, 0.0
  %v618 = vmax.f32 %v553, 0.0
  %v619 = vld [vmem:[%s5] sm:$0xff]
  %v620 = vld [vmem:[%s5 + $0x8] sm:$0x3]
  %v621 = vld [vmem:[%s6] sm:$0x1]
  %v623 = vperm.slane %v621, 0
  %vm625 = vcmask 80896
  %v627 = vsel %vm625, %v555, 0
  %v630 = vsel %vm625, %v556, 0
  %v633 = vsel %vm625, %v557, 0
  %v636 = vsel %vm625, %v558, 0
  %v639 = vsel %vm625, %v559, 0
  %v642 = vsel %vm625, %v560, 0
  %v645 = vsel %vm625, %v561, 0
  %v648 = vsel %vm625, %v562, 0
  %v651 = vsel %vm625, %v563, 0
  %v654 = vsel %vm625, %v564, 0
  %v657 = vsel %vm625, %v565, 0
  %v660 = vsel %vm625, %v566, 0
  %v663 = vsel %vm625, %v567, 0
  %v666 = vsel %vm625, %v568, 0
  %v669 = vsel %vm625, %v569, 0
  %v672 = vsel %vm625, %v570, 0
  %v675 = vsel %vm625, %v571, 0
  %v678 = vsel %vm625, %v572, 0
  %v681 = vsel %vm625, %v573, 0
  %v684 = vsel %vm625, %v574, 0
  %v687 = vsel %vm625, %v575, 0
  %v690 = vsel %vm625, %v576, 0
  %v693 = vsel %vm625, %v577, 0
  %v696 = vsel %vm625, %v578, 0
  %v699 = vsel %vm625, %v579, 0
  %v702 = vsel %vm625, %v580, 0
  %v705 = vsel %vm625, %v581, 0
  %v708 = vsel %vm625, %v582, 0
  %v711 = vsel %vm625, %v583, 0
  %v714 = vsel %vm625, %v584, 0
  %v717 = vsel %vm625, %v585, 0
  %v720 = vsel %vm625, %v586, 0
  %v723 = vsel %vm625, %v587, 0
  %v726 = vsel %vm625, %v588, 0
  %v729 = vsel %vm625, %v589, 0
  %v732 = vsel %vm625, %v590, 0
  %v735 = vsel %vm625, %v591, 0
  %v738 = vsel %vm625, %v592, 0
  %v741 = vsel %vm625, %v593, 0
  %v744 = vsel %vm625, %v594, 0
  %v747 = vsel %vm625, %v595, 0
  %v750 = vsel %vm625, %v596, 0
  %v753 = vsel %vm625, %v597, 0
  %v756 = vsel %vm625, %v598, 0
  %v759 = vsel %vm625, %v599, 0
  %v762 = vsel %vm625, %v600, 0
  %v765 = vsel %vm625, %v601, 0
  %v768 = vsel %vm625, %v602, 0
  %v771 = vsel %vm625, %v603, 0
  %v774 = vsel %vm625, %v604, 0
  %v777 = vsel %vm625, %v605, 0
  %v780 = vsel %vm625, %v606, 0
  %v783 = vsel %vm625, %v607, 0
  %v786 = vsel %vm625, %v608, 0
  %v789 = vsel %vm625, %v609, 0
  %v792 = vsel %vm625, %v610, 0
  %v795 = vsel %vm625, %v611, 0
  %v798 = vsel %vm625, %v612, 0
  %v801 = vsel %vm625, %v613, 0
  %v804 = vsel %vm625, %v614, 0
  %v807 = vsel %vm625, %v615, 0
  %v810 = vsel %vm625, %v616, 0
  %v813 = vsel %vm625, %v617, 0
  %v816 = vsel %vm625, %v618, 0
  %vm818 = vcmask 1041408
  %v820 = vsel %vm818, %v620, 0
  %822 = vmatpush.msra.mxu0 0.0
  %823 = vmatpush.msra.mxu0 0.0
  %824 = vmatpush.msra.mxu0 0.0
  %825 = vmatpush.msra.mxu0 0.0
  %826 = vmatpush.msra.mxu0 0.0
  %827 = vmatpush.msra.mxu0 0.0
  %828 = vmatpush.msra.mxu0 0.0
  %829 = vmatpush.msra.mxu0 0.0
  %830 = vmatpush.msra.mxu0 0.0
  %831 = vmatpush.msra.mxu0 0.0
  %832 = vmatpush.msra.mxu0 0.0
  %833 = vmatpush.msra.mxu0 0.0
  %834 = vmatpush.msra.mxu0 0.0
  %835 = vmatpush.msra.mxu0 0.0
  %836 = vmatpush.msra.mxu0 %v820
  %837 = vmatpush.msra.mxu0 %v619
  %838 = vmatmul.f32.gmra.mxu0 %v627
  %v839 = vpop.f32.mrf.mxu0
  %v840 = vadd.f32 %v623, %v839
  %841 = vmatmul.f32.gmra.mxu0 %v630
  %v842 = vpop.f32.mrf.mxu0
  %v843 = vadd.f32 %v623, %v842
  %844 = vmatmul.f32.gmra.mxu0 %v633
  %v845 = vpop.f32.mrf.mxu0
  %v846 = vadd.f32 %v623, %v845
  %847 = vmatmul.f32.gmra.mxu0 %v636
  %v848 = vpop.f32.mrf.mxu0
  %v849 = vadd.f32 %v623, %v848
  %850 = vmatmul.f32.gmra.mxu0 %v639
  %v851 = vpop.f32.mrf.mxu0
  %v852 = vadd.f32 %v623, %v851
  %853 = vmatmul.f32.gmra.mxu0 %v642
  %v854 = vpop.f32.mrf.mxu0
  %v855 = vadd.f32 %v623, %v854
  %856 = vmatmul.f32.gmra.mxu0 %v645
  %v857 = vpop.f32.mrf.mxu0
  %v858 = vadd.f32 %v623, %v857
  %859 = vmatmul.f32.gmra.mxu0 %v648
  %v860 = vpop.f32.mrf.mxu0
  %v861 = vadd.f32 %v623, %v860
  %862 = vmatmul.f32.gmra.mxu0 %v651
  %v863 = vpop.f32.mrf.mxu0
  %v864 = vadd.f32 %v623, %v863
  %865 = vmatmul.f32.gmra.mxu0 %v654
  %v866 = vpop.f32.mrf.mxu0
  %v867 = vadd.f32 %v623, %v866
  %868 = vmatmul.f32.gmra.mxu0 %v657
  %v869 = vpop.f32.mrf.mxu0
  %v870 = vadd.f32 %v623, %v869
  %871 = vmatmul.f32.gmra.mxu0 %v660
  %v872 = vpop.f32.mrf.mxu0
  %v873 = vadd.f32 %v623, %v872
  %874 = vmatmul.f32.gmra.mxu0 %v663
  %v875 = vpop.f32.mrf.mxu0
  %v876 = vadd.f32 %v623, %v875
  %877 = vmatmul.f32.gmra.mxu0 %v666
  %v878 = vpop.f32.mrf.mxu0
  %v879 = vadd.f32 %v623, %v878
  %880 = vmatmul.f32.gmra.mxu0 %v669
  %v881 = vpop.f32.mrf.mxu0
  %v882 = vadd.f32 %v623, %v881
  %883 = vmatmul.f32.gmra.mxu0 %v672
  %v884 = vpop.f32.mrf.mxu0
  %v885 = vadd.f32 %v623, %v884
  %886 = vmatmul.f32.gmra.mxu0 %v675
  %v887 = vpop.f32.mrf.mxu0
  %v888 = vadd.f32 %v623, %v887
  %889 = vmatmul.f32.gmra.mxu0 %v678
  %v890 = vpop.f32.mrf.mxu0
  %v891 = vadd.f32 %v623, %v890
  %892 = vmatmul.f32.gmra.mxu0 %v681
  %v893 = vpop.f32.mrf.mxu0
  %v894 = vadd.f32 %v623, %v893
  %895 = vmatmul.f32.gmra.mxu0 %v684
  %v896 = vpop.f32.mrf.mxu0
  %v897 = vadd.f32 %v623, %v896
  %898 = vmatmul.f32.gmra.mxu0 %v687
  %v899 = vpop.f32.mrf.mxu0
  %v900 = vadd.f32 %v623, %v899
  %901 = vmatmul.f32.gmra.mxu0 %v690
  %v902 = vpop.f32.mrf.mxu0
  %v903 = vadd.f32 %v623, %v902
  %904 = vmatmul.f32.gmra.mxu0 %v693
  %v905 = vpop.f32.mrf.mxu0
  %v906 = vadd.f32 %v623, %v905
  %907 = vmatmul.f32.gmra.mxu0 %v696
  %v908 = vpop.f32.mrf.mxu0
  %v909 = vadd.f32 %v623, %v908
  %910 = vmatmul.f32.gmra.mxu0 %v699
  %v911 = vpop.f32.mrf.mxu0
  %v912 = vadd.f32 %v623, %v911
  %913 = vmatmul.f32.gmra.mxu0 %v702
  %v914 = vpop.f32.mrf.mxu0
  %v915 = vadd.f32 %v623, %v914
  %916 = vmatmul.f32.gmra.mxu0 %v705
  %v917 = vpop.f32.mrf.mxu0
  %v918 = vadd.f32 %v623, %v917
  %919 = vmatmul.f32.gmra.mxu0 %v708
  %v920 = vpop.f32.mrf.mxu0
  %v921 = vadd.f32 %v623, %v920
  %922 = vmatmul.f32.gmra.mxu0 %v711
  %v923 = vpop.f32.mrf.mxu0
  %v924 = vadd.f32 %v623, %v923
  %925 = vmatmul.f32.gmra.mxu0 %v714
  %v926 = vpop.f32.mrf.mxu0
  %v927 = vadd.f32 %v623, %v926
  %928 = vmatmul.f32.gmra.mxu0 %v717
  %v929 = vpop.f32.mrf.mxu0
  %v930 = vadd.f32 %v623, %v929
  %931 = vmatmul.f32.gmra.mxu0 %v720
  %v932 = vpop.f32.mrf.mxu0
  %v933 = vadd.f32 %v623, %v932
  %934 = vmatmul.f32.gmra.mxu0 %v723
  %v935 = vpop.f32.mrf.mxu0
  %v936 = vadd.f32 %v623, %v935
  %937 = vmatmul.f32.gmra.mxu0 %v726
  %v938 = vpop.f32.mrf.mxu0
  %v939 = vadd.f32 %v623, %v938
  %940 = vmatmul.f32.gmra.mxu0 %v729
  %v941 = vpop.f32.mrf.mxu0
  %v942 = vadd.f32 %v623, %v941
  %943 = vmatmul.f32.gmra.mxu0 %v732
  %v944 = vpop.f32.mrf.mxu0
  %v945 = vadd.f32 %v623, %v944
  %946 = vmatmul.f32.gmra.mxu0 %v735
  %v947 = vpop.f32.mrf.mxu0
  %v948 = vadd.f32 %v623, %v947
  %949 = vmatmul.f32.gmra.mxu0 %v738
  %v950 = vpop.f32.mrf.mxu0
  %v951 = vadd.f32 %v623, %v950
  %952 = vmatmul.f32.gmra.mxu0 %v741
  %v953 = vpop.f32.mrf.mxu0
  %v954 = vadd.f32 %v623, %v953
  %955 = vmatmul.f32.gmra.mxu0 %v744
  %v956 = vpop.f32.mrf.mxu0
  %v957 = vadd.f32 %v623, %v956
  %958 = vmatmul.f32.gmra.mxu0 %v747
  %v959 = vpop.f32.mrf.mxu0
  %v960 = vadd.f32 %v623, %v959
  %961 = vmatmul.f32.gmra.mxu0 %v750
  %v962 = vpop.f32.mrf.mxu0
  %v963 = vadd.f32 %v623, %v962
  %964 = vmatmul.f32.gmra.mxu0 %v753
  %v965 = vpop.f32.mrf.mxu0
  %v966 = vadd.f32 %v623, %v965
  %967 = vmatmul.f32.gmra.mxu0 %v756
  %v968 = vpop.f32.mrf.mxu0
  %v969 = vadd.f32 %v623, %v968
  %970 = vmatmul.f32.gmra.mxu0 %v759
  %v971 = vpop.f32.mrf.mxu0
  %v972 = vadd.f32 %v623, %v971
  %973 = vmatmul.f32.gmra.mxu0 %v762
  %v974 = vpop.f32.mrf.mxu0
  %v975 = vadd.f32 %v623, %v974
  %976 = vmatmul.f32.gmra.mxu0 %v765
  %v977 = vpop.f32.mrf.mxu0
  %v978 = vadd.f32 %v623, %v977
  %979 = vmatmul.f32.gmra.mxu0 %v768
  %v980 = vpop.f32.mrf.mxu0
  %v981 = vadd.f32 %v623, %v980
  %982 = vmatmul.f32.gmra.mxu0 %v771
  %v983 = vpop.f32.mrf.mxu0
  %v984 = vadd.f32 %v623, %v983
  %985 = vmatmul.f32.gmra.mxu0 %v774
  %v986 = vpop.f32.mrf.mxu0
  %v987 = vadd.f32 %v623, %v986
  %988 = vmatmul.f32.gmra.mxu0 %v777
  %v989 = vpop.f32.mrf.mxu0
  %v990 = vadd.f32 %v623, %v989
  %991 = vmatmul.f32.gmra.mxu0 %v780
  %v992 = vpop.f32.mrf.mxu0
  %v993 = vadd.f32 %v623, %v992
  %994 = vmatmul.f32.gmra.mxu0 %v783
  %v995 = vpop.f32.mrf.mxu0
  %v996 = vadd.f32 %v623, %v995
  %997 = vmatmul.f32.gmra.mxu0 %v786
  %v998 = vpop.f32.mrf.mxu0
  %v999 = vadd.f32 %v623, %v998
  %1000 = vmatmul.f32.gmra.mxu0 %v789
  %v1001 = vpop.f32.mrf.mxu0
  %v1002 = vadd.f32 %v623, %v1001
  %1003 = vmatmul.f32.gmra.mxu0 %v792
  %v1004 = vpop.f32.mrf.mxu0
  %v1005 = vadd.f32 %v623, %v1004
  %1006 = vmatmul.f32.gmra.mxu0 %v795
  %v1007 = vpop.f32.mrf.mxu0
  %v1008 = vadd.f32 %v623, %v1007
  %1009 = vmatmul.f32.gmra.mxu0 %v798
  %v1010 = vpop.f32.mrf.mxu0
  %v1011 = vadd.f32 %v623, %v1010
  %1012 = vmatmul.f32.gmra.mxu0 %v801
  %v1013 = vpop.f32.mrf.mxu0
  %v1014 = vadd.f32 %v623, %v1013
  %1015 = vmatmul.f32.gmra.mxu0 %v804
  %v1016 = vpop.f32.mrf.mxu0
  %v1017 = vadd.f32 %v623, %v1016
  %1018 = vmatmul.f32.gmra.mxu0 %v807
  %v1019 = vpop.f32.mrf.mxu0
  %v1020 = vadd.f32 %v623, %v1019
  %1021 = vmatmul.f32.gmra.mxu0 %v810
  %v1022 = vpop.f32.mrf.mxu0
  %v1023 = vadd.f32 %v623, %v1022
  %1024 = vmatmul.f32.gmra.mxu0 %v813
  %v1025 = vpop.f32.mrf.mxu0
  %v1026 = vadd.f32 %v623, %v1025
  %1027 = vmatmul.f32.gmra.mxu0 %v816
  %v1028 = vpop.f32.mrf.mxu0
  %v1029 = vadd.f32 %v623, %v1028
  %1030 = vdwg.mxu0
  %v1031 = vlaneseq
  %v1032 = vshrl.u32 %v1031, 7
  %v1033 = vadd.s32 %v1032, 8
  %v1034 = vadd.s32 %v1032, 16
  %v1035 = vadd.s32 %v1032, 24
  %v1036 = vadd.s32 %v1032, 32
  %v1037 = vadd.s32 %v1032, 40
  %v1038 = vadd.s32 %v1032, 48
  %v1039 = vadd.s32 %v1032, 56
  %v1040 = vadd.s32 %v1032, 64
  %v1041 = vadd.s32 %v1032, 72
  %v1042 = vadd.s32 %v1032, 80
  %v1043 = vadd.s32 %v1032, 88
  %v1044 = vadd.s32 %v1032, 96
  %v1045 = vadd.s32 %v1032, 104
  %v1046 = vadd.s32 %v1032, 112
  %v1047 = vadd.s32 %v1032, 120
  %v1048 = vadd.s32 %v1032, 128
  %v1049 = vadd.s32 %v1032, 136
  %v1050 = vadd.s32 %v1032, 144
  %v1051 = vadd.s32 %v1032, 152
  %v1052 = vadd.s32 %v1032, 160
  %v1053 = vadd.s32 %v1032, 168
  %v1054 = vadd.s32 %v1032, 176
  %v1055 = vadd.s32 %v1032, 184
  %v1056 = vadd.s32 %v1032, 192
  %v1057 = vadd.s32 %v1032, 200
  %v1058 = vadd.s32 %v1032, 208
  %v1059 = vadd.s32 %v1032, 216
  %v1060 = vadd.s32 %v1032, 224
  %v1061 = vadd.s32 %v1032, 232
  %v1062 = vadd.s32 %v1032, 240
  %v1063 = vadd.s32 %v1032, 248
  %s1064 = smul.u32 0, 256
  %v1065 = vstv %s1064
  %v1066 = vadd.s32 %v1032, %v1065
  %v1067 = vadd.s32 %v1033, %v1065
  %v1068 = vadd.s32 %v1034, %v1065
  %v1069 = vadd.s32 %v1035, %v1065
  %v1070 = vadd.s32 %v1036, %v1065
  %v1071 = vadd.s32 %v1037, %v1065
  %v1072 = vadd.s32 %v1038, %v1065
  %v1073 = vadd.s32 %v1039, %v1065
  %v1074 = vadd.s32 %v1040, %v1065
  %v1075 = vadd.s32 %v1041, %v1065
  %v1076 = vadd.s32 %v1042, %v1065
  %v1077 = vadd.s32 %v1043, %v1065
  %v1078 = vadd.s32 %v1044, %v1065
  %v1079 = vadd.s32 %v1045, %v1065
  %v1080 = vadd.s32 %v1046, %v1065
  %v1081 = vadd.s32 %v1047, %v1065
  %v1082 = vadd.s32 %v1048, %v1065
  %v1083 = vadd.s32 %v1049, %v1065
  %v1084 = vadd.s32 %v1050, %v1065
  %v1085 = vadd.s32 %v1051, %v1065
  %v1086 = vadd.s32 %v1052, %v1065
  %v1087 = vadd.s32 %v1053, %v1065
  %v1088 = vadd.s32 %v1054, %v1065
  %v1089 = vadd.s32 %v1055, %v1065
  %v1090 = vadd.s32 %v1056, %v1065
  %v1091 = vadd.s32 %v1057, %v1065
  %v1092 = vadd.s32 %v1058, %v1065
  %v1093 = vadd.s32 %v1059, %v1065
  %v1094 = vadd.s32 %v1060, %v1065
  %v1095 = vadd.s32 %v1061, %v1065
  %v1096 = vadd.s32 %v1062, %v1065
  %v1097 = vadd.s32 %v1063, %v1065
  %v1098 = vld [vmem:[%s1] sm:$0xf]
  %v1099 = vperm.slane %v1098, 0
  %v1100 = vperm.slane %v1098, 1
  %v1101 = vperm.slane %v1098, 2
  %v1102 = vperm.slane %v1098, 3
  %vm1103 = vcmp.eq.s32.totalorder %v1099, %v1066
  %vm1104 = vcmp.eq.s32.totalorder %v1100, %v1066
  %vm1105 = vcmp.eq.s32.totalorder %v1101, %v1066
  %vm1106 = vcmp.eq.s32.totalorder %v1102, %v1066
  %vm1107 = vcmp.eq.s32.totalorder %v1099, %v1067
  %vm1108 = vcmp.eq.s32.totalorder %v1100, %v1067
  %vm1109 = vcmp.eq.s32.totalorder %v1101, %v1067
  %vm1110 = vcmp.eq.s32.totalorder %v1102, %v1067
  %vm1111 = vcmp.eq.s32.totalorder %v1099, %v1068
  %vm1112 = vcmp.eq.s32.totalorder %v1100, %v1068
  %vm1113 = vcmp.eq.s32.totalorder %v1101, %v1068
  %vm1114 = vcmp.eq.s32.totalorder %v1102, %v1068
  %vm1115 = vcmp.eq.s32.totalorder %v1099, %v1069
  %vm1116 = vcmp.eq.s32.totalorder %v1100, %v1069
  %vm1117 = vcmp.eq.s32.totalorder %v1101, %v1069
  %vm1118 = vcmp.eq.s32.totalorder %v1102, %v1069
  %vm1119 = vcmp.eq.s32.totalorder %v1099, %v1070
  %vm1120 = vcmp.eq.s32.totalorder %v1100, %v1070
  %vm1121 = vcmp.eq.s32.totalorder %v1101, %v1070
  %vm1122 = vcmp.eq.s32.totalorder %v1102, %v1070
  %vm1123 = vcmp.eq.s32.totalorder %v1099, %v1071
  %vm1124 = vcmp.eq.s32.totalorder %v1100, %v1071
  %vm1125 = vcmp.eq.s32.totalorder %v1101, %v1071
  %vm1126 = vcmp.eq.s32.totalorder %v1102, %v1071
  %vm1127 = vcmp.eq.s32.totalorder %v1099, %v1072
  %vm1128 = vcmp.eq.s32.totalorder %v1100, %v1072
  %vm1129 = vcmp.eq.s32.totalorder %v1101, %v1072
  %vm1130 = vcmp.eq.s32.totalorder %v1102, %v1072
  %vm1131 = vcmp.eq.s32.totalorder %v1099, %v1073
  %vm1132 = vcmp.eq.s32.totalorder %v1100, %v1073
  %vm1133 = vcmp.eq.s32.totalorder %v1101, %v1073
  %vm1134 = vcmp.eq.s32.totalorder %v1102, %v1073
  %vm1135 = vcmp.eq.s32.totalorder %v1099, %v1074
  %vm1136 = vcmp.eq.s32.totalorder %v1100, %v1074
  %vm1137 = vcmp.eq.s32.totalorder %v1101, %v1074
  %vm1138 = vcmp.eq.s32.totalorder %v1102, %v1074
  %vm1139 = vcmp.eq.s32.totalorder %v1099, %v1075
  %vm1140 = vcmp.eq.s32.totalorder %v1100, %v1075
  %vm1141 = vcmp.eq.s32.totalorder %v1101, %v1075
  %vm1142 = vcmp.eq.s32.totalorder %v1102, %v1075
  %vm1143 = vcmp.eq.s32.totalorder %v1099, %v1076
  %vm1144 = vcmp.eq.s32.totalorder %v1100, %v1076
  %vm1145 = vcmp.eq.s32.totalorder %v1101, %v1076
  %vm1146 = vcmp.eq.s32.totalorder %v1102, %v1076
  %vm1147 = vcmp.eq.s32.totalorder %v1099, %v1077
  %vm1148 = vcmp.eq.s32.totalorder %v1100, %v1077
  %vm1149 = vcmp.eq.s32.totalorder %v1101, %v1077
  %vm1150 = vcmp.eq.s32.totalorder %v1102, %v1077
  %vm1151 = vcmp.eq.s32.totalorder %v1099, %v1078
  %vm1152 = vcmp.eq.s32.totalorder %v1100, %v1078
  %vm1153 = vcmp.eq.s32.totalorder %v1101, %v1078
  %vm1154 = vcmp.eq.s32.totalorder %v1102, %v1078
  %vm1155 = vcmp.eq.s32.totalorder %v1099, %v1079
  %vm1156 = vcmp.eq.s32.totalorder %v1100, %v1079
  %vm1157 = vcmp.eq.s32.totalorder %v1101, %v1079
  %vm1158 = vcmp.eq.s32.totalorder %v1102, %v1079
  %vm1159 = vcmp.eq.s32.totalorder %v1099, %v1080
  %vm1160 = vcmp.eq.s32.totalorder %v1100, %v1080
  %vm1161 = vcmp.eq.s32.totalorder %v1101, %v1080
  %vm1162 = vcmp.eq.s32.totalorder %v1102, %v1080
  %vm1163 = vcmp.eq.s32.totalorder %v1099, %v1081
  %vm1164 = vcmp.eq.s32.totalorder %v1100, %v1081
  %vm1165 = vcmp.eq.s32.totalorder %v1101, %v1081
  %vm1166 = vcmp.eq.s32.totalorder %v1102, %v1081
  %vm1167 = vcmp.eq.s32.totalorder %v1099, %v1082
  %vm1168 = vcmp.eq.s32.totalorder %v1100, %v1082
  %vm1169 = vcmp.eq.s32.totalorder %v1101, %v1082
  %vm1170 = vcmp.eq.s32.totalorder %v1102, %v1082
  %vm1171 = vcmp.eq.s32.totalorder %v1099, %v1083
  %vm1172 = vcmp.eq.s32.totalorder %v1100, %v1083
  %vm1173 = vcmp.eq.s32.totalorder %v1101, %v1083
  %vm1174 = vcmp.eq.s32.totalorder %v1102, %v1083
  %vm1175 = vcmp.eq.s32.totalorder %v1099, %v1084
  %vm1176 = vcmp.eq.s32.totalorder %v1100, %v1084
  %vm1177 = vcmp.eq.s32.totalorder %v1101, %v1084
  %vm1178 = vcmp.eq.s32.totalorder %v1102, %v1084
  %vm1179 = vcmp.eq.s32.totalorder %v1099, %v1085
  %vm1180 = vcmp.eq.s32.totalorder %v1100, %v1085
  %vm1181 = vcmp.eq.s32.totalorder %v1101, %v1085
  %vm1182 = vcmp.eq.s32.totalorder %v1102, %v1085
  %vm1183 = vcmp.eq.s32.totalorder %v1099, %v1086
  %vm1184 = vcmp.eq.s32.totalorder %v1100, %v1086
  %vm1185 = vcmp.eq.s32.totalorder %v1101, %v1086
  %vm1186 = vcmp.eq.s32.totalorder %v1102, %v1086
  %vm1187 = vcmp.eq.s32.totalorder %v1099, %v1087
  %vm1188 = vcmp.eq.s32.totalorder %v1100, %v1087
  %vm1189 = vcmp.eq.s32.totalorder %v1101, %v1087
  %vm1190 = vcmp.eq.s32.totalorder %v1102, %v1087
  %vm1191 = vcmp.eq.s32.totalorder %v1099, %v1088
  %vm1192 = vcmp.eq.s32.totalorder %v1100, %v1088
  %vm1193 = vcmp.eq.s32.totalorder %v1101, %v1088
  %vm1194 = vcmp.eq.s32.totalorder %v1102, %v1088
  %vm1195 = vcmp.eq.s32.totalorder %v1099, %v1089
  %vm1196 = vcmp.eq.s32.totalorder %v1100, %v1089
  %vm1197 = vcmp.eq.s32.totalorder %v1101, %v1089
  %vm1198 = vcmp.eq.s32.totalorder %v1102, %v1089
  %vm1199 = vcmp.eq.s32.totalorder %v1099, %v1090
  %vm1200 = vcmp.eq.s32.totalorder %v1100, %v1090
  %vm1201 = vcmp.eq.s32.totalorder %v1101, %v1090
  %vm1202 = vcmp.eq.s32.totalorder %v1102, %v1090
  %vm1203 = vcmp.eq.s32.totalorder %v1099, %v1091
  %vm1204 = vcmp.eq.s32.totalorder %v1100, %v1091
  %vm1205 = vcmp.eq.s32.totalorder %v1101, %v1091
  %vm1206 = vcmp.eq.s32.totalorder %v1102, %v1091
  %vm1207 = vcmp.eq.s32.totalorder %v1099, %v1092
  %vm1208 = vcmp.eq.s32.totalorder %v1100, %v1092
  %vm1209 = vcmp.eq.s32.totalorder %v1101, %v1092
  %vm1210 = vcmp.eq.s32.totalorder %v1102, %v1092
  %vm1211 = vcmp.eq.s32.totalorder %v1099, %v1093
  %vm1212 = vcmp.eq.s32.totalorder %v1100, %v1093
  %vm1213 = vcmp.eq.s32.totalorder %v1101, %v1093
  %vm1214 = vcmp.eq.s32.totalorder %v1102, %v1093
  %vm1215 = vcmp.eq.s32.totalorder %v1099, %v1094
  %vm1216 = vcmp.eq.s32.totalorder %v1100, %v1094
  %vm1217 = vcmp.eq.s32.totalorder %v1101, %v1094
  %vm1218 = vcmp.eq.s32.totalorder %v1102, %v1094
  %vm1219 = vcmp.eq.s32.totalorder %v1099, %v1095
  %vm1220 = vcmp.eq.s32.totalorder %v1100, %v1095
  %vm1221 = vcmp.eq.s32.totalorder %v1101, %v1095
  %vm1222 = vcmp.eq.s32.totalorder %v1102, %v1095
  %vm1223 = vcmp.eq.s32.totalorder %v1099, %v1096
  %vm1224 = vcmp.eq.s32.totalorder %v1100, %v1096
  %vm1225 = vcmp.eq.s32.totalorder %v1101, %v1096
  %vm1226 = vcmp.eq.s32.totalorder %v1102, %v1096
  %vm1227 = vcmp.eq.s32.totalorder %v1099, %v1097
  %vm1228 = vcmp.eq.s32.totalorder %v1100, %v1097
  %vm1229 = vcmp.eq.s32.totalorder %v1101, %v1097
  %vm1230 = vcmp.eq.s32.totalorder %v1102, %v1097
  %v1231 = vsel %vm1103, 1, 0
  %v1232 = vsel %vm1104, 1, 0
  %v1233 = vsel %vm1105, 1, 0
  %v1234 = vsel %vm1106, 1, 0
  %v1235 = vsel %vm1107, 1, 0
  %v1236 = vsel %vm1108, 1, 0
  %v1237 = vsel %vm1109, 1, 0
  %v1238 = vsel %vm1110, 1, 0
  %v1239 = vsel %vm1111, 1, 0
  %v1240 = vsel %vm1112, 1, 0
  %v1241 = vsel %vm1113, 1, 0
  %v1242 = vsel %vm1114, 1, 0
  %v1243 = vsel %vm1115, 1, 0
  %v1244 = vsel %vm1116, 1, 0
  %v1245 = vsel %vm1117, 1, 0
  %v1246 = vsel %vm1118, 1, 0
  %v1247 = vsel %vm1119, 1, 0
  %v1248 = vsel %vm1120, 1, 0
  %v1249 = vsel %vm1121, 1, 0
  %v1250 = vsel %vm1122, 1, 0
  %v1251 = vsel %vm1123, 1, 0
  %v1252 = vsel %vm1124, 1, 0
  %v1253 = vsel %vm1125, 1, 0
  %v1254 = vsel %vm1126, 1, 0
  %v1255 = vsel %vm1127, 1, 0
  %v1256 = vsel %vm1128, 1, 0
  %v1257 = vsel %vm1129, 1, 0
  %v1258 = vsel %vm1130, 1, 0
  %v1259 = vsel %vm1131, 1, 0
  %v1260 = vsel %vm1132, 1, 0
  %v1261 = vsel %vm1133, 1, 0
  %v1262 = vsel %vm1134, 1, 0
  %v1263 = vsel %vm1135, 1, 0
  %v1264 = vsel %vm1136, 1, 0
  %v1265 = vsel %vm1137, 1, 0
  %v1266 = vsel %vm1138, 1, 0
  %v1267 = vsel %vm1139, 1, 0
  %v1268 = vsel %vm1140, 1, 0
  %v1269 = vsel %vm1141, 1, 0
  %v1270 = vsel %vm1142, 1, 0
  %v1271 = vsel %vm1143, 1, 0
  %v1272 = vsel %vm1144, 1, 0
  %v1273 = vsel %vm1145, 1, 0
  %v1274 = vsel %vm1146, 1, 0
  %v1275 = vsel %vm1147, 1, 0
  %v1276 = vsel %vm1148, 1, 0
  %v1277 = vsel %vm1149, 1, 0
  %v1278 = vsel %vm1150, 1, 0
  %v1279 = vsel %vm1151, 1, 0
  %v1280 = vsel %vm1152, 1, 0
  %v1281 = vsel %vm1153, 1, 0
  %v1282 = vsel %vm1154, 1, 0
  %v1283 = vsel %vm1155, 1, 0
  %v1284 = vsel %vm1156, 1, 0
  %v1285 = vsel %vm1157, 1, 0
  %v1286 = vsel %vm1158, 1, 0
  %v1287 = vsel %vm1159, 1, 0
  %v1288 = vsel %vm1160, 1, 0
  %v1289 = vsel %vm1161, 1, 0
  %v1290 = vsel %vm1162, 1, 0
  %v1291 = vsel %vm1163, 1, 0
  %v1292 = vsel %vm1164, 1, 0
  %v1293 = vsel %vm1165, 1, 0
  %v1294 = vsel %vm1166, 1, 0
  %v1295 = vsel %vm1167, 1, 0
  %v1296 = vsel %vm1168, 1, 0
  %v1297 = vsel %vm1169, 1, 0
  %v1298 = vsel %vm1170, 1, 0
  %v1299 = vsel %vm1171, 1, 0
  %v1300 = vsel %vm1172, 1, 0
  %v1301 = vsel %vm1173, 1, 0
  %v1302 = vsel %vm1174, 1, 0
  %v1303 = vsel %vm1175, 1, 0
  %v1304 = vsel %vm1176, 1, 0
  %v1305 = vsel %vm1177, 1, 0
  %v1306 = vsel %vm1178, 1, 0
  %v1307 = vsel %vm1179, 1, 0
  %v1308 = vsel %vm1180, 1, 0
  %v1309 = vsel %vm1181, 1, 0
  %v1310 = vsel %vm1182, 1, 0
  %v1311 = vsel %vm1183, 1, 0
  %v1312 = vsel %vm1184, 1, 0
  %v1313 = vsel %vm1185, 1, 0
  %v1314 = vsel %vm1186, 1, 0
  %v1315 = vsel %vm1187, 1, 0
  %v1316 = vsel %vm1188, 1, 0
  %v1317 = vsel %vm1189, 1, 0
  %v1318 = vsel %vm1190, 1, 0
  %v1319 = vsel %vm1191, 1, 0
  %v1320 = vsel %vm1192, 1, 0
  %v1321 = vsel %vm1193, 1, 0
  %v1322 = vsel %vm1194, 1, 0
  %v1323 = vsel %vm1195, 1, 0
  %v1324 = vsel %vm1196, 1, 0
  %v1325 = vsel %vm1197, 1, 0
  %v1326 = vsel %vm1198, 1, 0
  %v1327 = vsel %vm1199, 1, 0
  %v1328 = vsel %vm1200, 1, 0
  %v1329 = vsel %vm1201, 1, 0
  %v1330 = vsel %vm1202, 1, 0
  %v1331 = vsel %vm1203, 1, 0
  %v1332 = vsel %vm1204, 1, 0
  %v1333 = vsel %vm1205, 1, 0
  %v1334 = vsel %vm1206, 1, 0
  %v1335 = vsel %vm1207, 1, 0
  %v1336 = vsel %vm1208, 1, 0
  %v1337 = vsel %vm1209, 1, 0
  %v1338 = vsel %vm1210, 1, 0
  %v1339 = vsel %vm1211, 1, 0
  %v1340 = vsel %vm1212, 1, 0
  %v1341 = vsel %vm1213, 1, 0
  %v1342 = vsel %vm1214, 1, 0
  %v1343 = vsel %vm1215, 1, 0
  %v1344 = vsel %vm1216, 1, 0
  %v1345 = vsel %vm1217, 1, 0
  %v1346 = vsel %vm1218, 1, 0
  %v1347 = vsel %vm1219, 1, 0
  %v1348 = vsel %vm1220, 1, 0
  %v1349 = vsel %vm1221, 1, 0
  %v1350 = vsel %vm1222, 1, 0
  %v1351 = vsel %vm1223, 1, 0
  %v1352 = vsel %vm1224, 1, 0
  %v1353 = vsel %vm1225, 1, 0
  %v1354 = vsel %vm1226, 1, 0
  %v1355 = vsel %vm1227, 1, 0
  %v1356 = vsel %vm1228, 1, 0
  %v1357 = vsel %vm1229, 1, 0
  %v1358 = vsel %vm1230, 1, 0
  %v1359 = vcvt.s32.f32 %v1231
  %v1360 = vcvt.s32.f32 %v1232
  %v1361 = vcvt.s32.f32 %v1233
  %v1362 = vcvt.s32.f32 %v1234
  %v1363 = vcvt.s32.f32 %v1235
  %v1364 = vcvt.s32.f32 %v1236
  %v1365 = vcvt.s32.f32 %v1237
  %v1366 = vcvt.s32.f32 %v1238
  %v1367 = vcvt.s32.f32 %v1239
  %v1368 = vcvt.s32.f32 %v1240
  %v1369 = vcvt.s32.f32 %v1241
  %v1370 = vcvt.s32.f32 %v1242
  %v1371 = vcvt.s32.f32 %v1243
  %v1372 = vcvt.s32.f32 %v1244
  %v1373 = vcvt.s32.f32 %v1245
  %v1374 = vcvt.s32.f32 %v1246
  %v1375 = vcvt.s32.f32 %v1247
  %v1376 = vcvt.s32.f32 %v1248
  %v1377 = vcvt.s32.f32 %v1249
  %v1378 = vcvt.s32.f32 %v1250
  %v1379 = vcvt.s32.f32 %v1251
  %v1380 = vcvt.s32.f32 %v1252
  %v1381 = vcvt.s32.f32 %v1253
  %v1382 = vcvt.s32.f32 %v1254
  %v1383 = vcvt.s32.f32 %v1255
  %v1384 = vcvt.s32.f32 %v1256
  %v1385 = vcvt.s32.f32 %v1257
  %v1386 = vcvt.s32.f32 %v1258
  %v1387 = vcvt.s32.f32 %v1259
  %v1388 = vcvt.s32.f32 %v1260
  %v1389 = vcvt.s32.f32 %v1261
  %v1390 = vcvt.s32.f32 %v1262
  %v1391 = vcvt.s32.f32 %v1263
  %v1392 = vcvt.s32.f32 %v1264
  %v1393 = vcvt.s32.f32 %v1265
  %v1394 = vcvt.s32.f32 %v1266
  %v1395 = vcvt.s32.f32 %v1267
  %v1396 = vcvt.s32.f32 %v1268
  %v1397 = vcvt.s32.f32 %v1269
  %v1398 = vcvt.s32.f32 %v1270
  %v1399 = vcvt.s32.f32 %v1271
  %v1400 = vcvt.s32.f32 %v1272
  %v1401 = vcvt.s32.f32 %v1273
  %v1402 = vcvt.s32.f32 %v1274
  %v1403 = vcvt.s32.f32 %v1275
  %v1404 = vcvt.s32.f32 %v1276
  %v1405 = vcvt.s32.f32 %v1277
  %v1406 = vcvt.s32.f32 %v1278
  %v1407 = vcvt.s32.f32 %v1279
  %v1408 = vcvt.s32.f32 %v1280
  %v1409 = vcvt.s32.f32 %v1281
  %v1410 = vcvt.s32.f32 %v1282
  %v1411 = vcvt.s32.f32 %v1283
  %v1412 = vcvt.s32.f32 %v1284
  %v1413 = vcvt.s32.f32 %v1285
  %v1414 = vcvt.s32.f32 %v1286
  %v1415 = vcvt.s32.f32 %v1287
  %v1416 = vcvt.s32.f32 %v1288
  %v1417 = vcvt.s32.f32 %v1289
  %v1418 = vcvt.s32.f32 %v1290
  %v1419 = vcvt.s32.f32 %v1291
  %v1420 = vcvt.s32.f32 %v1292
  %v1421 = vcvt.s32.f32 %v1293
  %v1422 = vcvt.s32.f32 %v1294
  %v1423 = vcvt.s32.f32 %v1295
  %v1424 = vcvt.s32.f32 %v1296
  %v1425 = vcvt.s32.f32 %v1297
  %v1426 = vcvt.s32.f32 %v1298
  %v1427 = vcvt.s32.f32 %v1299
  %v1428 = vcvt.s32.f32 %v1300
  %v1429 = vcvt.s32.f32 %v1301
  %v1430 = vcvt.s32.f32 %v1302
  %v1431 = vcvt.s32.f32 %v1303
  %v1432 = vcvt.s32.f32 %v1304
  %v1433 = vcvt.s32.f32 %v1305
  %v1434 = vcvt.s32.f32 %v1306
  %v1435 = vcvt.s32.f32 %v1307
  %v1436 = vcvt.s32.f32 %v1308
  %v1437 = vcvt.s32.f32 %v1309
  %v1438 = vcvt.s32.f32 %v1310
  %v1439 = vcvt.s32.f32 %v1311
  %v1440 = vcvt.s32.f32 %v1312
  %v1441 = vcvt.s32.f32 %v1313
  %v1442 = vcvt.s32.f32 %v1314
  %v1443 = vcvt.s32.f32 %v1315
  %v1444 = vcvt.s32.f32 %v1316
  %v1445 = vcvt.s32.f32 %v1317
  %v1446 = vcvt.s32.f32 %v1318
  %v1447 = vcvt.s32.f32 %v1319
  %v1448 = vcvt.s32.f32 %v1320
  %v1449 = vcvt.s32.f32 %v1321
  %v1450 = vcvt.s32.f32 %v1322
  %v1451 = vcvt.s32.f32 %v1323
  %v1452 = vcvt.s32.f32 %v1324
  %v1453 = vcvt.s32.f32 %v1325
  %v1454 = vcvt.s32.f32 %v1326
  %v1455 = vcvt.s32.f32 %v1327
  %v1456 = vcvt.s32.f32 %v1328
  %v1457 = vcvt.s32.f32 %v1329
  %v1458 = vcvt.s32.f32 %v1330
  %v1459 = vcvt.s32.f32 %v1331
  %v1460 = vcvt.s32.f32 %v1332
  %v1461 = vcvt.s32.f32 %v1333
  %v1462 = vcvt.s32.f32 %v1334
  %v1463 = vcvt.s32.f32 %v1335
  %v1464 = vcvt.s32.f32 %v1336
  %v1465 = vcvt.s32.f32 %v1337
  %v1466 = vcvt.s32.f32 %v1338
  %v1467 = vcvt.s32.f32 %v1339
  %v1468 = vcvt.s32.f32 %v1340
  %v1469 = vcvt.s32.f32 %v1341
  %v1470 = vcvt.s32.f32 %v1342
  %v1471 = vcvt.s32.f32 %v1343
  %v1472 = vcvt.s32.f32 %v1344
  %v1473 = vcvt.s32.f32 %v1345
  %v1474 = vcvt.s32.f32 %v1346
  %v1475 = vcvt.s32.f32 %v1347
  %v1476 = vcvt.s32.f32 %v1348
  %v1477 = vcvt.s32.f32 %v1349
  %v1478 = vcvt.s32.f32 %v1350
  %v1479 = vcvt.s32.f32 %v1351
  %v1480 = vcvt.s32.f32 %v1352
  %v1481 = vcvt.s32.f32 %v1353
  %v1482 = vcvt.s32.f32 %v1354
  %v1483 = vcvt.s32.f32 %v1355
  %v1484 = vcvt.s32.f32 %v1356
  %v1485 = vcvt.s32.f32 %v1357
  %v1486 = vcvt.s32.f32 %v1358
  %v1487 = vpack.c.bf16 %v1363, %v1359
  %v1488 = vpack.c.bf16 %v1364, %v1360
  %v1489 = vpack.c.bf16 %v1365, %v1361
  %v1490 = vpack.c.bf16 %v1366, %v1362
  %v1491 = vpack.c.bf16 %v1371, %v1367
  %v1492 = vpack.c.bf16 %v1372, %v1368
  %v1493 = vpack.c.bf16 %v1373, %v1369
  %v1494 = vpack.c.bf16 %v1374, %v1370
  %v1495 = vpack.c.bf16 %v1379, %v1375
  %v1496 = vpack.c.bf16 %v1380, %v1376
  %v1497 = vpack.c.bf16 %v1381, %v1377
  %v1498 = vpack.c.bf16 %v1382, %v1378
  %v1499 = vpack.c.bf16 %v1387, %v1383
  %v1500 = vpack.c.bf16 %v1388, %v1384
  %v1501 = vpack.c.bf16 %v1389, %v1385
  %v1502 = vpack.c.bf16 %v1390, %v1386
  %v1503 = vpack.c.bf16 %v1395, %v1391
  %v1504 = vpack.c.bf16 %v1396, %v1392
  %v1505 = vpack.c.bf16 %v1397, %v1393
  %v1506 = vpack.c.bf16 %v1398, %v1394
  %v1507 = vpack.c.bf16 %v1403, %v1399
  %v1508 = vpack.c.bf16 %v1404, %v1400
  %v1509 = vpack.c.bf16 %v1405, %v1401
  %v1510 = vpack.c.bf16 %v1406, %v1402
  %v1511 = vpack.c.bf16 %v1411, %v1407
  %v1512 = vpack.c.bf16 %v1412, %v1408
  %v1513 = vpack.c.bf16 %v1413, %v1409
  %v1514 = vpack.c.bf16 %v1414, %v1410
  %v1515 = vpack.c.bf16 %v1419, %v1415
  %v1516 = vpack.c.bf16 %v1420, %v1416
  %v1517 = vpack.c.bf16 %v1421, %v1417
  %v1518 = vpack.c.bf16 %v1422, %v1418
  %v1519 = vpack.c.bf16 %v1427, %v1423
  %v1520 = vpack.c.bf16 %v1428, %v1424
  %v1521 = vpack.c.bf16 %v1429, %v1425
  %v1522 = vpack.c.bf16 %v1430, %v1426
  %v1523 = vpack.c.bf16 %v1435, %v1431
  %v1524 = vpack.c.bf16 %v1436, %v1432
  %v1525 = vpack.c.bf16 %v1437, %v1433
  %v1526 = vpack.c.bf16 %v1438, %v1434
  %v1527 = vpack.c.bf16 %v1443, %v1439
  %v1528 = vpack.c.bf16 %v1444, %v1440
  %v1529 = vpack.c.bf16 %v1445, %v1441
  %v1530 = vpack.c.bf16 %v1446, %v1442
  %v1531 = vpack.c.bf16 %v1451, %v1447
  %v1532 = vpack.c.bf16 %v1452, %v1448
  %v1533 = vpack.c.bf16 %v1453, %v1449
  %v1534 = vpack.c.bf16 %v1454, %v1450
  %v1535 = vpack.c.bf16 %v1459, %v1455
  %v1536 = vpack.c.bf16 %v1460, %v1456
  %v1537 = vpack.c.bf16 %v1461, %v1457
  %v1538 = vpack.c.bf16 %v1462, %v1458
  %v1539 = vpack.c.bf16 %v1467, %v1463
  %v1540 = vpack.c.bf16 %v1468, %v1464
  %v1541 = vpack.c.bf16 %v1469, %v1465
  %v1542 = vpack.c.bf16 %v1470, %v1466
  %v1543 = vpack.c.bf16 %v1475, %v1471
  %v1544 = vpack.c.bf16 %v1476, %v1472
  %v1545 = vpack.c.bf16 %v1477, %v1473
  %v1546 = vpack.c.bf16 %v1478, %v1474
  %v1547 = vpack.c.bf16 %v1483, %v1479
  %v1548 = vpack.c.bf16 %v1484, %v1480
  %v1549 = vpack.c.bf16 %v1485, %v1481
  %v1550 = vpack.c.bf16 %v1486, %v1482
  %v1551 = vld [vmem:[#allocation2] sm:$0xff]
  %v1552 = vld [vmem:[#allocation2 + $0x8] sm:$0xff]
  %v1553 = vld [vmem:[#allocation2 + $0x10] sm:$0xff]
  %v1554 = vld [vmem:[#allocation2 + $0x18] sm:$0xff]
  %v1555 = vld [vmem:[#allocation2 + $0x20] sm:$0xff]
  %v1556 = vld [vmem:[#allocation2 + $0x28] sm:$0xff]
  %v1557 = vld [vmem:[#allocation2 + $0x30] sm:$0xff]
  %v1558 = vld [vmem:[#allocation2 + $0x38] sm:$0xff]
  %v1559 = vld [vmem:[#allocation2 + $0x40] sm:$0xff]
  %v1560 = vld [vmem:[#allocation2 + $0x48] sm:$0xff]
  %v1561 = vld [vmem:[#allocation2 + $0x50] sm:$0xff]
  %v1562 = vld [vmem:[#allocation2 + $0x58] sm:$0xff]
  %v1563 = vld [vmem:[#allocation2 + $0x60] sm:$0xff]
  %v1564 = vld [vmem:[#allocation2 + $0x68] sm:$0xff]
  %v1565 = vld [vmem:[#allocation2 + $0x70] sm:$0xff]
  %v1566 = vld [vmem:[#allocation2 + $0x78] sm:$0xff]
  %v1567 = vld [vmem:[#allocation2 + $0x80] sm:$0xff]
  %v1568 = vld [vmem:[#allocation2 + $0x88] sm:$0xff]
  %v1569 = vld [vmem:[#allocation2 + $0x90] sm:$0xff]
  %v1570 = vld [vmem:[#allocation2 + $0x98] sm:$0xff]
  %v1571 = vld [vmem:[#allocation2 + $0xa0] sm:$0xff]
  %v1572 = vld [vmem:[#allocation2 + $0xa8] sm:$0xff]
  %v1573 = vld [vmem:[#allocation2 + $0xb0] sm:$0xff]
  %v1574 = vld [vmem:[#allocation2 + $0xb8] sm:$0xff]
  %v1575 = vld [vmem:[#allocation2 + $0xc0] sm:$0xff]
  %v1576 = vld [vmem:[#allocation2 + $0xc8] sm:$0xff]
  %v1577 = vld [vmem:[#allocation2 + $0xd0] sm:$0xff]
  %v1578 = vld [vmem:[#allocation2 + $0xd8] sm:$0xff]
  %v1579 = vld [vmem:[#allocation2 + $0xe0] sm:$0xff]
  %v1580 = vld [vmem:[#allocation2 + $0xe8] sm:$0xff]
  %v1581 = vld [vmem:[#allocation2 + $0xf0] sm:$0xff]
  %v1582 = vld [vmem:[#allocation2 + $0xf8] sm:$0xff]
  %v1583 = vpack.c.bf16 %v843, %v840
  %v1584 = vpack.c.bf16 %v849, %v846
  %v1585 = vpack.c.bf16 %v855, %v852
  %v1586 = vpack.c.bf16 %v861, %v858
  %v1587 = vpack.c.bf16 %v867, %v864
  %v1588 = vpack.c.bf16 %v873, %v870
  %v1589 = vpack.c.bf16 %v879, %v876
  %v1590 = vpack.c.bf16 %v885, %v882
  %v1591 = vpack.c.bf16 %v891, %v888
  %v1592 = vpack.c.bf16 %v897, %v894
  %v1593 = vpack.c.bf16 %v903, %v900
  %v1594 = vpack.c.bf16 %v909, %v906
  %v1595 = vpack.c.bf16 %v915, %v912
  %v1596 = vpack.c.bf16 %v921, %v918
  %v1597 = vpack.c.bf16 %v927, %v924
  %v1598 = vpack.c.bf16 %v933, %v930
  %v1599 = vpack.c.bf16 %v939, %v936
  %v1600 = vpack.c.bf16 %v945, %v942
  %v1601 = vpack.c.bf16 %v951, %v948
  %v1602 = vpack.c.bf16 %v957, %v954
  %v1603 = vpack.c.bf16 %v963, %v960
  %v1604 = vpack.c.bf16 %v969, %v966
  %v1605 = vpack.c.bf16 %v975, %v972
  %v1606 = vpack.c.bf16 %v981, %v978
  %v1607 = vpack.c.bf16 %v987, %v984
  %v1608 = vpack.c.bf16 %v993, %v990
  %v1609 = vpack.c.bf16 %v999, %v996
  %v1610 = vpack.c.bf16 %v1005, %v1002
  %v1611 = vpack.c.bf16 %v1011, %v1008
  %v1612 = vpack.c.bf16 %v1017, %v1014
  %v1613 = vpack.c.bf16 %v1023, %v1020
  %v1614 = vpack.c.bf16 %v1029, %v1026
  %1615 = vmatpush.bf16.msra.mxu0 %v1590
  %1616 = vmatpush.bf16.msra.mxu0 %v1589
  %1617 = vmatpush.bf16.msra.mxu0 %v1588
  %1618 = vmatpush.bf16.msra.mxu0 %v1587
  %1619 = vmatpush.bf16.msra.mxu0 %v1586
  %1620 = vmatpush.bf16.msra.mxu0 %v1585
  %1621 = vmatpush.bf16.msra.mxu0 %v1584
  %1622 = vmatpush.bf16.msra.mxu0 %v1583
  %1623 = vmatmul.bf16.gmra.mxu0 %v1487
  %v1624 = vpop.f32.mrf.mxu0
  %v1625 = vadd.f32 0.0, %v1624
  %v1626 = vpop.f32.mrf.mxu0
  %v1627 = vadd.f32 0.0, %v1626
  %1628 = vmatmul.bf16.gmra.mxu0 %v1491
  %v1629 = vpop.f32.mrf.mxu0
  %v1630 = vadd.f32 0.0, %v1629
  %v1631 = vpop.f32.mrf.mxu0
  %v1632 = vadd.f32 0.0, %v1631
  %1633 = vmatmul.bf16.gmra.mxu0 %v1495
  %v1634 = vpop.f32.mrf.mxu0
  %v1635 = vadd.f32 0.0, %v1634
  %v1636 = vpop.f32.mrf.mxu0
  %v1637 = vadd.f32 0.0, %v1636
  %1638 = vmatmul.bf16.gmra.mxu0 %v1499
  %v1639 = vpop.f32.mrf.mxu0
  %v1640 = vadd.f32 0.0, %v1639
  %v1641 = vpop.f32.mrf.mxu0
  %v1642 = vadd.f32 0.0, %v1641
  %1643 = vmatmul.bf16.gmra.mxu0 %v1503
  %v1644 = vpop.f32.mrf.mxu0
  %v1645 = vadd.f32 0.0, %v1644
  %v1646 = vpop.f32.mrf.mxu0
  %v1647 = vadd.f32 0.0, %v1646
  %1648 = vmatmul.bf16.gmra.mxu0 %v1507
  %v1649 = vpop.f32.mrf.mxu0
  %v1650 = vadd.f32 0.0, %v1649
  %v1651 = vpop.f32.mrf.mxu0
  %v1652 = vadd.f32 0.0, %v1651
  %1653 = vmatmul.bf16.gmra.mxu0 %v1511
  %v1654 = vpop.f32.mrf.mxu0
  %v1655 = vadd.f32 0.0, %v1654
  %v1656 = vpop.f32.mrf.mxu0
  %v1657 = vadd.f32 0.0, %v1656
  %1658 = vmatmul.bf16.gmra.mxu0 %v1515
  %v1659 = vpop.f32.mrf.mxu0
  %v1660 = vadd.f32 0.0, %v1659
  %v1661 = vpop.f32.mrf.mxu0
  %v1662 = vadd.f32 0.0, %v1661
  %1663 = vmatmul.bf16.gmra.mxu0 %v1519
  %v1664 = vpop.f32.mrf.mxu0
  %v1665 = vadd.f32 0.0, %v1664
  %v1666 = vpop.f32.mrf.mxu0
  %v1667 = vadd.f32 0.0, %v1666
  %1668 = vmatmul.bf16.gmra.mxu0 %v1523
  %v1669 = vpop.f32.mrf.mxu0
  %v1670 = vadd.f32 0.0, %v1669
  %v1671 = vpop.f32.mrf.mxu0
  %v1672 = vadd.f32 0.0, %v1671
  %1673 = vmatmul.bf16.gmra.mxu0 %v1527
  %v1674 = vpop.f32.mrf.mxu0
  %v1675 = vadd.f32 0.0, %v1674
  %v1676 = vpop.f32.mrf.mxu0
  %v1677 = vadd.f32 0.0, %v1676
  %1678 = vmatmul.bf16.gmra.mxu0 %v1531
  %v1679 = vpop.f32.mrf.mxu0
  %v1680 = vadd.f32 0.0, %v1679
  %v1681 = vpop.f32.mrf.mxu0
  %v1682 = vadd.f32 0.0, %v1681
  %1683 = vmatmul.bf16.gmra.mxu0 %v1535
  %v1684 = vpop.f32.mrf.mxu0
  %v1685 = vadd.f32 0.0, %v1684
  %v1686 = vpop.f32.mrf.mxu0
  %v1687 = vadd.f32 0.0, %v1686
  %1688 = vmatmul.bf16.gmra.mxu0 %v1539
  %v1689 = vpop.f32.mrf.mxu0
  %v1690 = vadd.f32 0.0, %v1689
  %v1691 = vpop.f32.mrf.mxu0
  %v1692 = vadd.f32 0.0, %v1691
  %1693 = vmatmul.bf16.gmra.mxu0 %v1543
  %v1694 = vpop.f32.mrf.mxu0
  %v1695 = vadd.f32 0.0, %v1694
  %v1696 = vpop.f32.mrf.mxu0
  %v1697 = vadd.f32 0.0, %v1696
  %1698 = vmatmul.bf16.gmra.mxu0 %v1547
  %v1699 = vpop.f32.mrf.mxu0
  %v1700 = vadd.f32 0.0, %v1699
  %v1701 = vpop.f32.mrf.mxu0
  %v1702 = vadd.f32 0.0, %v1701
  %1703 = vdwg.mxu0
  %1704 = vmatpush.bf16.msra.mxu0 %v1598
  %1705 = vmatpush.bf16.msra.mxu0 %v1597
  %1706 = vmatpush.bf16.msra.mxu0 %v1596
  %1707 = vmatpush.bf16.msra.mxu0 %v1595
  %1708 = vmatpush.bf16.msra.mxu0 %v1594
  %1709 = vmatpush.bf16.msra.mxu0 %v1593
  %1710 = vmatpush.bf16.msra.mxu0 %v1592
  %1711 = vmatpush.bf16.msra.mxu0 %v1591
  %1712 = vmatmul.bf16.gmra.mxu0 %v1488
  %v1713 = vpop.f32.mrf.mxu0
  %v1714 = vadd.f32 %v1625, %v1713
  %v1715 = vpop.f32.mrf.mxu0
  %v1716 = vadd.f32 %v1627, %v1715
  %1717 = vmatmul.bf16.gmra.mxu0 %v1492
  %v1718 = vpop.f32.mrf.mxu0
  %v1719 = vadd.f32 %v1630, %v1718
  %v1720 = vpop.f32.mrf.mxu0
  %v1721 = vadd.f32 %v1632, %v1720
  %1722 = vmatmul.bf16.gmra.mxu0 %v1496
  %v1723 = vpop.f32.mrf.mxu0
  %v1724 = vadd.f32 %v1635, %v1723
  %v1725 = vpop.f32.mrf.mxu0
  %v1726 = vadd.f32 %v1637, %v1725
  %1727 = vmatmul.bf16.gmra.mxu0 %v1500
  %v1728 = vpop.f32.mrf.mxu0
  %v1729 = vadd.f32 %v1640, %v1728
  %v1730 = vpop.f32.mrf.mxu0
  %v1731 = vadd.f32 %v1642, %v1730
  %1732 = vmatmul.bf16.gmra.mxu0 %v1504
  %v1733 = vpop.f32.mrf.mxu0
  %v1734 = vadd.f32 %v1645, %v1733
  %v1735 = vpop.f32.mrf.mxu0
  %v1736 = vadd.f32 %v1647, %v1735
  %1737 = vmatmul.bf16.gmra.mxu0 %v1508
  %v1738 = vpop.f32.mrf.mxu0
  %v1739 = vadd.f32 %v1650, %v1738
  %v1740 = vpop.f32.mrf.mxu0
  %v1741 = vadd.f32 %v1652, %v1740
  %1742 = vmatmul.bf16.gmra.mxu0 %v1512
  %v1743 = vpop.f32.mrf.mxu0
  %v1744 = vadd.f32 %v1655, %v1743
  %v1745 = vpop.f32.mrf.mxu0
  %v1746 = vadd.f32 %v1657, %v1745
  %1747 = vmatmul.bf16.gmra.mxu0 %v1516
  %v1748 = vpop.f32.mrf.mxu0
  %v1749 = vadd.f32 %v1660, %v1748
  %v1750 = vpop.f32.mrf.mxu0
  %v1751 = vadd.f32 %v1662, %v1750
  %1752 = vmatmul.bf16.gmra.mxu0 %v1520
  %v1753 = vpop.f32.mrf.mxu0
  %v1754 = vadd.f32 %v1665, %v1753
  %v1755 = vpop.f32.mrf.mxu0
  %v1756 = vadd.f32 %v1667, %v1755
  %1757 = vmatmul.bf16.gmra.mxu0 %v1524
  %v1758 = vpop.f32.mrf.mxu0
  %v1759 = vadd.f32 %v1670, %v1758
  %v1760 = vpop.f32.mrf.mxu0
  %v1761 = vadd.f32 %v1672, %v1760
  %1762 = vmatmul.bf16.gmra.mxu0 %v1528
  %v1763 = vpop.f32.mrf.mxu0
  %v1764 = vadd.f32 %v1675, %v1763
  %v1765 = vpop.f32.mrf.mxu0
  %v1766 = vadd.f32 %v1677, %v1765
  %1767 = vmatmul.bf16.gmra.mxu0 %v1532
  %v1768 = vpop.f32.mrf.mxu0
  %v1769 = vadd.f32 %v1680, %v1768
  %v1770 = vpop.f32.mrf.mxu0
  %v1771 = vadd.f32 %v1682, %v1770
  %1772 = vmatmul.bf16.gmra.mxu0 %v1536
  %v1773 = vpop.f32.mrf.mxu0
  %v1774 = vadd.f32 %v1685, %v1773
  %v1775 = vpop.f32.mrf.mxu0
  %v1776 = vadd.f32 %v1687, %v1775
  %1777 = vmatmul.bf16.gmra.mxu0 %v1540
  %v1778 = vpop.f32.mrf.mxu0
  %v1779 = vadd.f32 %v1690, %v1778
  %v1780 = vpop.f32.mrf.mxu0
  %v1781 = vadd.f32 %v1692, %v1780
  %1782 = vmatmul.bf16.gmra.mxu0 %v1544
  %v1783 = vpop.f32.mrf.mxu0
  %v1784 = vadd.f32 %v1695, %v1783
  %v1785 = vpop.f32.mrf.mxu0
  %v1786 = vadd.f32 %v1697, %v1785
  %1787 = vmatmul.bf16.gmra.mxu0 %v1548
  %v1788 = vpop.f32.mrf.mxu0
  %v1789 = vadd.f32 %v1700, %v1788
  %v1790 = vpop.f32.mrf.mxu0
  %v1791 = vadd.f32 %v1702, %v1790
  %1792 = vdwg.mxu0
  %1793 = vmatpush.bf16.msra.mxu0 %v1606
  %1794 = vmatpush.bf16.msra.mxu0 %v1605
  %1795 = vmatpush.bf16.msra.mxu0 %v1604
  %1796 = vmatpush.bf16.msra.mxu0 %v1603
  %1797 = vmatpush.bf16.msra.mxu0 %v1602
  %1798 = vmatpush.bf16.msra.mxu0 %v1601
  %1799 = vmatpush.bf16.msra.mxu0 %v1600
  %1800 = vmatpush.bf16.msra.mxu0 %v1599
  %1801 = vmatmul.bf16.gmra.mxu0 %v1489
  %v1802 = vpop.f32.mrf.mxu0
  %v1803 = vadd.f32 %v1714, %v1802
  %v1804 = vpop.f32.mrf.mxu0
  %v1805 = vadd.f32 %v1716, %v1804
  %1806 = vmatmul.bf16.gmra.mxu0 %v1493
  %v1807 = vpop.f32.mrf.mxu0
  %v1808 = vadd.f32 %v1719, %v1807
  %v1809 = vpop.f32.mrf.mxu0
  %v1810 = vadd.f32 %v1721, %v1809
  %1811 = vmatmul.bf16.gmra.mxu0 %v1497
  %v1812 = vpop.f32.mrf.mxu0
  %v1813 = vadd.f32 %v1724, %v1812
  %v1814 = vpop.f32.mrf.mxu0
  %v1815 = vadd.f32 %v1726, %v1814
  %1816 = vmatmul.bf16.gmra.mxu0 %v1501
  %v1817 = vpop.f32.mrf.mxu0
  %v1818 = vadd.f32 %v1729, %v1817
  %v1819 = vpop.f32.mrf.mxu0
  %v1820 = vadd.f32 %v1731, %v1819
  %1821 = vmatmul.bf16.gmra.mxu0 %v1505
  %v1822 = vpop.f32.mrf.mxu0
  %v1823 = vadd.f32 %v1734, %v1822
  %v1824 = vpop.f32.mrf.mxu0
  %v1825 = vadd.f32 %v1736, %v1824
  %1826 = vmatmul.bf16.gmra.mxu0 %v1509
  %v1827 = vpop.f32.mrf.mxu0
  %v1828 = vadd.f32 %v1739, %v1827
  %v1829 = vpop.f32.mrf.mxu0
  %v1830 = vadd.f32 %v1741, %v1829
  %1831 = vmatmul.bf16.gmra.mxu0 %v1513
  %v1832 = vpop.f32.mrf.mxu0
  %v1833 = vadd.f32 %v1744, %v1832
  %v1834 = vpop.f32.mrf.mxu0
  %v1835 = vadd.f32 %v1746, %v1834
  %1836 = vmatmul.bf16.gmra.mxu0 %v1517
  %v1837 = vpop.f32.mrf.mxu0
  %v1838 = vadd.f32 %v1749, %v1837
  %v1839 = vpop.f32.mrf.mxu0
  %v1840 = vadd.f32 %v1751, %v1839
  %1841 = vmatmul.bf16.gmra.mxu0 %v1521
  %v1842 = vpop.f32.mrf.mxu0
  %v1843 = vadd.f32 %v1754, %v1842
  %v1844 = vpop.f32.mrf.mxu0
  %v1845 = vadd.f32 %v1756, %v1844
  %1846 = vmatmul.bf16.gmra.mxu0 %v1525
  %v1847 = vpop.f32.mrf.mxu0
  %v1848 = vadd.f32 %v1759, %v1847
  %v1849 = vpop.f32.mrf.mxu0
  %v1850 = vadd.f32 %v1761, %v1849
  %1851 = vmatmul.bf16.gmra.mxu0 %v1529
  %v1852 = vpop.f32.mrf.mxu0
  %v1853 = vadd.f32 %v1764, %v1852
  %v1854 = vpop.f32.mrf.mxu0
  %v1855 = vadd.f32 %v1766, %v1854
  %1856 = vmatmul.bf16.gmra.mxu0 %v1533
  %v1857 = vpop.f32.mrf.mxu0
  %v1858 = vadd.f32 %v1769, %v1857
  %v1859 = vpop.f32.mrf.mxu0
  %v1860 = vadd.f32 %v1771, %v1859
  %1861 = vmatmul.bf16.gmra.mxu0 %v1537
  %v1862 = vpop.f32.mrf.mxu0
  %v1863 = vadd.f32 %v1774, %v1862
  %v1864 = vpop.f32.mrf.mxu0
  %v1865 = vadd.f32 %v1776, %v1864
  %1866 = vmatmul.bf16.gmra.mxu0 %v1541
  %v1867 = vpop.f32.mrf.mxu0
  %v1868 = vadd.f32 %v1779, %v1867
  %v1869 = vpop.f32.mrf.mxu0
  %v1870 = vadd.f32 %v1781, %v1869
  %1871 = vmatmul.bf16.gmra.mxu0 %v1545
  %v1872 = vpop.f32.mrf.mxu0
  %v1873 = vadd.f32 %v1784, %v1872
  %v1874 = vpop.f32.mrf.mxu0
  %v1875 = vadd.f32 %v1786, %v1874
  %1876 = vmatmul.bf16.gmra.mxu0 %v1549
  %v1877 = vpop.f32.mrf.mxu0
  %v1878 = vadd.f32 %v1789, %v1877
  %v1879 = vpop.f32.mrf.mxu0
  %v1880 = vadd.f32 %v1791, %v1879
  %1881 = vdwg.mxu0
  %1882 = vmatpush.bf16.msra.mxu0 %v1614
  %1883 = vmatpush.bf16.msra.mxu0 %v1613
  %1884 = vmatpush.bf16.msra.mxu0 %v1612
  %1885 = vmatpush.bf16.msra.mxu0 %v1611
  %1886 = vmatpush.bf16.msra.mxu0 %v1610
  %1887 = vmatpush.bf16.msra.mxu0 %v1609
  %1888 = vmatpush.bf16.msra.mxu0 %v1608
  %1889 = vmatpush.bf16.msra.mxu0 %v1607
  %1890 = vmatmul.bf16.gmra.mxu0 %v1490
  %v1891 = vpop.f32.mrf.mxu0
  %v1892 = vadd.f32 %v1803, %v1891
  %v1893 = vpop.f32.mrf.mxu0
  %v1894 = vadd.f32 %v1805, %v1893
  %1895 = vmatmul.bf16.gmra.mxu0 %v1494
  %v1896 = vpop.f32.mrf.mxu0
  %v1897 = vadd.f32 %v1808, %v1896
  %v1898 = vpop.f32.mrf.mxu0
  %v1899 = vadd.f32 %v1810, %v1898
  %1900 = vmatmul.bf16.gmra.mxu0 %v1498
  %v1901 = vpop.f32.mrf.mxu0
  %v1902 = vadd.f32 %v1813, %v1901
  %v1903 = vpop.f32.mrf.mxu0
  %v1904 = vadd.f32 %v1815, %v1903
  %1905 = vmatmul.bf16.gmra.mxu0 %v1502
  %v1906 = vpop.f32.mrf.mxu0
  %v1907 = vadd.f32 %v1818, %v1906
  %v1908 = vpop.f32.mrf.mxu0
  %v1909 = vadd.f32 %v1820, %v1908
  %1910 = vmatmul.bf16.gmra.mxu0 %v1506
  %v1911 = vpop.f32.mrf.mxu0
  %v1912 = vadd.f32 %v1823, %v1911
  %v1913 = vpop.f32.mrf.mxu0
  %v1914 = vadd.f32 %v1825, %v1913
  %1915 = vmatmul.bf16.gmra.mxu0 %v1510
  %v1916 = vpop.f32.mrf.mxu0
  %v1917 = vadd.f32 %v1828, %v1916
  %v1918 = vpop.f32.mrf.mxu0
  %v1919 = vadd.f32 %v1830, %v1918
  %1920 = vmatmul.bf16.gmra.mxu0 %v1514
  %v1921 = vpop.f32.mrf.mxu0
  %v1922 = vadd.f32 %v1833, %v1921
  %v1923 = vpop.f32.mrf.mxu0
  %v1924 = vadd.f32 %v1835, %v1923
  %1925 = vmatmul.bf16.gmra.mxu0 %v1518
  %v1926 = vpop.f32.mrf.mxu0
  %v1927 = vadd.f32 %v1838, %v1926
  %v1928 = vpop.f32.mrf.mxu0
  %v1929 = vadd.f32 %v1840, %v1928
  %1930 = vmatmul.bf16.gmra.mxu0 %v1522
  %v1931 = vpop.f32.mrf.mxu0
  %v1932 = vadd.f32 %v1843, %v1931
  %v1933 = vpop.f32.mrf.mxu0
  %v1934 = vadd.f32 %v1845, %v1933
  %1935 = vmatmul.bf16.gmra.mxu0 %v1526
  %v1936 = vpop.f32.mrf.mxu0
  %v1937 = vadd.f32 %v1848, %v1936
  %v1938 = vpop.f32.mrf.mxu0
  %v1939 = vadd.f32 %v1850, %v1938
  %1940 = vmatmul.bf16.gmra.mxu0 %v1530
  %v1941 = vpop.f32.mrf.mxu0
  %v1942 = vadd.f32 %v1853, %v1941
  %v1943 = vpop.f32.mrf.mxu0
  %v1944 = vadd.f32 %v1855, %v1943
  %1945 = vmatmul.bf16.gmra.mxu0 %v1534
  %v1946 = vpop.f32.mrf.mxu0
  %v1947 = vadd.f32 %v1858, %v1946
  %v1948 = vpop.f32.mrf.mxu0
  %v1949 = vadd.f32 %v1860, %v1948
  %1950 = vmatmul.bf16.gmra.mxu0 %v1538
  %v1951 = vpop.f32.mrf.mxu0
  %v1952 = vadd.f32 %v1863, %v1951
  %v1953 = vpop.f32.mrf.mxu0
  %v1954 = vadd.f32 %v1865, %v1953
  %1955 = vmatmul.bf16.gmra.mxu0 %v1542
  %v1956 = vpop.f32.mrf.mxu0
  %v1957 = vadd.f32 %v1868, %v1956
  %v1958 = vpop.f32.mrf.mxu0
  %v1959 = vadd.f32 %v1870, %v1958
  %1960 = vmatmul.bf16.gmra.mxu0 %v1546
  %v1961 = vpop.f32.mrf.mxu0
  %v1962 = vadd.f32 %v1873, %v1961
  %v1963 = vpop.f32.mrf.mxu0
  %v1964 = vadd.f32 %v1875, %v1963
  %1965 = vmatmul.bf16.gmra.mxu0 %v1550
  %v1966 = vpop.f32.mrf.mxu0
  %v1967 = vadd.f32 %v1878, %v1966
  %v1968 = vpop.f32.mrf.mxu0
  %v1969 = vadd.f32 %v1880, %v1968
  %1970 = vdwg.mxu0
  %v1971 = vadd.f32 %v1551, %v1892
  %v1972 = vadd.f32 %v1552, %v1894
  %v1973 = vadd.f32 %v1553, %v1897
  %v1974 = vadd.f32 %v1554, %v1899
  %v1975 = vadd.f32 %v1555, %v1902
  %v1976 = vadd.f32 %v1556, %v1904
  %v1977 = vadd.f32 %v1557, %v1907
  %v1978 = vadd.f32 %v1558, %v1909
  %v1979 = vadd.f32 %v1559, %v1912
  %v1980 = vadd.f32 %v1560, %v1914
  %v1981 = vadd.f32 %v1561, %v1917
  %v1982 = vadd.f32 %v1562, %v1919
  %v1983 = vadd.f32 %v1563, %v1922
  %v1984 = vadd.f32 %v1564, %v1924
  %v1985 = vadd.f32 %v1565, %v1927
  %v1986 = vadd.f32 %v1566, %v1929
  %v1987 = vadd.f32 %v1567, %v1932
  %v1988 = vadd.f32 %v1568, %v1934
  %v1989 = vadd.f32 %v1569, %v1937
  %v1990 = vadd.f32 %v1570, %v1939
  %v1991 = vadd.f32 %v1571, %v1942
  %v1992 = vadd.f32 %v1572, %v1944
  %v1993 = vadd.f32 %v1573, %v1947
  %v1994 = vadd.f32 %v1574, %v1949
  %v1995 = vadd.f32 %v1575, %v1952
  %v1996 = vadd.f32 %v1576, %v1954
  %v1997 = vadd.f32 %v1577, %v1957
  %v1998 = vadd.f32 %v1578, %v1959
  %v1999 = vadd.f32 %v1579, %v1962
  %v2000 = vadd.f32 %v1580, %v1964
  %v2001 = vadd.f32 %v1581, %v1967
  %v2002 = vadd.f32 %v1582, %v1969
  %2003 = vst.msk [vmem:[#allocation2] sm:$0xff] %vm149, %v1971
  %2004 = vst.msk [vmem:[#allocation2 + $0x8] sm:$0xff] %vm149, %v1972
  %2005 = vst.msk [vmem:[#allocation2 + $0x10] sm:$0xff] %vm149, %v1973
  %2006 = vst.msk [vmem:[#allocation2 + $0x18] sm:$0xff] %vm149, %v1974
  %2007 = vst.msk [vmem:[#allocation2 + $0x20] sm:$0xff] %vm149, %v1975
  %2008 = vst.msk [vmem:[#allocation2 + $0x28] sm:$0xff] %vm149, %v1976
  %2009 = vst.msk [vmem:[#allocation2 + $0x30] sm:$0xff] %vm149, %v1977
  %2010 = vst.msk [vmem:[#allocation2 + $0x38] sm:$0xff] %vm149, %v1978
  %2011 = vst.msk [vmem:[#allocation2 + $0x40] sm:$0xff] %vm149, %v1979
  %2012 = vst.msk [vmem:[#allocation2 + $0x48] sm:$0xff] %vm149, %v1980
  %2013 = vst.msk [vmem:[#allocation2 + $0x50] sm:$0xff] %vm149, %v1981
  %2014 = vst.msk [vmem:[#allocation2 + $0x58] sm:$0xff] %vm149, %v1982
  %2015 = vst.msk [vmem:[#allocation2 + $0x60] sm:$0xff] %vm149, %v1983
  %2016 = vst.msk [vmem:[#allocation2 + $0x68] sm:$0xff] %vm149, %v1984
  %2017 = vst.msk [vmem:[#allocation2 + $0x70] sm:$0xff] %vm149, %v1985
  %2018 = vst.msk [vmem:[#allocation2 + $0x78] sm:$0xff] %vm149, %v1986
  %2019 = vst.msk [vmem:[#allocation2 + $0x80] sm:$0xff] %vm149, %v1987
  %2020 = vst.msk [vmem:[#allocation2 + $0x88] sm:$0xff] %vm149, %v1988
  %2021 = vst.msk [vmem:[#allocation2 + $0x90] sm:$0xff] %vm149, %v1989
  %2022 = vst.msk [vmem:[#allocation2 + $0x98] sm:$0xff] %vm149, %v1990
  %2023 = vst.msk [vmem:[#allocation2 + $0xa0] sm:$0xff] %vm149, %v1991
  %2024 = vst.msk [vmem:[#allocation2 + $0xa8] sm:$0xff] %vm149, %v1992
  %2025 = vst.msk [vmem:[#allocation2 + $0xb0] sm:$0xff] %vm149, %v1993
  %2026 = vst.msk [vmem:[#allocation2 + $0xb8] sm:$0xff] %vm149, %v1994
  %2027 = vst.msk [vmem:[#allocation2 + $0xc0] sm:$0xff] %vm149, %v1995
  %2028 = vst.msk [vmem:[#allocation2 + $0xc8] sm:$0xff] %vm149, %v1996
  %2029 = vst.msk [vmem:[#allocation2 + $0xd0] sm:$0xff] %vm149, %v1997
  %2030 = vst.msk [vmem:[#allocation2 + $0xd8] sm:$0xff] %vm149, %v1998
  %2031 = vst.msk [vmem:[#allocation2 + $0xe0] sm:$0xff] %vm149, %v1999
  %2032 = vst.msk [vmem:[#allocation2 + $0xe8] sm:$0xff] %vm149, %v2000
  %2033 = vst.msk [vmem:[#allocation2 + $0xf0] sm:$0xff] %vm149, %v2001
  %2034 = vst.msk [vmem:[#allocation2 + $0xf8] sm:$0xff] %vm149, %v2002
  // Predicated region
  $region54: #{node_model.1} parent=0 // pred_check
    %p2035 = pneg %p41
  $region55: #{node_model.1} parent=0 // pred_check_branch
    %2037 = sbr.rel (%p2035) target = $region57
  $region56: #{node_model.1} parent=0 // pred_region
    %v2038 = vld [vmem:[#allocation2] sm:$0xff]
    %v2039 = vld [vmem:[#allocation2 + $0x8] sm:$0xff]
    %v2040 = vld [vmem:[#allocation2 + $0x10] sm:$0xff]
    %v2041 = vld [vmem:[#allocation2 + $0x18] sm:$0xff]
    %v2042 = vld [vmem:[#allocation2 + $0x20] sm:$0xff]
    %v2043 = vld [vmem:[#allocation2 + $0x28] sm:$0xff]
    %v2044 = vld [vmem:[#allocation2 + $0x30] sm:$0xff]
    %v2045 = vld [vmem:[#allocation2 + $0x38] sm:$0xff]
    %v2046 = vld [vmem:[#allocation2 + $0x40] sm:$0xff]
    %v2047 = vld [vmem:[#allocation2 + $0x48] sm:$0xff]
    %v2048 = vld [vmem:[#allocation2 + $0x50] sm:$0xff]
    %v2049 = vld [vmem:[#allocation2 + $0x58] sm:$0xff]
    %v2050 = vld [vmem:[#allocation2 + $0x60] sm:$0xff]
    %v2051 = vld [vmem:[#allocation2 + $0x68] sm:$0xff]
    %v2052 = vld [vmem:[#allocation2 + $0x70] sm:$0xff]
    %v2053 = vld [vmem:[#allocation2 + $0x78] sm:$0xff]
    %v2054 = vld [vmem:[#allocation2 + $0x80] sm:$0xff]
    %v2055 = vld [vmem:[#allocation2 + $0x88] sm:$0xff]
    %v2056 = vld [vmem:[#allocation2 + $0x90] sm:$0xff]
    %v2057 = vld [vmem:[#allocation2 + $0x98] sm:$0xff]
    %v2058 = vld [vmem:[#allocation2 + $0xa0] sm:$0xff]
    %v2059 = vld [vmem:[#allocation2 + $0xa8] sm:$0xff]
    %v2060 = vld [vmem:[#allocation2 + $0xb0] sm:$0xff]
    %v2061 = vld [vmem:[#allocation2 + $0xb8] sm:$0xff]
    %v2062 = vld [vmem:[#allocation2 + $0xc0] sm:$0xff]
    %v2063 = vld [vmem:[#allocation2 + $0xc8] sm:$0xff]
    %v2064 = vld [vmem:[#allocation2 + $0xd0] sm:$0xff]
    %v2065 = vld [vmem:[#allocation2 + $0xd8] sm:$0xff]
    %v2066 = vld [vmem:[#allocation2 + $0xe0] sm:$0xff]
    %v2067 = vld [vmem:[#allocation2 + $0xe8] sm:$0xff]
    %v2068 = vld [vmem:[#allocation2 + $0xf0] sm:$0xff]
    %v2069 = vld [vmem:[#allocation2 + $0xf8] sm:$0xff]
    %v2070 = vmax.f32 %v2038, 1.0
    %v2071 = vmax.f32 %v2039, 1.0
    %v2072 = vmax.f32 %v2040, 1.0
    %v2073 = vmax.f32 %v2041, 1.0
    %v2074 = vmax.f32 %v2042, 1.0
    %v2075 = vmax.f32 %v2043, 1.0
    %v2076 = vmax.f32 %v2044, 1.0
    %v2077 = vmax.f32 %v2045, 1.0
    %v2078 = vmax.f32 %v2046, 1.0
    %v2079 = vmax.f32 %v2047, 1.0
    %v2080 = vmax.f32 %v2048, 1.0
    %v2081 = vmax.f32 %v2049, 1.0
    %v2082 = vmax.f32 %v2050, 1.0
    %v2083 = vmax.f32 %v2051, 1.0
    %v2084 = vmax.f32 %v2052, 1.0
    %v2085 = vmax.f32 %v2053, 1.0
    %v2086 = vmax.f32 %v2054, 1.0
    %v2087 = vmax.f32 %v2055, 1.0
    %v2088 = vmax.f32 %v2056, 1.0
    %v2089 = vmax.f32 %v2057, 1.0
    %v2090 = vmax.f32 %v2058, 1.0
    %v2091 = vmax.f32 %v2059, 1.0
    %v2092 = vmax.f32 %v2060, 1.0
    %v2093 = vmax.f32 %v2061, 1.0
    %v2094 = vmax.f32 %v2062, 1.0
    %v2095 = vmax.f32 %v2063, 1.0
    %v2096 = vmax.f32 %v2064, 1.0
    %v2097 = vmax.f32 %v2065, 1.0
    %v2098 = vmax.f32 %v2066, 1.0
    %v2099 = vmax.f32 %v2067, 1.0
    %v2100 = vmax.f32 %v2068, 1.0
    %v2101 = vmax.f32 %v2069, 1.0
    %2103 = vset.pattern.permute.xlu0 19
    %2104 = vperm.xlu0 %2103, %v2070
    %v2105 = vpop.permute.xlu0 %2104
    %2108 = vset.pattern.permute.xlu0 19
    %2109 = vperm.xlu0 %2108, %v2071
    %v2110 = vpop.permute.xlu0 %2109
    %2113 = vset.pattern.permute.xlu0 19
    %2114 = vperm.xlu0 %2113, %v2072
    %v2115 = vpop.permute.xlu0 %2114
    %2118 = vset.pattern.permute.xlu0 19
    %2119 = vperm.xlu0 %2118, %v2073
    %v2120 = vpop.permute.xlu0 %2119
    %2123 = vset.pattern.permute.xlu0 19
    %2124 = vperm.xlu0 %2123, %v2074
    %v2125 = vpop.permute.xlu0 %2124
    %2128 = vset.pattern.permute.xlu0 19
    %2129 = vperm.xlu0 %2128, %v2075
    %v2130 = vpop.permute.xlu0 %2129
    %2133 = vset.pattern.permute.xlu0 19
    %2134 = vperm.xlu0 %2133, %v2076
    %v2135 = vpop.permute.xlu0 %2134
    %2138 = vset.pattern.permute.xlu0 19
    %2139 = vperm.xlu0 %2138, %v2077
    %v2140 = vpop.permute.xlu0 %2139
    %2143 = vset.pattern.permute.xlu0 19
    %2144 = vperm.xlu0 %2143, %v2078
    %v2145 = vpop.permute.xlu0 %2144
    %2148 = vset.pattern.permute.xlu0 19
    %2149 = vperm.xlu0 %2148, %v2079
    %v2150 = vpop.permute.xlu0 %2149
    %2153 = vset.pattern.permute.xlu0 19
    %2154 = vperm.xlu0 %2153, %v2080
    %v2155 = vpop.permute.xlu0 %2154
    %2158 = vset.pattern.permute.xlu0 19
    %2159 = vperm.xlu0 %2158, %v2081
    %v2160 = vpop.permute.xlu0 %2159
    %2163 = vset.pattern.permute.xlu0 19
    %2164 = vperm.xlu0 %2163, %v2082
    %v2165 = vpop.permute.xlu0 %2164
    %2168 = vset.pattern.permute.xlu0 19
    %2169 = vperm.xlu0 %2168, %v2083
    %v2170 = vpop.permute.xlu0 %2169
    %2173 = vset.pattern.permute.xlu0 19
    %2174 = vperm.xlu0 %2173, %v2084
    %v2175 = vpop.permute.xlu0 %2174
    %2178 = vset.pattern.permute.xlu0 19
    %2179 = vperm.xlu0 %2178, %v2085
    %v2180 = vpop.permute.xlu0 %2179
    %2183 = vset.pattern.permute.xlu0 19
    %2184 = vperm.xlu0 %2183, %v2086
    %v2185 = vpop.permute.xlu0 %2184
    %2188 = vset.pattern.permute.xlu0 19
    %2189 = vperm.xlu0 %2188, %v2087
    %v2190 = vpop.permute.xlu0 %2189
    %2193 = vset.pattern.permute.xlu0 19
    %2194 = vperm.xlu0 %2193, %v2088
    %v2195 = vpop.permute.xlu0 %2194
    %2198 = vset.pattern.permute.xlu0 19
    %2199 = vperm.xlu0 %2198, %v2089
    %v2200 = vpop.permute.xlu0 %2199
    %2203 = vset.pattern.permute.xlu0 19
    %2204 = vperm.xlu0 %2203, %v2090
    %v2205 = vpop.permute.xlu0 %2204
    %2208 = vset.pattern.permute.xlu0 19
    %2209 = vperm.xlu0 %2208, %v2091
    %v2210 = vpop.permute.xlu0 %2209
    %2213 = vset.pattern.permute.xlu0 19
    %2214 = vperm.xlu0 %2213, %v2092
    %v2215 = vpop.permute.xlu0 %2214
    %2218 = vset.pattern.permute.xlu0 19
    %2219 = vperm.xlu0 %2218, %v2093
    %v2220 = vpop.permute.xlu0 %2219
    %2223 = vset.pattern.permute.xlu0 19
    %2224 = vperm.xlu0 %2223, %v2094
    %v2225 = vpop.permute.xlu0 %2224
    %2228 = vset.pattern.permute.xlu0 19
    %2229 = vperm.xlu0 %2228, %v2095
    %v2230 = vpop.permute.xlu0 %2229
    %2233 = vset.pattern.permute.xlu0 19
    %2234 = vperm.xlu0 %2233, %v2096
    %v2235 = vpop.permute.xlu0 %2234
    %2238 = vset.pattern.permute.xlu0 19
    %2239 = vperm.xlu0 %2238, %v2097
    %v2240 = vpop.permute.xlu0 %2239
    %2243 = vset.pattern.permute.xlu0 19
    %2244 = vperm.xlu0 %2243, %v2098
    %v2245 = vpop.permute.xlu0 %2244
    %2248 = vset.pattern.permute.xlu0 19
    %2249 = vperm.xlu0 %2248, %v2099
    %v2250 = vpop.permute.xlu0 %2249
    %2253 = vset.pattern.permute.xlu0 19
    %2254 = vperm.xlu0 %2253, %v2100
    %v2255 = vpop.permute.xlu0 %2254
    %2258 = vset.pattern.permute.xlu0 19
    %2259 = vperm.xlu0 %2258, %v2101
    %v2260 = vpop.permute.xlu0 %2259
    %v2262 = vrcp.pop %v2105
    %v2263 = vmul.f32 %v2105, %v2262
    %v2264 = vsub.f32 1.0, %v2263
    %v2265 = vmul.f32 %v2262, %v2264
    %v2266 = vadd.f32 %v2262, %v2265
    %vm2267 = vweird.f32 %v2105
    %vm2268 = vweird.f32 %v2262
    %vm2269 = vmor %vm2267, %vm2268
    %v2270 = vsel %vm2269, %v2262, %v2266
    %v2271 = vand.u32 2147483647, %v2105
    %vm2272 = vcmp.eq.f32.partialorder %v2271, 8.507059e+37
    %v2273 = vand.u32 %v2105, 2147483648
    %v2274 = vor.u32 1.1754944e-38, %v2273
    %v2275 = vsel %vm2272, %v2274, %v2270
    %v2276 = vmul.f32 %v2038, %v2275
    %v2277 = vrcp.pop %v2110
    %v2278 = vmul.f32 %v2110, %v2277
    %v2279 = vsub.f32 1.0, %v2278
    %v2280 = vmul.f32 %v2277, %v2279
    %v2281 = vadd.f32 %v2277, %v2280
    %vm2282 = vweird.f32 %v2110
    %vm2283 = vweird.f32 %v2277
    %vm2284 = vmor %vm2282, %vm2283
    %v2285 = vsel %vm2284, %v2277, %v2281
    %v2286 = vand.u32 2147483647, %v2110
    %vm2287 = vcmp.eq.f32.partialorder %v2286, 8.507059e+37
    %v2288 = vand.u32 %v2110, 2147483648
    %v2289 = vor.u32 1.1754944e-38, %v2288
    %v2290 = vsel %vm2287, %v2289, %v2285
    %v2291 = vmul.f32 %v2039, %v2290
    %v2292 = vrcp.pop %v2115
    %v2293 = vmul.f32 %v2115, %v2292
    %v2294 = vsub.f32 1.0, %v2293
    %v2295 = vmul.f32 %v2292, %v2294
    %v2296 = vadd.f32 %v2292, %v2295
    %vm2297 = vweird.f32 %v2115
    %vm2298 = vweird.f32 %v2292
    %vm2299 = vmor %vm2297, %vm2298
    %v2300 = vsel %vm2299, %v2292, %v2296
    %v2301 = vand.u32 2147483647, %v2115
    %vm2302 = vcmp.eq.f32.partialorder %v2301, 8.507059e+37
    %v2303 = vand.u32 %v2115, 2147483648
    %v2304 = vor.u32 1.1754944e-38, %v2303
    %v2305 = vsel %vm2302, %v2304, %v2300
    %v2306 = vmul.f32 %v2040, %v2305
    %v2307 = vrcp.pop %v2120
    %v2308 = vmul.f32 %v2120, %v2307
    %v2309 = vsub.f32 1.0, %v2308
    %v2310 = vmul.f32 %v2307, %v2309
    %v2311 = vadd.f32 %v2307, %v2310
    %vm2312 = vweird.f32 %v2120
    %vm2313 = vweird.f32 %v2307
    %vm2314 = vmor %vm2312, %vm2313
    %v2315 = vsel %vm2314, %v2307, %v2311
    %v2316 = vand.u32 2147483647, %v2120
    %vm2317 = vcmp.eq.f32.partialorder %v2316, 8.507059e+37
    %v2318 = vand.u32 %v2120, 2147483648
    %v2319 = vor.u32 1.1754944e-38, %v2318
    %v2320 = vsel %vm2317, %v2319, %v2315
    %v2321 = vmul.f32 %v2041, %v2320
    %v2322 = vrcp.pop %v2125
    %v2323 = vmul.f32 %v2125, %v2322
    %v2324 = vsub.f32 1.0, %v2323
    %v2325 = vmul.f32 %v2322, %v2324
    %v2326 = vadd.f32 %v2322, %v2325
    %vm2327 = vweird.f32 %v2125
    %vm2328 = vweird.f32 %v2322
    %vm2329 = vmor %vm2327, %vm2328
    %v2330 = vsel %vm2329, %v2322, %v2326
    %v2331 = vand.u32 2147483647, %v2125
    %vm2332 = vcmp.eq.f32.partialorder %v2331, 8.507059e+37
    %v2333 = vand.u32 %v2125, 2147483648
    %v2334 = vor.u32 1.1754944e-38, %v2333
    %v2335 = vsel %vm2332, %v2334, %v2330
    %v2336 = vmul.f32 %v2042, %v2335
    %v2337 = vrcp.pop %v2130
    %v2338 = vmul.f32 %v2130, %v2337
    %v2339 = vsub.f32 1.0, %v2338
    %v2340 = vmul.f32 %v2337, %v2339
    %v2341 = vadd.f32 %v2337, %v2340
    %vm2342 = vweird.f32 %v2130
    %vm2343 = vweird.f32 %v2337
    %vm2344 = vmor %vm2342, %vm2343
    %v2345 = vsel %vm2344, %v2337, %v2341
    %v2346 = vand.u32 2147483647, %v2130
    %vm2347 = vcmp.eq.f32.partialorder %v2346, 8.507059e+37
    %v2348 = vand.u32 %v2130, 2147483648
    %v2349 = vor.u32 1.1754944e-38, %v2348
    %v2350 = vsel %vm2347, %v2349, %v2345
    %v2351 = vmul.f32 %v2043, %v2350
    %v2352 = vrcp.pop %v2135
    %v2353 = vmul.f32 %v2135, %v2352
    %v2354 = vsub.f32 1.0, %v2353
    %v2355 = vmul.f32 %v2352, %v2354
    %v2356 = vadd.f32 %v2352, %v2355
    %vm2357 = vweird.f32 %v2135
    %vm2358 = vweird.f32 %v2352
    %vm2359 = vmor %vm2357, %vm2358
    %v2360 = vsel %vm2359, %v2352, %v2356
    %v2361 = vand.u32 2147483647, %v2135
    %vm2362 = vcmp.eq.f32.partialorder %v2361, 8.507059e+37
    %v2363 = vand.u32 %v2135, 2147483648
    %v2364 = vor.u32 1.1754944e-38, %v2363
    %v2365 = vsel %vm2362, %v2364, %v2360
    %v2366 = vmul.f32 %v2044, %v2365
    %v2367 = vrcp.pop %v2140
    %v2368 = vmul.f32 %v2140, %v2367
    %v2369 = vsub.f32 1.0, %v2368
    %v2370 = vmul.f32 %v2367, %v2369
    %v2371 = vadd.f32 %v2367, %v2370
    %vm2372 = vweird.f32 %v2140
    %vm2373 = vweird.f32 %v2367
    %vm2374 = vmor %vm2372, %vm2373
    %v2375 = vsel %vm2374, %v2367, %v2371
    %v2376 = vand.u32 2147483647, %v2140
    %vm2377 = vcmp.eq.f32.partialorder %v2376, 8.507059e+37
    %v2378 = vand.u32 %v2140, 2147483648
    %v2379 = vor.u32 1.1754944e-38, %v2378
    %v2380 = vsel %vm2377, %v2379, %v2375
    %v2381 = vmul.f32 %v2045, %v2380
    %v2382 = vrcp.pop %v2145
    %v2383 = vmul.f32 %v2145, %v2382
    %v2384 = vsub.f32 1.0, %v2383
    %v2385 = vmul.f32 %v2382, %v2384
    %v2386 = vadd.f32 %v2382, %v2385
    %vm2387 = vweird.f32 %v2145
    %vm2388 = vweird.f32 %v2382
    %vm2389 = vmor %vm2387, %vm2388
    %v2390 = vsel %vm2389, %v2382, %v2386
    %v2391 = vand.u32 2147483647, %v2145
    %vm2392 = vcmp.eq.f32.partialorder %v2391, 8.507059e+37
    %v2393 = vand.u32 %v2145, 2147483648
    %v2394 = vor.u32 1.1754944e-38, %v2393
    %v2395 = vsel %vm2392, %v2394, %v2390
    %v2396 = vmul.f32 %v2046, %v2395
    %v2397 = vrcp.pop %v2150
    %v2398 = vmul.f32 %v2150, %v2397
    %v2399 = vsub.f32 1.0, %v2398
    %v2400 = vmul.f32 %v2397, %v2399
    %v2401 = vadd.f32 %v2397, %v2400
    %vm2402 = vweird.f32 %v2150
    %vm2403 = vweird.f32 %v2397
    %vm2404 = vmor %vm2402, %vm2403
    %v2405 = vsel %vm2404, %v2397, %v2401
    %v2406 = vand.u32 2147483647, %v2150
    %vm2407 = vcmp.eq.f32.partialorder %v2406, 8.507059e+37
    %v2408 = vand.u32 %v2150, 2147483648
    %v2409 = vor.u32 1.1754944e-38, %v2408
    %v2410 = vsel %vm2407, %v2409, %v2405
    %v2411 = vmul.f32 %v2047, %v2410
    %v2412 = vrcp.pop %v2155
    %v2413 = vmul.f32 %v2155, %v2412
    %v2414 = vsub.f32 1.0, %v2413
    %v2415 = vmul.f32 %v2412, %v2414
    %v2416 = vadd.f32 %v2412, %v2415
    %vm2417 = vweird.f32 %v2155
    %vm2418 = vweird.f32 %v2412
    %vm2419 = vmor %vm2417, %vm2418
    %v2420 = vsel %vm2419, %v2412, %v2416
    %v2421 = vand.u32 2147483647, %v2155
    %vm2422 = vcmp.eq.f32.partialorder %v2421, 8.507059e+37
    %v2423 = vand.u32 %v2155, 2147483648
    %v2424 = vor.u32 1.1754944e-38, %v2423
    %v2425 = vsel %vm2422, %v2424, %v2420
    %v2426 = vmul.f32 %v2048, %v2425
    %v2427 = vrcp.pop %v2160
    %v2428 = vmul.f32 %v2160, %v2427
    %v2429 = vsub.f32 1.0, %v2428
    %v2430 = vmul.f32 %v2427, %v2429
    %v2431 = vadd.f32 %v2427, %v2430
    %vm2432 = vweird.f32 %v2160
    %vm2433 = vweird.f32 %v2427
    %vm2434 = vmor %vm2432, %vm2433
    %v2435 = vsel %vm2434, %v2427, %v2431
    %v2436 = vand.u32 2147483647, %v2160
    %vm2437 = vcmp.eq.f32.partialorder %v2436, 8.507059e+37
    %v2438 = vand.u32 %v2160, 2147483648
    %v2439 = vor.u32 1.1754944e-38, %v2438
    %v2440 = vsel %vm2437, %v2439, %v2435
    %v2441 = vmul.f32 %v2049, %v2440
    %v2442 = vrcp.pop %v2165
    %v2443 = vmul.f32 %v2165, %v2442
    %v2444 = vsub.f32 1.0, %v2443
    %v2445 = vmul.f32 %v2442, %v2444
    %v2446 = vadd.f32 %v2442, %v2445
    %vm2447 = vweird.f32 %v2165
    %vm2448 = vweird.f32 %v2442
    %vm2449 = vmor %vm2447, %vm2448
    %v2450 = vsel %vm2449, %v2442, %v2446
    %v2451 = vand.u32 2147483647, %v2165
    %vm2452 = vcmp.eq.f32.partialorder %v2451, 8.507059e+37
    %v2453 = vand.u32 %v2165, 2147483648
    %v2454 = vor.u32 1.1754944e-38, %v2453
    %v2455 = vsel %vm2452, %v2454, %v2450
    %v2456 = vmul.f32 %v2050, %v2455
    %v2457 = vrcp.pop %v2170
    %v2458 = vmul.f32 %v2170, %v2457
    %v2459 = vsub.f32 1.0, %v2458
    %v2460 = vmul.f32 %v2457, %v2459
    %v2461 = vadd.f32 %v2457, %v2460
    %vm2462 = vweird.f32 %v2170
    %vm2463 = vweird.f32 %v2457
    %vm2464 = vmor %vm2462, %vm2463
    %v2465 = vsel %vm2464, %v2457, %v2461
    %v2466 = vand.u32 2147483647, %v2170
    %vm2467 = vcmp.eq.f32.partialorder %v2466, 8.507059e+37
    %v2468 = vand.u32 %v2170, 2147483648
    %v2469 = vor.u32 1.1754944e-38, %v2468
    %v2470 = vsel %vm2467, %v2469, %v2465
    %v2471 = vmul.f32 %v2051, %v2470
    %v2472 = vrcp.pop %v2175
    %v2473 = vmul.f32 %v2175, %v2472
    %v2474 = vsub.f32 1.0, %v2473
    %v2475 = vmul.f32 %v2472, %v2474
    %v2476 = vadd.f32 %v2472, %v2475
    %vm2477 = vweird.f32 %v2175
    %vm2478 = vweird.f32 %v2472
    %vm2479 = vmor %vm2477, %vm2478
    %v2480 = vsel %vm2479, %v2472, %v2476
    %v2481 = vand.u32 2147483647, %v2175
    %vm2482 = vcmp.eq.f32.partialorder %v2481, 8.507059e+37
    %v2483 = vand.u32 %v2175, 2147483648
    %v2484 = vor.u32 1.1754944e-38, %v2483
    %v2485 = vsel %vm2482, %v2484, %v2480
    %v2486 = vmul.f32 %v2052, %v2485
    %v2487 = vrcp.pop %v2180
    %v2488 = vmul.f32 %v2180, %v2487
    %v2489 = vsub.f32 1.0, %v2488
    %v2490 = vmul.f32 %v2487, %v2489
    %v2491 = vadd.f32 %v2487, %v2490
    %vm2492 = vweird.f32 %v2180
    %vm2493 = vweird.f32 %v2487
    %vm2494 = vmor %vm2492, %vm2493
    %v2495 = vsel %vm2494, %v2487, %v2491
    %v2496 = vand.u32 2147483647, %v2180
    %vm2497 = vcmp.eq.f32.partialorder %v2496, 8.507059e+37
    %v2498 = vand.u32 %v2180, 2147483648
    %v2499 = vor.u32 1.1754944e-38, %v2498
    %v2500 = vsel %vm2497, %v2499, %v2495
    %v2501 = vmul.f32 %v2053, %v2500
    %v2502 = vrcp.pop %v2185
    %v2503 = vmul.f32 %v2185, %v2502
    %v2504 = vsub.f32 1.0, %v2503
    %v2505 = vmul.f32 %v2502, %v2504
    %v2506 = vadd.f32 %v2502, %v2505
    %vm2507 = vweird.f32 %v2185
    %vm2508 = vweird.f32 %v2502
    %vm2509 = vmor %vm2507, %vm2508
    %v2510 = vsel %vm2509, %v2502, %v2506
    %v2511 = vand.u32 2147483647, %v2185
    %vm2512 = vcmp.eq.f32.partialorder %v2511, 8.507059e+37
    %v2513 = vand.u32 %v2185, 2147483648
    %v2514 = vor.u32 1.1754944e-38, %v2513
    %v2515 = vsel %vm2512, %v2514, %v2510
    %v2516 = vmul.f32 %v2054, %v2515
    %v2517 = vrcp.pop %v2190
    %v2518 = vmul.f32 %v2190, %v2517
    %v2519 = vsub.f32 1.0, %v2518
    %v2520 = vmul.f32 %v2517, %v2519
    %v2521 = vadd.f32 %v2517, %v2520
    %vm2522 = vweird.f32 %v2190
    %vm2523 = vweird.f32 %v2517
    %vm2524 = vmor %vm2522, %vm2523
    %v2525 = vsel %vm2524, %v2517, %v2521
    %v2526 = vand.u32 2147483647, %v2190
    %vm2527 = vcmp.eq.f32.partialorder %v2526, 8.507059e+37
    %v2528 = vand.u32 %v2190, 2147483648
    %v2529 = vor.u32 1.1754944e-38, %v2528
    %v2530 = vsel %vm2527, %v2529, %v2525
    %v2531 = vmul.f32 %v2055, %v2530
    %v2532 = vrcp.pop %v2195
    %v2533 = vmul.f32 %v2195, %v2532
    %v2534 = vsub.f32 1.0, %v2533
    %v2535 = vmul.f32 %v2532, %v2534
    %v2536 = vadd.f32 %v2532, %v2535
    %vm2537 = vweird.f32 %v2195
    %vm2538 = vweird.f32 %v2532
    %vm2539 = vmor %vm2537, %vm2538
    %v2540 = vsel %vm2539, %v2532, %v2536
    %v2541 = vand.u32 2147483647, %v2195
    %vm2542 = vcmp.eq.f32.partialorder %v2541, 8.507059e+37
    %v2543 = vand.u32 %v2195, 2147483648
    %v2544 = vor.u32 1.1754944e-38, %v2543
    %v2545 = vsel %vm2542, %v2544, %v2540
    %v2546 = vmul.f32 %v2056, %v2545
    %v2547 = vrcp.pop %v2200
    %v2548 = vmul.f32 %v2200, %v2547
    %v2549 = vsub.f32 1.0, %v2548
    %v2550 = vmul.f32 %v2547, %v2549
    %v2551 = vadd.f32 %v2547, %v2550
    %vm2552 = vweird.f32 %v2200
    %vm2553 = vweird.f32 %v2547
    %vm2554 = vmor %vm2552, %vm2553
    %v2555 = vsel %vm2554, %v2547, %v2551
    %v2556 = vand.u32 2147483647, %v2200
    %vm2557 = vcmp.eq.f32.partialorder %v2556, 8.507059e+37
    %v2558 = vand.u32 %v2200, 2147483648
    %v2559 = vor.u32 1.1754944e-38, %v2558
    %v2560 = vsel %vm2557, %v2559, %v2555
    %v2561 = vmul.f32 %v2057, %v2560
    %v2562 = vrcp.pop %v2205
    %v2563 = vmul.f32 %v2205, %v2562
    %v2564 = vsub.f32 1.0, %v2563
    %v2565 = vmul.f32 %v2562, %v2564
    %v2566 = vadd.f32 %v2562, %v2565
    %vm2567 = vweird.f32 %v2205
    %vm2568 = vweird.f32 %v2562
    %vm2569 = vmor %vm2567, %vm2568
    %v2570 = vsel %vm2569, %v2562, %v2566
    %v2571 = vand.u32 2147483647, %v2205
    %vm2572 = vcmp.eq.f32.partialorder %v2571, 8.507059e+37
    %v2573 = vand.u32 %v2205, 2147483648
    %v2574 = vor.u32 1.1754944e-38, %v2573
    %v2575 = vsel %vm2572, %v2574, %v2570
    %v2576 = vmul.f32 %v2058, %v2575
    %v2577 = vrcp.pop %v2210
    %v2578 = vmul.f32 %v2210, %v2577
    %v2579 = vsub.f32 1.0, %v2578
    %v2580 = vmul.f32 %v2577, %v2579
    %v2581 = vadd.f32 %v2577, %v2580
    %vm2582 = vweird.f32 %v2210
    %vm2583 = vweird.f32 %v2577
    %vm2584 = vmor %vm2582, %vm2583
    %v2585 = vsel %vm2584, %v2577, %v2581
    %v2586 = vand.u32 2147483647, %v2210
    %vm2587 = vcmp.eq.f32.partialorder %v2586, 8.507059e+37
    %v2588 = vand.u32 %v2210, 2147483648
    %v2589 = vor.u32 1.1754944e-38, %v2588
    %v2590 = vsel %vm2587, %v2589, %v2585
    %v2591 = vmul.f32 %v2059, %v2590
    %v2592 = vrcp.pop %v2215
    %v2593 = vmul.f32 %v2215, %v2592
    %v2594 = vsub.f32 1.0, %v2593
    %v2595 = vmul.f32 %v2592, %v2594
    %v2596 = vadd.f32 %v2592, %v2595
    %vm2597 = vweird.f32 %v2215
    %vm2598 = vweird.f32 %v2592
    %vm2599 = vmor %vm2597, %vm2598
    %v2600 = vsel %vm2599, %v2592, %v2596
    %v2601 = vand.u32 2147483647, %v2215
    %vm2602 = vcmp.eq.f32.partialorder %v2601, 8.507059e+37
    %v2603 = vand.u32 %v2215, 2147483648
    %v2604 = vor.u32 1.1754944e-38, %v2603
    %v2605 = vsel %vm2602, %v2604, %v2600
    %v2606 = vmul.f32 %v2060, %v2605
    %v2607 = vrcp.pop %v2220
    %v2608 = vmul.f32 %v2220, %v2607
    %v2609 = vsub.f32 1.0, %v2608
    %v2610 = vmul.f32 %v2607, %v2609
    %v2611 = vadd.f32 %v2607, %v2610
    %vm2612 = vweird.f32 %v2220
    %vm2613 = vweird.f32 %v2607
    %vm2614 = vmor %vm2612, %vm2613
    %v2615 = vsel %vm2614, %v2607, %v2611
    %v2616 = vand.u32 2147483647, %v2220
    %vm2617 = vcmp.eq.f32.partialorder %v2616, 8.507059e+37
    %v2618 = vand.u32 %v2220, 2147483648
    %v2619 = vor.u32 1.1754944e-38, %v2618
    %v2620 = vsel %vm2617, %v2619, %v2615
    %v2621 = vmul.f32 %v2061, %v2620
    %v2622 = vrcp.pop %v2225
    %v2623 = vmul.f32 %v2225, %v2622
    %v2624 = vsub.f32 1.0, %v2623
    %v2625 = vmul.f32 %v2622, %v2624
    %v2626 = vadd.f32 %v2622, %v2625
    %vm2627 = vweird.f32 %v2225
    %vm2628 = vweird.f32 %v2622
    %vm2629 = vmor %vm2627, %vm2628
    %v2630 = vsel %vm2629, %v2622, %v2626
    %v2631 = vand.u32 2147483647, %v2225
    %vm2632 = vcmp.eq.f32.partialorder %v2631, 8.507059e+37
    %v2633 = vand.u32 %v2225, 2147483648
    %v2634 = vor.u32 1.1754944e-38, %v2633
    %v2635 = vsel %vm2632, %v2634, %v2630
    %v2636 = vmul.f32 %v2062, %v2635
    %v2637 = vrcp.pop %v2230
    %v2638 = vmul.f32 %v2230, %v2637
    %v2639 = vsub.f32 1.0, %v2638
    %v2640 = vmul.f32 %v2637, %v2639
    %v2641 = vadd.f32 %v2637, %v2640
    %vm2642 = vweird.f32 %v2230
    %vm2643 = vweird.f32 %v2637
    %vm2644 = vmor %vm2642, %vm2643
    %v2645 = vsel %vm2644, %v2637, %v2641
    %v2646 = vand.u32 2147483647, %v2230
    %vm2647 = vcmp.eq.f32.partialorder %v2646, 8.507059e+37
    %v2648 = vand.u32 %v2230, 2147483648
    %v2649 = vor.u32 1.1754944e-38, %v2648
    %v2650 = vsel %vm2647, %v2649, %v2645
    %v2651 = vmul.f32 %v2063, %v2650
    %v2652 = vrcp.pop %v2235
    %v2653 = vmul.f32 %v2235, %v2652
    %v2654 = vsub.f32 1.0, %v2653
    %v2655 = vmul.f32 %v2652, %v2654
    %v2656 = vadd.f32 %v2652, %v2655
    %vm2657 = vweird.f32 %v2235
    %vm2658 = vweird.f32 %v2652
    %vm2659 = vmor %vm2657, %vm2658
    %v2660 = vsel %vm2659, %v2652, %v2656
    %v2661 = vand.u32 2147483647, %v2235
    %vm2662 = vcmp.eq.f32.partialorder %v2661, 8.507059e+37
    %v2663 = vand.u32 %v2235, 2147483648
    %v2664 = vor.u32 1.1754944e-38, %v2663
    %v2665 = vsel %vm2662, %v2664, %v2660
    %v2666 = vmul.f32 %v2064, %v2665
    %v2667 = vrcp.pop %v2240
    %v2668 = vmul.f32 %v2240, %v2667
    %v2669 = vsub.f32 1.0, %v2668
    %v2670 = vmul.f32 %v2667, %v2669
    %v2671 = vadd.f32 %v2667, %v2670
    %vm2672 = vweird.f32 %v2240
    %vm2673 = vweird.f32 %v2667
    %vm2674 = vmor %vm2672, %vm2673
    %v2675 = vsel %vm2674, %v2667, %v2671
    %v2676 = vand.u32 2147483647, %v2240
    %vm2677 = vcmp.eq.f32.partialorder %v2676, 8.507059e+37
    %v2678 = vand.u32 %v2240, 2147483648
    %v2679 = vor.u32 1.1754944e-38, %v2678
    %v2680 = vsel %vm2677, %v2679, %v2675
    %v2681 = vmul.f32 %v2065, %v2680
    %v2682 = vrcp.pop %v2245
    %v2683 = vmul.f32 %v2245, %v2682
    %v2684 = vsub.f32 1.0, %v2683
    %v2685 = vmul.f32 %v2682, %v2684
    %v2686 = vadd.f32 %v2682, %v2685
    %vm2687 = vweird.f32 %v2245
    %vm2688 = vweird.f32 %v2682
    %vm2689 = vmor %vm2687, %vm2688
    %v2690 = vsel %vm2689, %v2682, %v2686
    %v2691 = vand.u32 2147483647, %v2245
    %vm2692 = vcmp.eq.f32.partialorder %v2691, 8.507059e+37
    %v2693 = vand.u32 %v2245, 2147483648
    %v2694 = vor.u32 1.1754944e-38, %v2693
    %v2695 = vsel %vm2692, %v2694, %v2690
    %v2696 = vmul.f32 %v2066, %v2695
    %v2697 = vrcp.pop %v2250
    %v2698 = vmul.f32 %v2250, %v2697
    %v2699 = vsub.f32 1.0, %v2698
    %v2700 = vmul.f32 %v2697, %v2699
    %v2701 = vadd.f32 %v2697, %v2700
    %vm2702 = vweird.f32 %v2250
    %vm2703 = vweird.f32 %v2697
    %vm2704 = vmor %vm2702, %vm2703
    %v2705 = vsel %vm2704, %v2697, %v2701
    %v2706 = vand.u32 2147483647, %v2250
    %vm2707 = vcmp.eq.f32.partialorder %v2706, 8.507059e+37
    %v2708 = vand.u32 %v2250, 2147483648
    %v2709 = vor.u32 1.1754944e-38, %v2708
    %v2710 = vsel %vm2707, %v2709, %v2705
    %v2711 = vmul.f32 %v2067, %v2710
    %v2712 = vrcp.pop %v2255
    %v2713 = vmul.f32 %v2255, %v2712
    %v2714 = vsub.f32 1.0, %v2713
    %v2715 = vmul.f32 %v2712, %v2714
    %v2716 = vadd.f32 %v2712, %v2715
    %vm2717 = vweird.f32 %v2255
    %vm2718 = vweird.f32 %v2712
    %vm2719 = vmor %vm2717, %vm2718
    %v2720 = vsel %vm2719, %v2712, %v2716
    %v2721 = vand.u32 2147483647, %v2255
    %vm2722 = vcmp.eq.f32.partialorder %v2721, 8.507059e+37
    %v2723 = vand.u32 %v2255, 2147483648
    %v2724 = vor.u32 1.1754944e-38, %v2723
    %v2725 = vsel %vm2722, %v2724, %v2720
    %v2726 = vmul.f32 %v2068, %v2725
    %v2727 = vrcp.pop %v2260
    %v2728 = vmul.f32 %v2260, %v2727
    %v2729 = vsub.f32 1.0, %v2728
    %v2730 = vmul.f32 %v2727, %v2729
    %v2731 = vadd.f32 %v2727, %v2730
    %vm2732 = vweird.f32 %v2260
    %vm2733 = vweird.f32 %v2727
    %vm2734 = vmor %vm2732, %vm2733
    %v2735 = vsel %vm2734, %v2727, %v2731
    %v2736 = vand.u32 2147483647, %v2260
    %vm2737 = vcmp.eq.f32.partialorder %v2736, 8.507059e+37
    %v2738 = vand.u32 %v2260, 2147483648
    %v2739 = vor.u32 1.1754944e-38, %v2738
    %v2740 = vsel %vm2737, %v2739, %v2735
    %v2741 = vmul.f32 %v2069, %v2740
    %v2742 = vld [vmem:[%s2] sm:$0xff]
    %v2743 = vld [vmem:[%s2 + $0x8] sm:$0xff]
    %v2744 = vld [vmem:[%s2 + $0x10] sm:$0xff]
    %v2745 = vld [vmem:[%s2 + $0x18] sm:$0xff]
    %v2746 = vld [vmem:[%s2 + $0x20] sm:$0xff]
    %v2747 = vld [vmem:[%s2 + $0x28] sm:$0xff]
    %v2748 = vld [vmem:[%s2 + $0x30] sm:$0xff]
    %v2749 = vld [vmem:[%s2 + $0x38] sm:$0xff]
    %v2750 = vld [vmem:[%s2 + $0x40] sm:$0xff]
    %v2751 = vld [vmem:[%s2 + $0x48] sm:$0xff]
    %v2752 = vld [vmem:[%s2 + $0x50] sm:$0xff]
    %v2753 = vld [vmem:[%s2 + $0x58] sm:$0xff]
    %v2754 = vld [vmem:[%s2 + $0x60] sm:$0xff]
    %v2755 = vld [vmem:[%s2 + $0x68] sm:$0xff]
    %v2756 = vld [vmem:[%s2 + $0x70] sm:$0xff]
    %v2757 = vld [vmem:[%s2 + $0x78] sm:$0xff]
    %v2758 = vld [vmem:[%s2 + $0x80] sm:$0xff]
    %v2759 = vld [vmem:[%s2 + $0x88] sm:$0xff]
    %v2760 = vld [vmem:[%s2 + $0x90] sm:$0xff]
    %v2761 = vld [vmem:[%s2 + $0x98] sm:$0xff]
    %v2762 = vld [vmem:[%s2 + $0xa0] sm:$0xff]
    %v2763 = vld [vmem:[%s2 + $0xa8] sm:$0xff]
    %v2764 = vld [vmem:[%s2 + $0xb0] sm:$0xff]
    %v2765 = vld [vmem:[%s2 + $0xb8] sm:$0xff]
    %v2766 = vld [vmem:[%s2 + $0xc0] sm:$0xff]
    %v2767 = vld [vmem:[%s2 + $0xc8] sm:$0xff]
    %v2768 = vld [vmem:[%s2 + $0xd0] sm:$0xff]
    %v2769 = vld [vmem:[%s2 + $0xd8] sm:$0xff]
    %v2770 = vld [vmem:[%s2 + $0xe0] sm:$0xff]
    %v2771 = vld [vmem:[%s2 + $0xe8] sm:$0xff]
    %v2772 = vld [vmem:[%s2 + $0xf0] sm:$0xff]
    %v2773 = vld [vmem:[%s2 + $0xf8] sm:$0xff]
    %v2774 = vld [vmem:[%s7] sm:$0x3]
    %v2775 = vld [vmem:[%s8] sm:$0xff]
    %v2776 = vld [vmem:[%s8 + $0x8] sm:$0xff]
    %v2777 = vld [vmem:[%s8 + $0x10] sm:$0x7]
    %vm2778 = vcmask 154624
    %v2780 = vsel %vm2778, %v2276, 0
    %v2783 = vsel %vm2778, %v2291, 0
    %v2786 = vsel %vm2778, %v2306, 0
    %v2789 = vsel %vm2778, %v2321, 0
    %v2792 = vsel %vm2778, %v2336, 0
    %v2795 = vsel %vm2778, %v2351, 0
    %v2798 = vsel %vm2778, %v2366, 0
    %v2801 = vsel %vm2778, %v2381, 0
    %v2804 = vsel %vm2778, %v2396, 0
    %v2807 = vsel %vm2778, %v2411, 0
    %v2810 = vsel %vm2778, %v2426, 0
    %v2813 = vsel %vm2778, %v2441, 0
    %v2816 = vsel %vm2778, %v2456, 0
    %v2819 = vsel %vm2778, %v2471, 0
    %v2822 = vsel %vm2778, %v2486, 0
    %v2825 = vsel %vm2778, %v2501, 0
    %v2828 = vsel %vm2778, %v2516, 0
    %v2831 = vsel %vm2778, %v2531, 0
    %v2834 = vsel %vm2778, %v2546, 0
    %v2837 = vsel %vm2778, %v2561, 0
    %v2840 = vsel %vm2778, %v2576, 0
    %v2843 = vsel %vm2778, %v2591, 0
    %v2846 = vsel %vm2778, %v2606, 0
    %v2849 = vsel %vm2778, %v2621, 0
    %v2852 = vsel %vm2778, %v2636, 0
    %v2855 = vsel %vm2778, %v2651, 0
    %v2858 = vsel %vm2778, %v2666, 0
    %v2861 = vsel %vm2778, %v2681, 0
    %v2864 = vsel %vm2778, %v2696, 0
    %v2867 = vsel %vm2778, %v2711, 0
    %v2870 = vsel %vm2778, %v2726, 0
    %v2873 = vsel %vm2778, %v2741, 0
    %vm2875 = vcmask 1042432
    %v2877 = vsel %vm2875, %v2777, 0
    %2879 = vmatpush.msra.mxu0 0.0
    %2880 = vmatpush.msra.mxu0 0.0
    %2881 = vmatpush.msra.mxu0 0.0
    %2882 = vmatpush.msra.mxu0 0.0
    %2883 = vmatpush.msra.mxu0 0.0
    %2884 = vmatpush.msra.mxu0 0.0
    %2885 = vmatpush.msra.mxu0 0.0
    %2886 = vmatpush.msra.mxu0 0.0
    %2887 = vmatpush.msra.mxu0 0.0
    %2888 = vmatpush.msra.mxu0 0.0
    %2889 = vmatpush.msra.mxu0 0.0
    %2890 = vmatpush.msra.mxu0 0.0
    %2891 = vmatpush.msra.mxu0 0.0
    %2892 = vmatpush.msra.mxu0 %v2877
    %2893 = vmatpush.msra.mxu0 %v2776
    %2894 = vmatpush.msra.mxu0 %v2775
    %2895 = vmatmul.f32.gmra.mxu0 %v2780
    %v2896 = vpop.f32.mrf.mxu0
    %v2897 = vadd.f32 0.0, %v2896
    %2898 = vmatmul.f32.gmra.mxu0 %v2783
    %v2899 = vpop.f32.mrf.mxu0
    %v2900 = vadd.f32 0.0, %v2899
    %2901 = vmatmul.f32.gmra.mxu0 %v2786
    %v2902 = vpop.f32.mrf.mxu0
    %v2903 = vadd.f32 0.0, %v2902
    %2904 = vmatmul.f32.gmra.mxu0 %v2789
    %v2905 = vpop.f32.mrf.mxu0
    %v2906 = vadd.f32 0.0, %v2905
    %2907 = vmatmul.f32.gmra.mxu0 %v2792
    %v2908 = vpop.f32.mrf.mxu0
    %v2909 = vadd.f32 0.0, %v2908
    %2910 = vmatmul.f32.gmra.mxu0 %v2795
    %v2911 = vpop.f32.mrf.mxu0
    %v2912 = vadd.f32 0.0, %v2911
    %2913 = vmatmul.f32.gmra.mxu0 %v2798
    %v2914 = vpop.f32.mrf.mxu0
    %v2915 = vadd.f32 0.0, %v2914
    %2916 = vmatmul.f32.gmra.mxu0 %v2801
    %v2917 = vpop.f32.mrf.mxu0
    %v2918 = vadd.f32 0.0, %v2917
    %2919 = vmatmul.f32.gmra.mxu0 %v2804
    %v2920 = vpop.f32.mrf.mxu0
    %v2921 = vadd.f32 0.0, %v2920
    %2922 = vmatmul.f32.gmra.mxu0 %v2807
    %v2923 = vpop.f32.mrf.mxu0
    %v2924 = vadd.f32 0.0, %v2923
    %2925 = vmatmul.f32.gmra.mxu0 %v2810
    %v2926 = vpop.f32.mrf.mxu0
    %v2927 = vadd.f32 0.0, %v2926
    %2928 = vmatmul.f32.gmra.mxu0 %v2813
    %v2929 = vpop.f32.mrf.mxu0
    %v2930 = vadd.f32 0.0, %v2929
    %2931 = vmatmul.f32.gmra.mxu0 %v2816
    %v2932 = vpop.f32.mrf.mxu0
    %v2933 = vadd.f32 0.0, %v2932
    %2934 = vmatmul.f32.gmra.mxu0 %v2819
    %v2935 = vpop.f32.mrf.mxu0
    %v2936 = vadd.f32 0.0, %v2935
    %2937 = vmatmul.f32.gmra.mxu0 %v2822
    %v2938 = vpop.f32.mrf.mxu0
    %v2939 = vadd.f32 0.0, %v2938
    %2940 = vmatmul.f32.gmra.mxu0 %v2825
    %v2941 = vpop.f32.mrf.mxu0
    %v2942 = vadd.f32 0.0, %v2941
    %2943 = vmatmul.f32.gmra.mxu0 %v2828
    %v2944 = vpop.f32.mrf.mxu0
    %v2945 = vadd.f32 0.0, %v2944
    %2946 = vmatmul.f32.gmra.mxu0 %v2831
    %v2947 = vpop.f32.mrf.mxu0
    %v2948 = vadd.f32 0.0, %v2947
    %2949 = vmatmul.f32.gmra.mxu0 %v2834
    %v2950 = vpop.f32.mrf.mxu0
    %v2951 = vadd.f32 0.0, %v2950
    %2952 = vmatmul.f32.gmra.mxu0 %v2837
    %v2953 = vpop.f32.mrf.mxu0
    %v2954 = vadd.f32 0.0, %v2953
    %2955 = vmatmul.f32.gmra.mxu0 %v2840
    %v2956 = vpop.f32.mrf.mxu0
    %v2957 = vadd.f32 0.0, %v2956
    %2958 = vmatmul.f32.gmra.mxu0 %v2843
    %v2959 = vpop.f32.mrf.mxu0
    %v2960 = vadd.f32 0.0, %v2959
    %2961 = vmatmul.f32.gmra.mxu0 %v2846
    %v2962 = vpop.f32.mrf.mxu0
    %v2963 = vadd.f32 0.0, %v2962
    %2964 = vmatmul.f32.gmra.mxu0 %v2849
    %v2965 = vpop.f32.mrf.mxu0
    %v2966 = vadd.f32 0.0, %v2965
    %2967 = vmatmul.f32.gmra.mxu0 %v2852
    %v2968 = vpop.f32.mrf.mxu0
    %v2969 = vadd.f32 0.0, %v2968
    %2970 = vmatmul.f32.gmra.mxu0 %v2855
    %v2971 = vpop.f32.mrf.mxu0
    %v2972 = vadd.f32 0.0, %v2971
    %2973 = vmatmul.f32.gmra.mxu0 %v2858
    %v2974 = vpop.f32.mrf.mxu0
    %v2975 = vadd.f32 0.0, %v2974
    %2976 = vmatmul.f32.gmra.mxu0 %v2861
    %v2977 = vpop.f32.mrf.mxu0
    %v2978 = vadd.f32 0.0, %v2977
    %2979 = vmatmul.f32.gmra.mxu0 %v2864
    %v2980 = vpop.f32.mrf.mxu0
    %v2981 = vadd.f32 0.0, %v2980
    %2982 = vmatmul.f32.gmra.mxu0 %v2867
    %v2983 = vpop.f32.mrf.mxu0
    %v2984 = vadd.f32 0.0, %v2983
    %2985 = vmatmul.f32.gmra.mxu0 %v2870
    %v2986 = vpop.f32.mrf.mxu0
    %v2987 = vadd.f32 0.0, %v2986
    %2988 = vmatmul.f32.gmra.mxu0 %v2873
    %v2989 = vpop.f32.mrf.mxu0
    %v2990 = vadd.f32 0.0, %v2989
    %2991 = vdwg.mxu0
    %vm2992 = vcmask 15360
    %v2994 = vsel %vm2992, %v2742, 0
    %v2997 = vsel %vm2992, %v2743, 0
    %v3000 = vsel %vm2992, %v2744, 0
    %v3003 = vsel %vm2992, %v2745, 0
    %v3006 = vsel %vm2992, %v2746, 0
    %v3009 = vsel %vm2992, %v2747, 0
    %v3012 = vsel %vm2992, %v2748, 0
    %v3015 = vsel %vm2992, %v2749, 0
    %v3018 = vsel %vm2992, %v2750, 0
    %v3021 = vsel %vm2992, %v2751, 0
    %v3024 = vsel %vm2992, %v2752, 0
    %v3027 = vsel %vm2992, %v2753, 0
    %v3030 = vsel %vm2992, %v2754, 0
    %v3033 = vsel %vm2992, %v2755, 0
    %v3036 = vsel %vm2992, %v2756, 0
    %v3039 = vsel %vm2992, %v2757, 0
    %v3042 = vsel %vm2992, %v2758, 0
    %v3045 = vsel %vm2992, %v2759, 0
    %v3048 = vsel %vm2992, %v2760, 0
    %v3051 = vsel %vm2992, %v2761, 0
    %v3054 = vsel %vm2992, %v2762, 0
    %v3057 = vsel %vm2992, %v2763, 0
    %v3060 = vsel %vm2992, %v2764, 0
    %v3063 = vsel %vm2992, %v2765, 0
    %v3066 = vsel %vm2992, %v2766, 0
    %v3069 = vsel %vm2992, %v2767, 0
    %v3072 = vsel %vm2992, %v2768, 0
    %v3075 = vsel %vm2992, %v2769, 0
    %v3078 = vsel %vm2992, %v2770, 0
    %v3081 = vsel %vm2992, %v2771, 0
    %v3084 = vsel %vm2992, %v2772, 0
    %v3087 = vsel %vm2992, %v2773, 0
    %v3090 = vsel %vm818, %v2774, 0
    %3092 = vmatpush.msra.mxu0 0.0
    %3093 = vmatpush.msra.mxu0 0.0
    %3094 = vmatpush.msra.mxu0 0.0
    %3095 = vmatpush.msra.mxu0 0.0
    %3096 = vmatpush.msra.mxu0 0.0
    %3097 = vmatpush.msra.mxu0 0.0
    %3098 = vmatpush.msra.mxu0 0.0
    %3099 = vmatpush.msra.mxu0 0.0
    %3100 = vmatpush.msra.mxu0 0.0
    %3101 = vmatpush.msra.mxu0 0.0
    %3102 = vmatpush.msra.mxu0 0.0
    %3103 = vmatpush.msra.mxu0 0.0
    %3104 = vmatpush.msra.mxu0 0.0
    %3105 = vmatpush.msra.mxu0 0.0
    %3106 = vmatpush.msra.mxu0 0.0
    %3107 = vmatpush.msra.mxu0 %v3090
    %3108 = vmatmul.f32.gmra.mxu0 %v2994
    %v3109 = vpop.f32.mrf.mxu0
    %v3110 = vadd.f32 %v2897, %v3109
    %3111 = vmatmul.f32.gmra.mxu0 %v2997
    %v3112 = vpop.f32.mrf.mxu0
    %v3113 = vadd.f32 %v2900, %v3112
    %3114 = vmatmul.f32.gmra.mxu0 %v3000
    %v3115 = vpop.f32.mrf.mxu0
    %v3116 = vadd.f32 %v2903, %v3115
    %3117 = vmatmul.f32.gmra.mxu0 %v3003
    %v3118 = vpop.f32.mrf.mxu0
    %v3119 = vadd.f32 %v2906, %v3118
    %3120 = vmatmul.f32.gmra.mxu0 %v3006
    %v3121 = vpop.f32.mrf.mxu0
    %v3122 = vadd.f32 %v2909, %v3121
    %3123 = vmatmul.f32.gmra.mxu0 %v3009
    %v3124 = vpop.f32.mrf.mxu0
    %v3125 = vadd.f32 %v2912, %v3124
    %3126 = vmatmul.f32.gmra.mxu0 %v3012
    %v3127 = vpop.f32.mrf.mxu0
    %v3128 = vadd.f32 %v2915, %v3127
    %3129 = vmatmul.f32.gmra.mxu0 %v3015
    %v3130 = vpop.f32.mrf.mxu0
    %v3131 = vadd.f32 %v2918, %v3130
    %3132 = vmatmul.f32.gmra.mxu0 %v3018
    %v3133 = vpop.f32.mrf.mxu0
    %v3134 = vadd.f32 %v2921, %v3133
    %3135 = vmatmul.f32.gmra.mxu0 %v3021
    %v3136 = vpop.f32.mrf.mxu0
    %v3137 = vadd.f32 %v2924, %v3136
    %3138 = vmatmul.f32.gmra.mxu0 %v3024
    %v3139 = vpop.f32.mrf.mxu0
    %v3140 = vadd.f32 %v2927, %v3139
    %3141 = vmatmul.f32.gmra.mxu0 %v3027
    %v3142 = vpop.f32.mrf.mxu0
    %v3143 = vadd.f32 %v2930, %v3142
    %3144 = vmatmul.f32.gmra.mxu0 %v3030
    %v3145 = vpop.f32.mrf.mxu0
    %v3146 = vadd.f32 %v2933, %v3145
    %3147 = vmatmul.f32.gmra.mxu0 %v3033
    %v3148 = vpop.f32.mrf.mxu0
    %v3149 = vadd.f32 %v2936, %v3148
    %3150 = vmatmul.f32.gmra.mxu0 %v3036
    %v3151 = vpop.f32.mrf.mxu0
    %v3152 = vadd.f32 %v2939, %v3151
    %3153 = vmatmul.f32.gmra.mxu0 %v3039
    %v3154 = vpop.f32.mrf.mxu0
    %v3155 = vadd.f32 %v2942, %v3154
    %3156 = vmatmul.f32.gmra.mxu0 %v3042
    %v3157 = vpop.f32.mrf.mxu0
    %v3158 = vadd.f32 %v2945, %v3157
    %3159 = vmatmul.f32.gmra.mxu0 %v3045
    %v3160 = vpop.f32.mrf.mxu0
    %v3161 = vadd.f32 %v2948, %v3160
    %3162 = vmatmul.f32.gmra.mxu0 %v3048
    %v3163 = vpop.f32.mrf.mxu0
    %v3164 = vadd.f32 %v2951, %v3163
    %3165 = vmatmul.f32.gmra.mxu0 %v3051
    %v3166 = vpop.f32.mrf.mxu0
    %v3167 = vadd.f32 %v2954, %v3166
    %3168 = vmatmul.f32.gmra.mxu0 %v3054
    %v3169 = vpop.f32.mrf.mxu0
    %v3170 = vadd.f32 %v2957, %v3169
    %3171 = vmatmul.f32.gmra.mxu0 %v3057
    %v3172 = vpop.f32.mrf.mxu0
    %v3173 = vadd.f32 %v2960, %v3172
    %3174 = vmatmul.f32.gmra.mxu0 %v3060
    %v3175 = vpop.f32.mrf.mxu0
    %v3176 = vadd.f32 %v2963, %v3175
    %3177 = vmatmul.f32.gmra.mxu0 %v3063
    %v3178 = vpop.f32.mrf.mxu0
    %v3179 = vadd.f32 %v2966, %v3178
    %3180 = vmatmul.f32.gmra.mxu0 %v3066
    %v3181 = vpop.f32.mrf.mxu0
    %v3182 = vadd.f32 %v2969, %v3181
    %3183 = vmatmul.f32.gmra.mxu0 %v3069
    %v3184 = vpop.f32.mrf.mxu0
    %v3185 = vadd.f32 %v2972, %v3184
    %3186 = vmatmul.f32.gmra.mxu0 %v3072
    %v3187 = vpop.f32.mrf.mxu0
    %v3188 = vadd.f32 %v2975, %v3187
    %3189 = vmatmul.f32.gmra.mxu0 %v3075
    %v3190 = vpop.f32.mrf.mxu0
    %v3191 = vadd.f32 %v2978, %v3190
    %3192 = vmatmul.f32.gmra.mxu0 %v3078
    %v3193 = vpop.f32.mrf.mxu0
    %v3194 = vadd.f32 %v2981, %v3193
    %3195 = vmatmul.f32.gmra.mxu0 %v3081
    %v3196 = vpop.f32.mrf.mxu0
    %v3197 = vadd.f32 %v2984, %v3196
    %3198 = vmatmul.f32.gmra.mxu0 %v3084
    %v3199 = vpop.f32.mrf.mxu0
    %v3200 = vadd.f32 %v2987, %v3199
    %3201 = vmatmul.f32.gmra.mxu0 %v3087
    %v3202 = vpop.f32.mrf.mxu0
    %v3203 = vadd.f32 %v2990, %v3202
    %3204 = vdwg.mxu0
    %v3205 = vld [vmem:[%s9] sm:$0x1]
    %v3207 = vperm.slane %v3205, 0
    %v3209 = vadd.f32 %v3110, %v3207
    %v3210 = vadd.f32 %v3113, %v3207
    %v3211 = vadd.f32 %v3116, %v3207
    %v3212 = vadd.f32 %v3119, %v3207
    %v3213 = vadd.f32 %v3122, %v3207
    %v3214 = vadd.f32 %v3125, %v3207
    %v3215 = vadd.f32 %v3128, %v3207
    %v3216 = vadd.f32 %v3131, %v3207
    %v3217 = vadd.f32 %v3134, %v3207
    %v3218 = vadd.f32 %v3137, %v3207
    %v3219 = vadd.f32 %v3140, %v3207
    %v3220 = vadd.f32 %v3143, %v3207
    %v3221 = vadd.f32 %v3146, %v3207
    %v3222 = vadd.f32 %v3149, %v3207
    %v3223 = vadd.f32 %v3152, %v3207
    %v3224 = vadd.f32 %v3155, %v3207
    %v3225 = vadd.f32 %v3158, %v3207
    %v3226 = vadd.f32 %v3161, %v3207
    %v3227 = vadd.f32 %v3164, %v3207
    %v3228 = vadd.f32 %v3167, %v3207
    %v3229 = vadd.f32 %v3170, %v3207
    %v3230 = vadd.f32 %v3173, %v3207
    %v3231 = vadd.f32 %v3176, %v3207
    %v3232 = vadd.f32 %v3179, %v3207
    %v3233 = vadd.f32 %v3182, %v3207
    %v3234 = vadd.f32 %v3185, %v3207
    %v3235 = vadd.f32 %v3188, %v3207
    %v3236 = vadd.f32 %v3191, %v3207
    %v3237 = vadd.f32 %v3194, %v3207
    %v3238 = vadd.f32 %v3197, %v3207
    %v3239 = vadd.f32 %v3200, %v3207
    %v3240 = vadd.f32 %v3203, %v3207
    %v3241 = vmax.f32 %v3209, 0.0
    %v3242 = vmax.f32 %v3210, 0.0
    %v3243 = vmax.f32 %v3211, 0.0
    %v3244 = vmax.f32 %v3212, 0.0
    %v3245 = vmax.f32 %v3213, 0.0
    %v3246 = vmax.f32 %v3214, 0.0
    %v3247 = vmax.f32 %v3215, 0.0
    %v3248 = vmax.f32 %v3216, 0.0
    %v3249 = vmax.f32 %v3217, 0.0
    %v3250 = vmax.f32 %v3218, 0.0
    %v3251 = vmax.f32 %v3219, 0.0
    %v3252 = vmax.f32 %v3220, 0.0
    %v3253 = vmax.f32 %v3221, 0.0
    %v3254 = vmax.f32 %v3222, 0.0
    %v3255 = vmax.f32 %v3223, 0.0
    %v3256 = vmax.f32 %v3224, 0.0
    %v3257 = vmax.f32 %v3225, 0.0
    %v3258 = vmax.f32 %v3226, 0.0
    %v3259 = vmax.f32 %v3227, 0.0
    %v3260 = vmax.f32 %v3228, 0.0
    %v3261 = vmax.f32 %v3229, 0.0
    %v3262 = vmax.f32 %v3230, 0.0
    %v3263 = vmax.f32 %v3231, 0.0
    %v3264 = vmax.f32 %v3232, 0.0
    %v3265 = vmax.f32 %v3233, 0.0
    %v3266 = vmax.f32 %v3234, 0.0
    %v3267 = vmax.f32 %v3235, 0.0
    %v3268 = vmax.f32 %v3236, 0.0
    %v3269 = vmax.f32 %v3237, 0.0
    %v3270 = vmax.f32 %v3238, 0.0
    %v3271 = vmax.f32 %v3239, 0.0
    %v3272 = vmax.f32 %v3240, 0.0
    %v3273 = vld [vmem:[%s10] sm:$0xff]
    %v3274 = vld [vmem:[%s10 + $0x8] sm:$0x3]
    %v3275 = vld [vmem:[%s11] sm:$0x1]
    %v3277 = vperm.slane %v3275, 0
    %v3280 = vsel %vm625, %v3241, 0
    %v3283 = vsel %vm625, %v3242, 0
    %v3286 = vsel %vm625, %v3243, 0
    %v3289 = vsel %vm625, %v3244, 0
    %v3292 = vsel %vm625, %v3245, 0
    %v3295 = vsel %vm625, %v3246, 0
    %v3298 = vsel %vm625, %v3247, 0
    %v3301 = vsel %vm625, %v3248, 0
    %v3304 = vsel %vm625, %v3249, 0
    %v3307 = vsel %vm625, %v3250, 0
    %v3310 = vsel %vm625, %v3251, 0
    %v3313 = vsel %vm625, %v3252, 0
    %v3316 = vsel %vm625, %v3253, 0
    %v3319 = vsel %vm625, %v3254, 0
    %v3322 = vsel %vm625, %v3255, 0
    %v3325 = vsel %vm625, %v3256, 0
    %v3328 = vsel %vm625, %v3257, 0
    %v3331 = vsel %vm625, %v3258, 0
    %v3334 = vsel %vm625, %v3259, 0
    %v3337 = vsel %vm625, %v3260, 0
    %v3340 = vsel %vm625, %v3261, 0
    %v3343 = vsel %vm625, %v3262, 0
    %v3346 = vsel %vm625, %v3263, 0
    %v3349 = vsel %vm625, %v3264, 0
    %v3352 = vsel %vm625, %v3265, 0
    %v3355 = vsel %vm625, %v3266, 0
    %v3358 = vsel %vm625, %v3267, 0
    %v3361 = vsel %vm625, %v3268, 0
    %v3364 = vsel %vm625, %v3269, 0
    %v3367 = vsel %vm625, %v3270, 0
    %v3370 = vsel %vm625, %v3271, 0
    %v3373 = vsel %vm625, %v3272, 0
    %v3376 = vsel %vm818, %v3274, 0
    %3378 = vmatpush.msra.mxu0 0.0
    %3379 = vmatpush.msra.mxu0 0.0
    %3380 = vmatpush.msra.mxu0 0.0
    %3381 = vmatpush.msra.mxu0 0.0
    %3382 = vmatpush.msra.mxu0 0.0
    %3383 = vmatpush.msra.mxu0 0.0
    %3384 = vmatpush.msra.mxu0 0.0
    %3385 = vmatpush.msra.mxu0 0.0
    %3386 = vmatpush.msra.mxu0 0.0
    %3387 = vmatpush.msra.mxu0 0.0
    %3388 = vmatpush.msra.mxu0 0.0
    %3389 = vmatpush.msra.mxu0 0.0
    %3390 = vmatpush.msra.mxu0 0.0
    %3391 = vmatpush.msra.mxu0 0.0
    %3392 = vmatpush.msra.mxu0 %v3376
    %3393 = vmatpush.msra.mxu0 %v3273
    %3394 = vmatmul.f32.gmra.mxu0 %v3280
    %v3395 = vpop.f32.mrf.mxu0
    %v3396 = vadd.f32 %v3277, %v3395
    %3397 = vmatmul.f32.gmra.mxu0 %v3283
    %v3398 = vpop.f32.mrf.mxu0
    %v3399 = vadd.f32 %v3277, %v3398
    %3400 = vmatmul.f32.gmra.mxu0 %v3286
    %v3401 = vpop.f32.mrf.mxu0
    %v3402 = vadd.f32 %v3277, %v3401
    %3403 = vmatmul.f32.gmra.mxu0 %v3289
    %v3404 = vpop.f32.mrf.mxu0
    %v3405 = vadd.f32 %v3277, %v3404
    %3406 = vmatmul.f32.gmra.mxu0 %v3292
    %v3407 = vpop.f32.mrf.mxu0
    %v3408 = vadd.f32 %v3277, %v3407
    %3409 = vmatmul.f32.gmra.mxu0 %v3295
    %v3410 = vpop.f32.mrf.mxu0
    %v3411 = vadd.f32 %v3277, %v3410
    %3412 = vmatmul.f32.gmra.mxu0 %v3298
    %v3413 = vpop.f32.mrf.mxu0
    %v3414 = vadd.f32 %v3277, %v3413
    %3415 = vmatmul.f32.gmra.mxu0 %v3301
    %v3416 = vpop.f32.mrf.mxu0
    %v3417 = vadd.f32 %v3277, %v3416
    %3418 = vmatmul.f32.gmra.mxu0 %v3304
    %v3419 = vpop.f32.mrf.mxu0
    %v3420 = vadd.f32 %v3277, %v3419
    %3421 = vmatmul.f32.gmra.mxu0 %v3307
    %v3422 = vpop.f32.mrf.mxu0
    %v3423 = vadd.f32 %v3277, %v3422
    %3424 = vmatmul.f32.gmra.mxu0 %v3310
    %v3425 = vpop.f32.mrf.mxu0
    %v3426 = vadd.f32 %v3277, %v3425
    %3427 = vmatmul.f32.gmra.mxu0 %v3313
    %v3428 = vpop.f32.mrf.mxu0
    %v3429 = vadd.f32 %v3277, %v3428
    %3430 = vmatmul.f32.gmra.mxu0 %v3316
    %v3431 = vpop.f32.mrf.mxu0
    %v3432 = vadd.f32 %v3277, %v3431
    %3433 = vmatmul.f32.gmra.mxu0 %v3319
    %v3434 = vpop.f32.mrf.mxu0
    %v3435 = vadd.f32 %v3277, %v3434
    %3436 = vmatmul.f32.gmra.mxu0 %v3322
    %v3437 = vpop.f32.mrf.mxu0
    %v3438 = vadd.f32 %v3277, %v3437
    %3439 = vmatmul.f32.gmra.mxu0 %v3325
    %v3440 = vpop.f32.mrf.mxu0
    %v3441 = vadd.f32 %v3277, %v3440
    %3442 = vmatmul.f32.gmra.mxu0 %v3328
    %v3443 = vpop.f32.mrf.mxu0
    %v3444 = vadd.f32 %v3277, %v3443
    %3445 = vmatmul.f32.gmra.mxu0 %v3331
    %v3446 = vpop.f32.mrf.mxu0
    %v3447 = vadd.f32 %v3277, %v3446
    %3448 = vmatmul.f32.gmra.mxu0 %v3334
    %v3449 = vpop.f32.mrf.mxu0
    %v3450 = vadd.f32 %v3277, %v3449
    %3451 = vmatmul.f32.gmra.mxu0 %v3337
    %v3452 = vpop.f32.mrf.mxu0
    %v3453 = vadd.f32 %v3277, %v3452
    %3454 = vmatmul.f32.gmra.mxu0 %v3340
    %v3455 = vpop.f32.mrf.mxu0
    %v3456 = vadd.f32 %v3277, %v3455
    %3457 = vmatmul.f32.gmra.mxu0 %v3343
    %v3458 = vpop.f32.mrf.mxu0
    %v3459 = vadd.f32 %v3277, %v3458
    %3460 = vmatmul.f32.gmra.mxu0 %v3346
    %v3461 = vpop.f32.mrf.mxu0
    %v3462 = vadd.f32 %v3277, %v3461
    %3463 = vmatmul.f32.gmra.mxu0 %v3349
    %v3464 = vpop.f32.mrf.mxu0
    %v3465 = vadd.f32 %v3277, %v3464
    %3466 = vmatmul.f32.gmra.mxu0 %v3352
    %v3467 = vpop.f32.mrf.mxu0
    %v3468 = vadd.f32 %v3277, %v3467
    %3469 = vmatmul.f32.gmra.mxu0 %v3355
    %v3470 = vpop.f32.mrf.mxu0
    %v3471 = vadd.f32 %v3277, %v3470
    %3472 = vmatmul.f32.gmra.mxu0 %v3358
    %v3473 = vpop.f32.mrf.mxu0
    %v3474 = vadd.f32 %v3277, %v3473
    %3475 = vmatmul.f32.gmra.mxu0 %v3361
    %v3476 = vpop.f32.mrf.mxu0
    %v3477 = vadd.f32 %v3277, %v3476
    %3478 = vmatmul.f32.gmra.mxu0 %v3364
    %v3479 = vpop.f32.mrf.mxu0
    %v3480 = vadd.f32 %v3277, %v3479
    %3481 = vmatmul.f32.gmra.mxu0 %v3367
    %v3482 = vpop.f32.mrf.mxu0
    %v3483 = vadd.f32 %v3277, %v3482
    %3484 = vmatmul.f32.gmra.mxu0 %v3370
    %v3485 = vpop.f32.mrf.mxu0
    %v3486 = vadd.f32 %v3277, %v3485
    %3487 = vmatmul.f32.gmra.mxu0 %v3373
    %v3488 = vpop.f32.mrf.mxu0
    %v3489 = vadd.f32 %v3277, %v3488
    %3490 = vdwg.mxu0
    %3491 = vst.msk [vmem:[%s12] sm:$0xff] %vm2778, %v3396
    %3492 = vst.msk [vmem:[%s12 + $0x8] sm:$0xff] %vm2778, %v3399
    %3493 = vst.msk [vmem:[%s12 + $0x10] sm:$0xff] %vm2778, %v3402
    %3494 = vst.msk [vmem:[%s12 + $0x18] sm:$0xff] %vm2778, %v3405
    %3495 = vst.msk [vmem:[%s12 + $0x20] sm:$0xff] %vm2778, %v3408
    %3496 = vst.msk [vmem:[%s12 + $0x28] sm:$0xff] %vm2778, %v3411
    %3497 = vst.msk [vmem:[%s12 + $0x30] sm:$0xff] %vm2778, %v3414
    %3498 = vst.msk [vmem:[%s12 + $0x38] sm:$0xff] %vm2778, %v3417
    %3499 = vst.msk [vmem:[%s12 + $0x40] sm:$0xff] %vm2778, %v3420
    %3500 = vst.msk [vmem:[%s12 + $0x48] sm:$0xff] %vm2778, %v3423
    %3501 = vst.msk [vmem:[%s12 + $0x50] sm:$0xff] %vm2778, %v3426
    %3502 = vst.msk [vmem:[%s12 + $0x58] sm:$0xff] %vm2778, %v3429
    %3503 = vst.msk [vmem:[%s12 + $0x60] sm:$0xff] %vm2778, %v3432
    %3504 = vst.msk [vmem:[%s12 + $0x68] sm:$0xff] %vm2778, %v3435
    %3505 = vst.msk [vmem:[%s12 + $0x70] sm:$0xff] %vm2778, %v3438
    %3506 = vst.msk [vmem:[%s12 + $0x78] sm:$0xff] %vm2778, %v3441
    %3507 = vst.msk [vmem:[%s12 + $0x80] sm:$0xff] %vm2778, %v3444
    %3508 = vst.msk [vmem:[%s12 + $0x88] sm:$0xff] %vm2778, %v3447
    %3509 = vst.msk [vmem:[%s12 + $0x90] sm:$0xff] %vm2778, %v3450
    %3510 = vst.msk [vmem:[%s12 + $0x98] sm:$0xff] %vm2778, %v3453
    %3511 = vst.msk [vmem:[%s12 + $0xa0] sm:$0xff] %vm2778, %v3456
    %3512 = vst.msk [vmem:[%s12 + $0xa8] sm:$0xff] %vm2778, %v3459
    %3513 = vst.msk [vmem:[%s12 + $0xb0] sm:$0xff] %vm2778, %v3462
    %3514 = vst.msk [vmem:[%s12 + $0xb8] sm:$0xff] %vm2778, %v3465
    %3515 = vst.msk [vmem:[%s12 + $0xc0] sm:$0xff] %vm2778, %v3468
    %3516 = vst.msk [vmem:[%s12 + $0xc8] sm:$0xff] %vm2778, %v3471
    %3517 = vst.msk [vmem:[%s12 + $0xd0] sm:$0xff] %vm2778, %v3474
    %3518 = vst.msk [vmem:[%s12 + $0xd8] sm:$0xff] %vm2778, %v3477
    %3519 = vst.msk [vmem:[%s12 + $0xe0] sm:$0xff] %vm2778, %v3480
    %3520 = vst.msk [vmem:[%s12 + $0xe8] sm:$0xff] %vm2778, %v3483
    %3521 = vst.msk [vmem:[%s12 + $0xf0] sm:$0xff] %vm2778, %v3486
    %3522 = vst.msk [vmem:[%s12 + $0xf8] sm:$0xff] %vm2778, %v3489
  $region57: #{node_model.1} parent=0 // pred_fallthru
    _
  // Predicated region
  $region58: #{node_model.1} parent=0 // pred_check
    _
  $region59: #{node_model.1} parent=0 // pred_check_branch
    %3524 = sbr.rel (0) target = $region61
  $region60: #{node_model.1} parent=0 // pred_region
    _
  $region61: #{node_model.1} parent=0 // pred_fallthru
    _
  // Predicated region
  $region62: #{node_model.1} parent=0 // pred_check
    _
  $region63: #{node_model.1} parent=0 // pred_check_branch
    %3526 = sbr.rel (0) target = $region65
  $region64: #{node_model.1} parent=0 // pred_region
    _
  $region65: #{node_model.1} parent=0 // pred_fallthru
    _

</llo_original>
